<compile_context>
chip_gen: v5e
topology: v5e:2x2
jax: 0.10.0
libtpu: 0.0.40
codegen_flags: <defaults>
</compile_context>

<pallas_src>
import numpy as np
import jax
import jax.numpy as jnp
from jax.experimental import pallas as pl
from jax.experimental.pallas import tpu as pltpu


# ---------------------------------------------------------------------------
# Host-side structural matrices (layout glue, computed once, passed as inputs)
# ---------------------------------------------------------------------------
def _pool_mat_np(m_in):
    """AdaptiveAvgPool2d(m_in -> m_in//2) == 2x2 mean pool: y = D @ x @ D.T."""
    m_out = m_in // 2
    d = np.zeros((m_out, m_in), np.float32)
    for k in range(m_out):
        d[k, 2 * k] = 0.5
        d[k, 2 * k + 1] = 0.5
    return d


def _upsample_mat_np(m_in):
    """nn.Upsample(scale=2, bilinear, align_corners=False): y = U @ x @ U.T."""
    m_out = 2 * m_in
    u = np.zeros((m_out, m_in), np.float32)
    for o in range(m_out):
        src = max((o + 0.5) * 0.5 - 0.5, 0.0)
        i0 = int(np.floor(src))
        i1 = min(i0 + 1, m_in - 1)
        lam = src - i0
        u[o, i0] += 1.0 - lam
        u[o, i1] += lam
    return u


def _conv_band_stack(w3x3, m):
    """(3, m, m) banded mats: (x @ B[d])[h,w] = sum_dw w3x3[d,dw+1]*x[h,w+dw]."""
    def band(row):
        return (row[0] * jnp.eye(m, k=1, dtype=jnp.float32)
                + row[1] * jnp.eye(m, k=0, dtype=jnp.float32)
                + row[2] * jnp.eye(m, k=-1, dtype=jnp.float32))
    return jnp.stack([band(w3x3[d]) for d in range(3)], axis=0)


def _block_diag(mat, bt):
    """Block-diagonal with bt identical blocks (per-image op in packed layout)."""
    return jnp.kron(jnp.eye(bt, dtype=jnp.float32), jnp.asarray(mat, jnp.float32))


def _roll_masks_np(m, width):
    """(2, m, width): [0] zeros row 0 (wrap of roll +1), [1] zeros row m-1."""
    top = np.ones((m, width), np.float32)
    top[0, :] = 0.0
    bot = np.ones((m, width), np.float32)
    bot[-1, :] = 0.0
    return np.stack([top, bot], axis=0)


# ---------------------------------------------------------------------------
# Fused Pallas kernel: whole UNet2D forward for Bt packed images per grid step
# ---------------------------------------------------------------------------
def _build_fused_kernel(n, depth):
    nc = depth  # conv2 runs at sizes n/2^i for i in [0, depth)

    def kernel(*refs):
        o_ref = refs[-1]
        it = iter(refs[:-1])
        x_ref = next(it)
        b1_ref = next(it)
        b2_ref = next(it)
        conv1_band_ref = next(it)
        conv2_band_refs = [next(it) for _ in range(nc)]
        mask_refs = [next(it) for _ in range(nc)]
        down_w_refs = [next(it) for _ in range(depth)]
        down_b_refs = [next(it) for _ in range(depth)]
        up_w_refs = [next(it) for _ in range(depth)]
        up_b_refs = [next(it) for _ in range(depth)]
        bot_w_ref = next(it)
        bot_b_ref = next(it)
        pool_l_refs = [next(it) for _ in range(depth)]
        pool_r_refs = [next(it) for _ in range(depth)]
        ups_l_refs = [next(it) for _ in range(depth)]
        ups_r_refs = [next(it) for _ in range(depth)]

        def mm(a, b):
            return jnp.dot(a, b, preferred_element_type=jnp.float32)

        # Hoisted loads of constants reused across the unrolled loops
        # (JAX does not CSE these broadcasts/loads).
        b1 = b1_ref[...]
        b2 = b2_ref[...]
        conv1_bands = (conv1_band_ref[0], conv1_band_ref[1], conv1_band_ref[2])
        conv2_bands = [(r[0], r[1], r[2]) for r in conv2_band_refs]
        masks = [(r[0], r[1]) for r in mask_refs]

        def conv3x3(xt, bands, mask, bias):
            # Column (lane-direction) taps: block-diagonal banded MXU matmuls.
            m = xt.shape[0]
            t_m1 = mm(xt, bands[0])            # kernel row dh = -1
            t_0 = mm(xt, bands[1])             # kernel row dh =  0
            t_p1 = mm(xt, bands[2])            # kernel row dh = +1
            # Row (sublane-direction) shifts: XLU rolls; masks zero the wrapped
            # boundary row so SAME / zero padding is preserved.
            y = t_0 + mask[0] * pltpu.roll(t_m1, shift=1, axis=0)
            y = y + mask[1] * pltpu.roll(t_p1, shift=m - 1, axis=0)
            return y + bias

        x = x_ref[0]                                              # (n, Bt*n)
        # conv1 -> relu
        x = jnp.maximum(conv3x3(x, conv1_bands, masks[0], b1), 0.0)

        reserve = []
        for i in range(depth):
            x = mm(x, down_w_refs[i][...]) + down_b_refs[i][...]  # Linear
            x = conv3x3(x, conv2_bands[i], masks[i], b2)          # shared conv2
            reserve.append(x)                                     # skip tensor
            x = mm(pool_l_refs[i][...], mm(x, pool_r_refs[i][...]))  # 2x2 pool
            x = jnp.maximum(x, 0.0)

        x = jnp.maximum(mm(x, bot_w_ref[...]) + bot_b_ref[...], 0.0)  # bottom

        for i in range(depth - 1, -1, -1):
            x = mm(ups_l_refs[i][...], mm(x, ups_r_refs[i][...]))  # bilinear x2
            x = conv3x3(x, conv2_bands[i], masks[i], b2)           # shared conv2
            x = mm(x, up_w_refs[i][...]) + up_b_refs[i][...]       # Linear
            x = x + reserve[i]                                     # residual add
            x = jnp.maximum(x, 0.0)

        # sigmoid; approx reciprocal routes the divide to the EUP slot
        o_ref[0] = pl.reciprocal(1.0 + jnp.exp(-x), approx=True)

    return kernel


def forward(params, x, n, depth, lane_target=256):
    """x: (B, n, n) float32.  Returns (B, n, n) in (0, 1).

    Packs Bt = lane_target // n images along the lane axis (256-wide slabs for
    v6e/v7x MXU; use lane_target=128 for v5e) and runs one grid step per slab.
    """
    assert n % (2 ** depth) == 0
    B = x.shape[0]
    sizes = [n // (2 ** i) for i in range(depth + 1)]
    conv_sizes = sizes[:depth]

    # ---- batch folding: (B, n, n) -> (G, n, Bt*n) lane-packed slabs ---------
    bt = max(1, min(lane_target // n, B))
    G = -(-B // bt)
    Bp = G * bt
    xp = x
    if Bp != B:
        xp = jnp.concatenate([xp, jnp.zeros((Bp - B, n, n), xp.dtype)], axis=0)
    xp = xp.reshape(G, bt, n, n).transpose(0, 2, 1, 3).reshape(G, n, bt * n)

    ins = [xp]
    specs = [pl.BlockSpec((1, n, bt * n), lambda g: (g, 0, 0))]

    def add_const(arr):
        arr = jnp.asarray(arr, jnp.float32)
        nd = arr.ndim
        ins.append(arr)
        specs.append(pl.BlockSpec(arr.shape, lambda g, _nd=nd: (0,) * _nd))

    def band_bd(w3x3, m):
        bands = _conv_band_stack(w3x3, m)
        return jnp.stack([_block_diag(bands[d], bt) for d in range(3)], axis=0)

    # conv biases (scalars) and block-diagonal banded column-tap matrices
    add_const(params["conv1_b"].reshape(1, 1))
    add_const(params["conv2_b"].reshape(1, 1))
    add_const(band_bd(params["conv1_w"][0, 0], n))
    for m in conv_sizes:
        add_const(band_bd(params["conv2_w"][0, 0], m))
    # boundary masks for the sublane rolls
    for m in conv_sizes:
        add_const(_roll_masks_np(m, bt * m))
    # linear layers: block-diagonal pre-transposed weights, lane-tiled biases
    for i in range(depth):
        add_const(_block_diag(params["down_w"][i].T, bt))
    for i in range(depth):
        add_const(jnp.tile(params["down_b"][i].reshape(1, -1), (1, bt)))
    for i in range(depth):
        add_const(_block_diag(params["up_w"][i].T, bt))
    for i in range(depth):
        add_const(jnp.tile(params["up_b"][i].reshape(1, -1), (1, bt)))
    add_const(_block_diag(params["bottom_w"].T, bt))
    add_const(jnp.tile(params["bottom_b"].reshape(1, -1), (1, bt)))
    # pooling / upsampling: plain left operator, block-diagonal right operator
    pool_mats = [_pool_mat_np(sizes[i]) for i in range(depth)]
    for i in range(depth):
        add_const(pool_mats[i])
    for i in range(depth):
        add_const(_block_diag(pool_mats[i].T, bt))
    up_mats = [_upsample_mat_np(sizes[i + 1]) for i in range(depth)]
    for i in range(depth):
        add_const(up_mats[i])
    for i in range(depth):
        add_const(_block_diag(up_mats[i].T, bt))

    kernel = _build_fused_kernel(n, depth)
    out = pl.pallas_call(
        kernel,
        out_shape=jax.ShapeDtypeStruct((G, n, bt * n), jnp.float32),
        grid=(G,),
        in_specs=specs,
        out_specs=pl.BlockSpec((1, n, bt * n), lambda g: (g, 0, 0)),
        compiler_params=pltpu.CompilerParams(
            dimension_semantics=("parallel",)),
    )(*ins)

    # undo the lane packing (cheap layout plumbing outside the kernel)
    out = out.reshape(G, n, bt, n).transpose(0, 2, 1, 3).reshape(Bp, n, n)
    return out[:B]


# ---------------------------------------------------------------------------
# Parameters (PyTorch-like shapes/init) and pure-JAX reference (verification)
# ---------------------------------------------------------------------------
def init_params(key, n, depth):
    sizes = [n // (2 ** i) for i in range(depth + 1)]
    keys = iter(jax.random.split(key, 6 + 4 * depth))

    def u(shape, bound):
        return jax.random.uniform(next(keys), shape, jnp.float32, -bound, bound)

    p = {}
    kc = 1.0 / np.sqrt(9.0)
    p["conv1_w"] = u((1, 1, 3, 3), kc)
    p["conv1_b"] = u((1,), kc)
    p["conv2_w"] = u((1, 1, 3, 3), kc)
    p["conv2_b"] = u((1,), kc)
    p["down_w"], p["down_b"], p["up_w"], p["up_b"] = [], [], [], []
    for i in range(depth):
        m = sizes[i]
        kl = 1.0 / np.sqrt(m)
        p["down_w"].append(u((m, m), kl))
        p["down_b"].append(u((m,), kl))
        p["up_w"].append(u((m, m), kl))
        p["up_b"].append(u((m,), kl))
    md = sizes[depth]
    kb = 1.0 / np.sqrt(md)
    p["bottom_w"] = u((md, md), kb)
    p["bottom_b"] = u((md,), kb)
    return p


def _upsample_bilinear_x2_ref(h):
    m = h.shape[-1]
    o = np.arange(2 * m)
    src = np.maximum((o + 0.5) * 0.5 - 0.5, 0.0)
    i0 = np.floor(src).astype(np.int32)
    i1 = np.minimum(i0 + 1, m - 1)
    lam = (src - i0).astype(np.float32)
    w0 = (1.0 - lam)
    h = h[:, :, i0, :] * w0[None, None, :, None] + h[:, :, i1, :] * lam[None, None, :, None]
    h = h[:, :, :, i0] * w0[None, None, None, :] + h[:, :, :, i1] * lam[None, None, None, :]
    return h


def reference(params, x, n, depth):
    h = x[:, None, :, :]

    def conv(t, w, b):
        y = jax.lax.conv_general_dilated(
            t, w, window_strides=(1, 1), padding="SAME",
            dimension_numbers=("NCHW", "OIHW", "NCHW"))
        return y + b[None, :, None, None]

    h = jax.nn.relu(conv(h, params["conv1_w"], params["conv1_b"]))
    reserve = []
    for i in range(depth):
        h = h @ params["down_w"][i].T + params["down_b"][i]
        h = conv(h, params["conv2_w"], params["conv2_b"])
        reserve.append(h)
        Bb, C, H, W = h.shape
        h = h.reshape(Bb, C, H // 2, 2, W // 2, 2).mean(axis=(3, 5))
        h = jax.nn.relu(h)
    h = jax.nn.relu(h @ params["bottom_w"].T + params["bottom_b"])
    for i in range(depth - 1, -1, -1):
        h = _upsample_bilinear_x2_ref(h)
        h = conv(h, params["conv2_w"], params["conv2_b"])
        h = h @ params["up_w"][i].T + params["up_b"][i]
        h = h + reserve[i]
        h = jax.nn.relu(h)
    h = jax.nn.sigmoid(h)
    return h[:, 0]


if __name__ == "__main__":
    n = 16          # spatial size (must be divisible by 2**depth)
    depth = 2
    B = 32          # folded into (16, 256) lane-packed slabs -> grid of 2 steps

    key = jax.random.PRNGKey(0)
    kp, kx = jax.random.split(key)
    params = init_params(kp, n, depth)
    x = jax.random.uniform(kx, (B, n, n), jnp.float32)

    out = jax.block_until_ready(forward(params, x, n, depth))
    assert out.shape == (B, n, n)

    with jax.default_matmul_precision("highest"):
        ref = jax.block_until_ready(reference(params, x, n, depth))

    # Tolerance includes the ~1e-3-level approx-reciprocal error in the sigmoid.
    err = float(jnp.max(jnp.abs(out - ref)))
    if err > 1e-2:
        raise AssertionError(f"mismatch vs reference: max abs err {err}")
    print("KERNEL_OK")
</pallas_src>

<mosaic_0001>
module attributes {stable_mosaic.version = 11 : i64} {
  func.func @kernel(%arg0: i32, %arg1: memref<1x16x256xf32, #tpu.memory_space<vmem>>, %arg2: memref<1x1xf32, #tpu.memory_space<vmem>>, %arg3: memref<1x1xf32, #tpu.memory_space<vmem>>, %arg4: memref<3x256x256xf32, #tpu.memory_space<vmem>>, %arg5: memref<3x256x256xf32, #tpu.memory_space<vmem>>, %arg6: memref<3x128x128xf32, #tpu.memory_space<vmem>>, %arg7: memref<2x16x256xf32, #tpu.memory_space<vmem>>, %arg8: memref<2x8x128xf32, #tpu.memory_space<vmem>>, %arg9: memref<256x256xf32, #tpu.memory_space<vmem>>, %arg10: memref<128x128xf32, #tpu.memory_space<vmem>>, %arg11: memref<1x256xf32, #tpu.memory_space<vmem>>, %arg12: memref<1x128xf32, #tpu.memory_space<vmem>>, %arg13: memref<256x256xf32, #tpu.memory_space<vmem>>, %arg14: memref<128x128xf32, #tpu.memory_space<vmem>>, %arg15: memref<1x256xf32, #tpu.memory_space<vmem>>, %arg16: memref<1x128xf32, #tpu.memory_space<vmem>>, %arg17: memref<64x64xf32, #tpu.memory_space<vmem>>, %arg18: memref<1x64xf32, #tpu.memory_space<vmem>>, %arg19: memref<8x16xf32, #tpu.memory_space<vmem>>, %arg20: memref<4x8xf32, #tpu.memory_space<vmem>>, %arg21: memref<256x128xf32, #tpu.memory_space<vmem>>, %arg22: memref<128x64xf32, #tpu.memory_space<vmem>>, %arg23: memref<16x8xf32, #tpu.memory_space<vmem>>, %arg24: memref<8x4xf32, #tpu.memory_space<vmem>>, %arg25: memref<128x256xf32, #tpu.memory_space<vmem>>, %arg26: memref<64x128xf32, #tpu.memory_space<vmem>>, %arg27: memref<1x16x256xf32, #tpu.memory_space<vmem>>) attributes {dimension_semantics = [#tpu.dimension_semantics<parallel>], iteration_bounds = array<i64: 2>, scalar_prefetch = 0 : i64, scratch_operands = 0 : i64, tpu.core_type = #tpu.core_type<tc>, window_params = [{transform_indices = @transform_0, window_bounds = array<i64: 1, 16, 256>}, {pipeline_mode = #tpu.pipeline_mode<synchronous>, transform_indices = @transform_1, window_bounds = array<i64: 1, 1>}, {pipeline_mode = #tpu.pipeline_mode<synchronous>, transform_indices = @transform_2, window_bounds = array<i64: 1, 1>}, {pipeline_mode = #tpu.pipeline_mode<synchronous>, transform_indices = @transform_3, window_bounds = array<i64: 3, 256, 256>}, {pipeline_mode = #tpu.pipeline_mode<synchronous>, transform_indices = @transform_4, window_bounds = array<i64: 3, 256, 256>}, {pipeline_mode = #tpu.pipeline_mode<synchronous>, transform_indices = @transform_5, window_bounds = array<i64: 3, 128, 128>}, {pipeline_mode = #tpu.pipeline_mode<synchronous>, transform_indices = @transform_6, window_bounds = array<i64: 2, 16, 256>}, {pipeline_mode = #tpu.pipeline_mode<synchronous>, transform_indices = @transform_7, window_bounds = array<i64: 2, 8, 128>}, {pipeline_mode = #tpu.pipeline_mode<synchronous>, transform_indices = @transform_8, window_bounds = array<i64: 256, 256>}, {pipeline_mode = #tpu.pipeline_mode<synchronous>, transform_indices = @transform_9, window_bounds = array<i64: 128, 128>}, {pipeline_mode = #tpu.pipeline_mode<synchronous>, transform_indices = @transform_10, window_bounds = array<i64: 1, 256>}, {pipeline_mode = #tpu.pipeline_mode<synchronous>, transform_indices = @transform_11, window_bounds = array<i64: 1, 128>}, {pipeline_mode = #tpu.pipeline_mode<synchronous>, transform_indices = @transform_12, window_bounds = array<i64: 256, 256>}, {pipeline_mode = #tpu.pipeline_mode<synchronous>, transform_indices = @transform_13, window_bounds = array<i64: 128, 128>}, {pipeline_mode = #tpu.pipeline_mode<synchronous>, transform_indices = @transform_14, window_bounds = array<i64: 1, 256>}, {pipeline_mode = #tpu.pipeline_mode<synchronous>, transform_indices = @transform_15, window_bounds = array<i64: 1, 128>}, {pipeline_mode = #tpu.pipeline_mode<synchronous>, transform_indices = @transform_16, window_bounds = array<i64: 64, 64>}, {pipeline_mode = #tpu.pipeline_mode<synchronous>, transform_indices = @transform_17, window_bounds = array<i64: 1, 64>}, {pipeline_mode = #tpu.pipeline_mode<synchronous>, transform_indices = @transform_18, window_bounds = array<i64: 8, 16>}, {pipeline_mode = #tpu.pipeline_mode<synchronous>, transform_indices = @transform_19, window_bounds = array<i64: 4, 8>}, {pipeline_mode = #tpu.pipeline_mode<synchronous>, transform_indices = @transform_20, window_bounds = array<i64: 256, 128>}, {pipeline_mode = #tpu.pipeline_mode<synchronous>, transform_indices = @transform_21, window_bounds = array<i64: 128, 64>}, {pipeline_mode = #tpu.pipeline_mode<synchronous>, transform_indices = @transform_22, window_bounds = array<i64: 16, 8>}, {pipeline_mode = #tpu.pipeline_mode<synchronous>, transform_indices = @transform_23, window_bounds = array<i64: 8, 4>}, {pipeline_mode = #tpu.pipeline_mode<synchronous>, transform_indices = @transform_24, window_bounds = array<i64: 128, 256>}, {pipeline_mode = #tpu.pipeline_mode<synchronous>, transform_indices = @transform_25, window_bounds = array<i64: 64, 128>}, {transform_indices = @transform_26, window_bounds = array<i64: 1, 16, 256>}]} {
    %c0 = arith.constant 0 : index
    %c0_0 = arith.constant 0 : index
    %0 = vector.load %arg2[%c0, %c0_0] : memref<1x1xf32, #tpu.memory_space<vmem>>, vector<1x1xf32>
    %c0_1 = arith.constant 0 : index
    %c0_2 = arith.constant 0 : index
    %1 = vector.load %arg3[%c0_1, %c0_2] : memref<1x1xf32, #tpu.memory_space<vmem>>, vector<1x1xf32>
    %c0_3 = arith.constant 0 : index
    %c0_4 = arith.constant 0 : index
    %c0_5 = arith.constant 0 : index
    %2 = vector.load %arg4[%c0_3, %c0_4, %c0_5] : memref<3x256x256xf32, #tpu.memory_space<vmem>>, vector<1x256x256xf32>
    %3 = vector.shape_cast %2 : vector<1x256x256xf32> to vector<256x256xf32>
    %c1 = arith.constant 1 : index
    %c0_6 = arith.constant 0 : index
    %c0_7 = arith.constant 0 : index
    %4 = vector.load %arg4[%c1, %c0_6, %c0_7] : memref<3x256x256xf32, #tpu.memory_space<vmem>>, vector<1x256x256xf32>
    %5 = vector.shape_cast %4 : vector<1x256x256xf32> to vector<256x256xf32>
    %c2 = arith.constant 2 : index
    %c0_8 = arith.constant 0 : index
    %c0_9 = arith.constant 0 : index
    %6 = vector.load %arg4[%c2, %c0_8, %c0_9] : memref<3x256x256xf32, #tpu.memory_space<vmem>>, vector<1x256x256xf32>
    %7 = vector.shape_cast %6 : vector<1x256x256xf32> to vector<256x256xf32>
    %c0_10 = arith.constant 0 : index
    %c0_11 = arith.constant 0 : index
    %c0_12 = arith.constant 0 : index
    %8 = vector.load %arg5[%c0_10, %c0_11, %c0_12] : memref<3x256x256xf32, #tpu.memory_space<vmem>>, vector<1x256x256xf32>
    %9 = vector.shape_cast %8 : vector<1x256x256xf32> to vector<256x256xf32>
    %c1_13 = arith.constant 1 : index
    %c0_14 = arith.constant 0 : index
    %c0_15 = arith.constant 0 : index
    %10 = vector.load %arg5[%c1_13, %c0_14, %c0_15] : memref<3x256x256xf32, #tpu.memory_space<vmem>>, vector<1x256x256xf32>
    %11 = vector.shape_cast %10 : vector<1x256x256xf32> to vector<256x256xf32>
    %c2_16 = arith.constant 2 : index
    %c0_17 = arith.constant 0 : index
    %c0_18 = arith.constant 0 : index
    %12 = vector.load %arg5[%c2_16, %c0_17, %c0_18] : memref<3x256x256xf32, #tpu.memory_space<vmem>>, vector<1x256x256xf32>
    %13 = vector.shape_cast %12 : vector<1x256x256xf32> to vector<256x256xf32>
    %c0_19 = arith.constant 0 : index
    %c0_20 = arith.constant 0 : index
    %c0_21 = arith.constant 0 : index
    %14 = vector.load %arg6[%c0_19, %c0_20, %c0_21] : memref<3x128x128xf32, #tpu.memory_space<vmem>>, vector<1x128x128xf32>
    %15 = vector.shape_cast %14 : vector<1x128x128xf32> to vector<128x128xf32>
    %c1_22 = arith.constant 1 : index
    %c0_23 = arith.constant 0 : index
    %c0_24 = arith.constant 0 : index
    %16 = vector.load %arg6[%c1_22, %c0_23, %c0_24] : memref<3x128x128xf32, #tpu.memory_space<vmem>>, vector<1x128x128xf32>
    %17 = vector.shape_cast %16 : vector<1x128x128xf32> to vector<128x128xf32>
    %c2_25 = arith.constant 2 : index
    %c0_26 = arith.constant 0 : index
    %c0_27 = arith.constant 0 : index
    %18 = vector.load %arg6[%c2_25, %c0_26, %c0_27] : memref<3x128x128xf32, #tpu.memory_space<vmem>>, vector<1x128x128xf32>
    %19 = vector.shape_cast %18 : vector<1x128x128xf32> to vector<128x128xf32>
    %c0_28 = arith.constant 0 : index
    %c0_29 = arith.constant 0 : index
    %c0_30 = arith.constant 0 : index
    %20 = vector.load %arg7[%c0_28, %c0_29, %c0_30] : memref<2x16x256xf32, #tpu.memory_space<vmem>>, vector<1x16x256xf32>
    %21 = vector.shape_cast %20 : vector<1x16x256xf32> to vector<16x256xf32>
    %c1_31 = arith.constant 1 : index
    %c0_32 = arith.constant 0 : index
    %c0_33 = arith.constant 0 : index
    %22 = vector.load %arg7[%c1_31, %c0_32, %c0_33] : memref<2x16x256xf32, #tpu.memory_space<vmem>>, vector<1x16x256xf32>
    %23 = vector.shape_cast %22 : vector<1x16x256xf32> to vector<16x256xf32>
    %c0_34 = arith.constant 0 : index
    %c0_35 = arith.constant 0 : index
    %c0_36 = arith.constant 0 : index
    %24 = vector.load %arg8[%c0_34, %c0_35, %c0_36] : memref<2x8x128xf32, #tpu.memory_space<vmem>>, vector<1x8x128xf32>
    %25 = vector.shape_cast %24 : vector<1x8x128xf32> to vector<8x128xf32>
    %c1_37 = arith.constant 1 : index
    %c0_38 = arith.constant 0 : index
    %c0_39 = arith.constant 0 : index
    %26 = vector.load %arg8[%c1_37, %c0_38, %c0_39] : memref<2x8x128xf32, #tpu.memory_space<vmem>>, vector<1x8x128xf32>
    %27 = vector.shape_cast %26 : vector<1x8x128xf32> to vector<8x128xf32>
    %c0_40 = arith.constant 0 : index
    %c0_41 = arith.constant 0 : index
    %c0_42 = arith.constant 0 : index
    %28 = vector.load %arg1[%c0_40, %c0_41, %c0_42] : memref<1x16x256xf32, #tpu.memory_space<vmem>>, vector<1x16x256xf32>
    %29 = vector.shape_cast %28 : vector<1x16x256xf32> to vector<16x256xf32>
    %cst = arith.constant dense<0.000000e+00> : vector<16x256xf32>
    %30 = tpu.matmul %29, %3, %cst {dimension_numbers = #tpu.dot_dimension_numbers<[1], [0], [0], [1], [0, 0, 1, 1], [], []>} : vector<16x256xf32>, vector<256x256xf32>, vector<16x256xf32> -> vector<16x256xf32>
    %cst_43 = arith.constant dense<0.000000e+00> : vector<16x256xf32>
    %31 = tpu.matmul %29, %5, %cst_43 {dimension_numbers = #tpu.dot_dimension_numbers<[1], [0], [0], [1], [0, 0, 1, 1], [], []>} : vector<16x256xf32>, vector<256x256xf32>, vector<16x256xf32> -> vector<16x256xf32>
    %cst_44 = arith.constant dense<0.000000e+00> : vector<16x256xf32>
    %32 = tpu.matmul %29, %7, %cst_44 {dimension_numbers = #tpu.dot_dimension_numbers<[1], [0], [0], [1], [0, 0, 1, 1], [], []>} : vector<16x256xf32>, vector<256x256xf32>, vector<16x256xf32> -> vector<16x256xf32>
    %c1_i32 = arith.constant 1 : i32
    %33 = tpu.dynamic_rotate %30 by %c1_i32 dim 0 : vector<16x256xf32>, i32 -> vector<16x256xf32>
    %34 = arith.mulf %21, %33 : vector<16x256xf32>
    %35 = arith.addf %31, %34 : vector<16x256xf32>
    %c15_i32 = arith.constant 15 : i32
    %36 = tpu.dynamic_rotate %32 by %c15_i32 dim 0 : vector<16x256xf32>, i32 -> vector<16x256xf32>
    %37 = arith.mulf %23, %36 : vector<16x256xf32>
    %38 = arith.addf %35, %37 : vector<16x256xf32>
    %39 = vector.broadcast %0 : vector<1x1xf32> to vector<16x256xf32>
    %40 = arith.addf %38, %39 : vector<16x256xf32>
    %cst_45 = arith.constant 0.000000e+00 : f32
    %41 = vector.broadcast %cst_45 : f32 to vector<16x256xf32>
    %42 = arith.maximumf %40, %41 : vector<16x256xf32>
    %c0_46 = arith.constant 0 : index
    %c0_47 = arith.constant 0 : index
    %43 = vector.load %arg9[%c0_46, %c0_47] : memref<256x256xf32, #tpu.memory_space<vmem>>, vector<256x256xf32>
    %cst_48 = arith.constant dense<0.000000e+00> : vector<16x256xf32>
    %44 = tpu.matmul %42, %43, %cst_48 {dimension_numbers = #tpu.dot_dimension_numbers<[1], [0], [0], [1], [0, 0, 1, 1], [], []>} : vector<16x256xf32>, vector<256x256xf32>, vector<16x256xf32> -> vector<16x256xf32>
    %c0_49 = arith.constant 0 : index
    %c0_50 = arith.constant 0 : index
    %45 = vector.load %arg11[%c0_49, %c0_50] : memref<1x256xf32, #tpu.memory_space<vmem>>, vector<1x256xf32>
    %46 = vector.broadcast %45 : vector<1x256xf32> to vector<16x256xf32>
    %47 = arith.addf %44, %46 : vector<16x256xf32>
    %cst_51 = arith.constant dense<0.000000e+00> : vector<16x256xf32>
    %48 = tpu.matmul %47, %9, %cst_51 {dimension_numbers = #tpu.dot_dimension_numbers<[1], [0], [0], [1], [0, 0, 1, 1], [], []>} : vector<16x256xf32>, vector<256x256xf32>, vector<16x256xf32> -> vector<16x256xf32>
    %cst_52 = arith.constant dense<0.000000e+00> : vector<16x256xf32>
    %49 = tpu.matmul %47, %11, %cst_52 {dimension_numbers = #tpu.dot_dimension_numbers<[1], [0], [0], [1], [0, 0, 1, 1], [], []>} : vector<16x256xf32>, vector<256x256xf32>, vector<16x256xf32> -> vector<16x256xf32>
    %cst_53 = arith.constant dense<0.000000e+00> : vector<16x256xf32>
    %50 = tpu.matmul %47, %13, %cst_53 {dimension_numbers = #tpu.dot_dimension_numbers<[1], [0], [0], [1], [0, 0, 1, 1], [], []>} : vector<16x256xf32>, vector<256x256xf32>, vector<16x256xf32> -> vector<16x256xf32>
    %c1_i32_54 = arith.constant 1 : i32
    %51 = tpu.dynamic_rotate %48 by %c1_i32_54 dim 0 : vector<16x256xf32>, i32 -> vector<16x256xf32>
    %52 = arith.mulf %21, %51 : vector<16x256xf32>
    %53 = arith.addf %49, %52 : vector<16x256xf32>
    %c15_i32_55 = arith.constant 15 : i32
    %54 = tpu.dynamic_rotate %50 by %c15_i32_55 dim 0 : vector<16x256xf32>, i32 -> vector<16x256xf32>
    %55 = arith.mulf %23, %54 : vector<16x256xf32>
    %56 = arith.addf %53, %55 : vector<16x256xf32>
    %57 = vector.broadcast %1 : vector<1x1xf32> to vector<16x256xf32>
    %58 = arith.addf %56, %57 : vector<16x256xf32>
    %c0_56 = arith.constant 0 : index
    %c0_57 = arith.constant 0 : index
    %59 = vector.load %arg19[%c0_56, %c0_57] : memref<8x16xf32, #tpu.memory_space<vmem>>, vector<8x16xf32>
    %c0_58 = arith.constant 0 : index
    %c0_59 = arith.constant 0 : index
    %60 = vector.load %arg21[%c0_58, %c0_59] : memref<256x128xf32, #tpu.memory_space<vmem>>, vector<256x128xf32>
    %cst_60 = arith.constant dense<0.000000e+00> : vector<16x128xf32>
    %61 = tpu.matmul %58, %60, %cst_60 {dimension_numbers = #tpu.dot_dimension_numbers<[1], [0], [0], [1], [0, 0, 1, 1], [], []>} : vector<16x256xf32>, vector<256x128xf32>, vector<16x128xf32> -> vector<16x128xf32>
    %cst_61 = arith.constant dense<0.000000e+00> : vector<8x128xf32>
    %62 = tpu.matmul %59, %61, %cst_61 {dimension_numbers = #tpu.dot_dimension_numbers<[1], [0], [0], [1], [0, 0, 1, 1], [], []>} : vector<8x16xf32>, vector<16x128xf32>, vector<8x128xf32> -> vector<8x128xf32>
    %cst_62 = arith.constant 0.000000e+00 : f32
    %63 = vector.broadcast %cst_62 : f32 to vector<8x128xf32>
    %64 = arith.maximumf %62, %63 : vector<8x128xf32>
    %c0_63 = arith.constant 0 : index
    %c0_64 = arith.constant 0 : index
    %65 = vector.load %arg10[%c0_63, %c0_64] : memref<128x128xf32, #tpu.memory_space<vmem>>, vector<128x128xf32>
    %cst_65 = arith.constant dense<0.000000e+00> : vector<8x128xf32>
    %66 = tpu.matmul %64, %65, %cst_65 {dimension_numbers = #tpu.dot_dimension_numbers<[1], [0], [0], [1], [0, 0, 1, 1], [], []>} : vector<8x128xf32>, vector<128x128xf32>, vector<8x128xf32> -> vector<8x128xf32>
    %c0_66 = arith.constant 0 : index
    %c0_67 = arith.constant 0 : index
    %67 = vector.load %arg12[%c0_66, %c0_67] : memref<1x128xf32, #tpu.memory_space<vmem>>, vector<1x128xf32>
    %68 = vector.broadcast %67 : vector<1x128xf32> to vector<8x128xf32>
    %69 = arith.addf %66, %68 : vector<8x128xf32>
    %cst_68 = arith.constant dense<0.000000e+00> : vector<8x128xf32>
    %70 = tpu.matmul %69, %15, %cst_68 {dimension_numbers = #tpu.dot_dimension_numbers<[1], [0], [0], [1], [0, 0, 1, 1], [], []>} : vector<8x128xf32>, vector<128x128xf32>, vector<8x128xf32> -> vector<8x128xf32>
    %cst_69 = arith.constant dense<0.000000e+00> : vector<8x128xf32>
    %71 = tpu.matmul %69, %17, %cst_69 {dimension_numbers = #tpu.dot_dimension_numbers<[1], [0], [0], [1], [0, 0, 1, 1], [], []>} : vector<8x128xf32>, vector<128x128xf32>, vector<8x128xf32> -> vector<8x128xf32>
    %cst_70 = arith.constant dense<0.000000e+00> : vector<8x128xf32>
    %72 = tpu.matmul %69, %19, %cst_70 {dimension_numbers = #tpu.dot_dimension_numbers<[1], [0], [0], [1], [0, 0, 1, 1], [], []>} : vector<8x128xf32>, vector<128x128xf32>, vector<8x128xf32> -> vector<8x128xf32>
    %c1_i32_71 = arith.constant 1 : i32
    %73 = tpu.dynamic_rotate %70 by %c1_i32_71 dim 0 : vector<8x128xf32>, i32 -> vector<8x128xf32>
    %74 = arith.mulf %25, %73 : vector<8x128xf32>
    %75 = arith.addf %71, %74 : vector<8x128xf32>
    %c7_i32 = arith.constant 7 : i32
    %76 = tpu.dynamic_rotate %72 by %c7_i32 dim 0 : vector<8x128xf32>, i32 -> vector<8x128xf32>
    %77 = arith.mulf %27, %76 : vector<8x128xf32>
    %78 = arith.addf %75, %77 : vector<8x128xf32>
    %79 = vector.broadcast %1 : vector<1x1xf32> to vector<8x128xf32>
    %80 = arith.addf %78, %79 : vector<8x128xf32>
    %c0_72 = arith.constant 0 : index
    %c0_73 = arith.constant 0 : index
    %81 = vector.load %arg20[%c0_72, %c0_73] : memref<4x8xf32, #tpu.memory_space<vmem>>, vector<4x8xf32>
    %c0_74 = arith.constant 0 : index
    %c0_75 = arith.constant 0 : index
    %82 = vector.load %arg22[%c0_74, %c0_75] : memref<128x64xf32, #tpu.memory_space<vmem>>, vector<128x64xf32>
    %cst_76 = arith.constant dense<0.000000e+00> : vector<8x64xf32>
    %83 = tpu.matmul %80, %82, %cst_76 {dimension_numbers = #tpu.dot_dimension_numbers<[1], [0], [0], [1], [0, 0, 1, 1], [], []>} : vector<8x128xf32>, vector<128x64xf32>, vector<8x64xf32> -> vector<8x64xf32>
    %cst_77 = arith.constant dense<0.000000e+00> : vector<4x64xf32>
    %84 = tpu.matmul %81, %83, %cst_77 {dimension_numbers = #tpu.dot_dimension_numbers<[1], [0], [0], [1], [0, 0, 1, 1], [], []>} : vector<4x8xf32>, vector<8x64xf32>, vector<4x64xf32> -> vector<4x64xf32>
    %cst_78 = arith.constant 0.000000e+00 : f32
    %85 = vector.broadcast %cst_78 : f32 to vector<4x64xf32>
    %86 = arith.maximumf %84, %85 : vector<4x64xf32>
    %c0_79 = arith.constant 0 : index
    %c0_80 = arith.constant 0 : index
    %87 = vector.load %arg17[%c0_79, %c0_80] : memref<64x64xf32, #tpu.memory_space<vmem>>, vector<64x64xf32>
    %cst_81 = arith.constant dense<0.000000e+00> : vector<4x64xf32>
    %88 = tpu.matmul %86, %87, %cst_81 {dimension_numbers = #tpu.dot_dimension_numbers<[1], [0], [0], [1], [0, 0, 1, 1], [], []>} : vector<4x64xf32>, vector<64x64xf32>, vector<4x64xf32> -> vector<4x64xf32>
    %c0_82 = arith.constant 0 : index
    %c0_83 = arith.constant 0 : index
    %89 = vector.load %arg18[%c0_82, %c0_83] : memref<1x64xf32, #tpu.memory_space<vmem>>, vector<1x64xf32>
    %90 = vector.broadcast %89 : vector<1x64xf32> to vector<4x64xf32>
    %91 = arith.addf %88, %90 : vector<4x64xf32>
    %cst_84 = arith.constant 0.000000e+00 : f32
    %92 = vector.broadcast %cst_84 : f32 to vector<4x64xf32>
    %93 = arith.maximumf %91, %92 : vector<4x64xf32>
    %c0_85 = arith.constant 0 : index
    %c0_86 = arith.constant 0 : index
    %94 = vector.load %arg24[%c0_85, %c0_86] : memref<8x4xf32, #tpu.memory_space<vmem>>, vector<8x4xf32>
    %c0_87 = arith.constant 0 : index
    %c0_88 = arith.constant 0 : index
    %95 = vector.load %arg26[%c0_87, %c0_88] : memref<64x128xf32, #tpu.memory_space<vmem>>, vector<64x128xf32>
    %cst_89 = arith.constant dense<0.000000e+00> : vector<4x128xf32>
    %96 = tpu.matmul %93, %95, %cst_89 {dimension_numbers = #tpu.dot_dimension_numbers<[1], [0], [0], [1], [0, 0, 1, 1], [], []>} : vector<4x64xf32>, vector<64x128xf32>, vector<4x128xf32> -> vector<4x128xf32>
    %cst_90 = arith.constant dense<0.000000e+00> : vector<8x128xf32>
    %97 = tpu.matmul %94, %96, %cst_90 {dimension_numbers = #tpu.dot_dimension_numbers<[1], [0], [0], [1], [0, 0, 1, 1], [], []>} : vector<8x4xf32>, vector<4x128xf32>, vector<8x128xf32> -> vector<8x128xf32>
    %cst_91 = arith.constant dense<0.000000e+00> : vector<8x128xf32>
    %98 = tpu.matmul %97, %15, %cst_91 {dimension_numbers = #tpu.dot_dimension_numbers<[1], [0], [0], [1], [0, 0, 1, 1], [], []>} : vector<8x128xf32>, vector<128x128xf32>, vector<8x128xf32> -> vector<8x128xf32>
    %cst_92 = arith.constant dense<0.000000e+00> : vector<8x128xf32>
    %99 = tpu.matmul %97, %17, %cst_92 {dimension_numbers = #tpu.dot_dimension_numbers<[1], [0], [0], [1], [0, 0, 1, 1], [], []>} : vector<8x128xf32>, vector<128x128xf32>, vector<8x128xf32> -> vector<8x128xf32>
    %cst_93 = arith.constant dense<0.000000e+00> : vector<8x128xf32>
    %100 = tpu.matmul %97, %19, %cst_93 {dimension_numbers = #tpu.dot_dimension_numbers<[1], [0], [0], [1], [0, 0, 1, 1], [], []>} : vector<8x128xf32>, vector<128x128xf32>, vector<8x128xf32> -> vector<8x128xf32>
    %c1_i32_94 = arith.constant 1 : i32
    %101 = tpu.dynamic_rotate %98 by %c1_i32_94 dim 0 : vector<8x128xf32>, i32 -> vector<8x128xf32>
    %102 = arith.mulf %25, %101 : vector<8x128xf32>
    %103 = arith.addf %99, %102 : vector<8x128xf32>
    %c7_i32_95 = arith.constant 7 : i32
    %104 = tpu.dynamic_rotate %100 by %c7_i32_95 dim 0 : vector<8x128xf32>, i32 -> vector<8x128xf32>
    %105 = arith.mulf %27, %104 : vector<8x128xf32>
    %106 = arith.addf %103, %105 : vector<8x128xf32>
    %107 = vector.broadcast %1 : vector<1x1xf32> to vector<8x128xf32>
    %108 = arith.addf %106, %107 : vector<8x128xf32>
    %c0_96 = arith.constant 0 : index
    %c0_97 = arith.constant 0 : index
    %109 = vector.load %arg14[%c0_96, %c0_97] : memref<128x128xf32, #tpu.memory_space<vmem>>, vector<128x128xf32>
    %cst_98 = arith.constant dense<0.000000e+00> : vector<8x128xf32>
    %110 = tpu.matmul %108, %109, %cst_98 {dimension_numbers = #tpu.dot_dimension_numbers<[1], [0], [0], [1], [0, 0, 1, 1], [], []>} : vector<8x128xf32>, vector<128x128xf32>, vector<8x128xf32> -> vector<8x128xf32>
    %c0_99 = arith.constant 0 : index
    %c0_100 = arith.constant 0 : index
    %111 = vector.load %arg16[%c0_99, %c0_100] : memref<1x128xf32, #tpu.memory_space<vmem>>, vector<1x128xf32>
    %112 = vector.broadcast %111 : vector<1x128xf32> to vector<8x128xf32>
    %113 = arith.addf %110, %112 : vector<8x128xf32>
    %114 = arith.addf %113, %80 : vector<8x128xf32>
    %cst_101 = arith.constant 0.000000e+00 : f32
    %115 = vector.broadcast %cst_101 : f32 to vector<8x128xf32>
    %116 = arith.maximumf %114, %115 : vector<8x128xf32>
    %c0_102 = arith.constant 0 : index
    %c0_103 = arith.constant 0 : index
    %117 = vector.load %arg23[%c0_102, %c0_103] : memref<16x8xf32, #tpu.memory_space<vmem>>, vector<16x8xf32>
    %c0_104 = arith.constant 0 : index
    %c0_105 = arith.constant 0 : index
    %118 = vector.load %arg25[%c0_104, %c0_105] : memref<128x256xf32, #tpu.memory_space<vmem>>, vector<128x256xf32>
    %cst_106 = arith.constant dense<0.000000e+00> : vector<8x256xf32>
    %119 = tpu.matmul %116, %118, %cst_106 {dimension_numbers = #tpu.dot_dimension_numbers<[1], [0], [0], [1], [0, 0, 1, 1], [], []>} : vector<8x128xf32>, vector<128x256xf32>, vector<8x256xf32> -> vector<8x256xf32>
    %cst_107 = arith.constant dense<0.000000e+00> : vector<16x256xf32>
    %120 = tpu.matmul %117, %119, %cst_107 {dimension_numbers = #tpu.dot_dimension_numbers<[1], [0], [0], [1], [0, 0, 1, 1], [], []>} : vector<16x8xf32>, vector<8x256xf32>, vector<16x256xf32> -> vector<16x256xf32>
    %cst_108 = arith.constant dense<0.000000e+00> : vector<16x256xf32>
    %121 = tpu.matmul %120, %9, %cst_108 {dimension_numbers = #tpu.dot_dimension_numbers<[1], [0], [0], [1], [0, 0, 1, 1], [], []>} : vector<16x256xf32>, vector<256x256xf32>, vector<16x256xf32> -> vector<16x256xf32>
    %cst_109 = arith.constant dense<0.000000e+00> : vector<16x256xf32>
    %122 = tpu.matmul %120, %11, %cst_109 {dimension_numbers = #tpu.dot_dimension_numbers<[1], [0], [0], [1], [0, 0, 1, 1], [], []>} : vector<16x256xf32>, vector<256x256xf32>, vector<16x256xf32> -> vector<16x256xf32>
    %cst_110 = arith.constant dense<0.000000e+00> : vector<16x256xf32>
    %123 = tpu.matmul %120, %13, %cst_110 {dimension_numbers = #tpu.dot_dimension_numbers<[1], [0], [0], [1], [0, 0, 1, 1], [], []>} : vector<16x256xf32>, vector<256x256xf32>, vector<16x256xf32> -> vector<16x256xf32>
    %c1_i32_111 = arith.constant 1 : i32
    %124 = tpu.dynamic_rotate %121 by %c1_i32_111 dim 0 : vector<16x256xf32>, i32 -> vector<16x256xf32>
    %125 = arith.mulf %21, %124 : vector<16x256xf32>
    %126 = arith.addf %122, %125 : vector<16x256xf32>
    %c15_i32_112 = arith.constant 15 : i32
    %127 = tpu.dynamic_rotate %123 by %c15_i32_112 dim 0 : vector<16x256xf32>, i32 -> vector<16x256xf32>
    %128 = arith.mulf %23, %127 : vector<16x256xf32>
    %129 = arith.addf %126, %128 : vector<16x256xf32>
    %130 = vector.broadcast %1 : vector<1x1xf32> to vector<16x256xf32>
    %131 = arith.addf %129, %130 : vector<16x256xf32>
    %c0_113 = arith.constant 0 : index
    %c0_114 = arith.constant 0 : index
    %132 = vector.load %arg13[%c0_113, %c0_114] : memref<256x256xf32, #tpu.memory_space<vmem>>, vector<256x256xf32>
    %cst_115 = arith.constant dense<0.000000e+00> : vector<16x256xf32>
    %133 = tpu.matmul %131, %132, %cst_115 {dimension_numbers = #tpu.dot_dimension_numbers<[1], [0], [0], [1], [0, 0, 1, 1], [], []>} : vector<16x256xf32>, vector<256x256xf32>, vector<16x256xf32> -> vector<16x256xf32>
    %c0_116 = arith.constant 0 : index
    %c0_117 = arith.constant 0 : index
    %134 = vector.load %arg15[%c0_116, %c0_117] : memref<1x256xf32, #tpu.memory_space<vmem>>, vector<1x256xf32>
    %135 = vector.broadcast %134 : vector<1x256xf32> to vector<16x256xf32>
    %136 = arith.addf %133, %135 : vector<16x256xf32>
    %137 = arith.addf %136, %58 : vector<16x256xf32>
    %cst_118 = arith.constant 0.000000e+00 : f32
    %138 = vector.broadcast %cst_118 : f32 to vector<16x256xf32>
    %139 = arith.maximumf %137, %138 : vector<16x256xf32>
    %cst_119 = arith.constant 0.000000e+00 : f32
    %140 = vector.broadcast %cst_119 : f32 to vector<16x256xf32>
    %141 = arith.subf %140, %139 : vector<16x256xf32>
    %142 = math.exp %141 : vector<16x256xf32>
    %cst_120 = arith.constant 1.000000e+00 : f32
    %143 = vector.broadcast %cst_120 : f32 to vector<16x256xf32>
    %144 = arith.addf %143, %142 : vector<16x256xf32>
    %145 = tpu.reciprocal %144 {approx = true} : vector<16x256xf32> -> vector<16x256xf32>
    %c0_121 = arith.constant 0 : index
    %c0_122 = arith.constant 0 : index
    %c0_123 = arith.constant 0 : index
    %146 = vector.load %arg27[%c0_121, %c0_122, %c0_123] : memref<1x16x256xf32, #tpu.memory_space<vmem>>, vector<1x16x256xf32>
    %147 = vector.shape_cast %146 : vector<1x16x256xf32> to vector<16x256xf32>
    %148 = vector.shape_cast %145 : vector<16x256xf32> to vector<1x16x256xf32>
    tpu.vector_store %arg27[%c0_121, %c0_122, %c0_123], %148 {strides = array<i32>} : memref<1x16x256xf32, #tpu.memory_space<vmem>>, vector<1x16x256xf32>,
    return
  }
  func.func @transform_0(%arg0: i32) -> (i32, i32, i32) {
    %c0_i32 = arith.constant 0 : i32
    %c0_i32_0 = arith.constant 0 : i32
    %c0_i32_1 = arith.constant 0 : i32
    return %arg0, %c0_i32, %c0_i32_0 : i32, i32, i32
  }
  func.func @transform_1(%arg0: i32) -> (i32, i32) {
    %c0_i32 = arith.constant 0 : i32
    %c0_i32_0 = arith.constant 0 : i32
    %c0_i32_1 = arith.constant 0 : i32
    return %c0_i32, %c0_i32_0 : i32, i32
  }
  func.func @transform_2(%arg0: i32) -> (i32, i32) {
    %c0_i32 = arith.constant 0 : i32
    %c0_i32_0 = arith.constant 0 : i32
    %c0_i32_1 = arith.constant 0 : i32
    return %c0_i32, %c0_i32_0 : i32, i32
  }
  func.func @transform_3(%arg0: i32) -> (i32, i32, i32) {
    %c0_i32 = arith.constant 0 : i32
    %c0_i32_0 = arith.constant 0 : i32
    %c0_i32_1 = arith.constant 0 : i32
    %c0_i32_2 = arith.constant 0 : i32
    return %c0_i32, %c0_i32_0, %c0_i32_1 : i32, i32, i32
  }
  func.func @transform_4(%arg0: i32) -> (i32, i32, i32) {
    %c0_i32 = arith.constant 0 : i32
    %c0_i32_0 = arith.constant 0 : i32
    %c0_i32_1 = arith.constant 0 : i32
    %c0_i32_2 = arith.constant 0 : i32
    return %c0_i32, %c0_i32_0, %c0_i32_1 : i32, i32, i32
  }
  func.func @transform_5(%arg0: i32) -> (i32, i32, i32) {
    %c0_i32 = arith.constant 0 : i32
    %c0_i32_0 = arith.constant 0 : i32
    %c0_i32_1 = arith.constant 0 : i32
    %c0_i32_2 = arith.constant 0 : i32
    return %c0_i32, %c0_i32_0, %c0_i32_1 : i32, i32, i32
  }
  func.func @transform_6(%arg0: i32) -> (i32, i32, i32) {
    %c0_i32 = arith.constant 0 : i32
    %c0_i32_0 = arith.constant 0 : i32
    %c0_i32_1 = arith.constant 0 : i32
    %c0_i32_2 = arith.constant 0 : i32
    return %c0_i32, %c0_i32_0, %c0_i32_1 : i32, i32, i32
  }
  func.func @transform_7(%arg0: i32) -> (i32, i32, i32) {
    %c0_i32 = arith.constant 0 : i32
    %c0_i32_0 = arith.constant 0 : i32
    %c0_i32_1 = arith.constant 0 : i32
    %c0_i32_2 = arith.constant 0 : i32
    return %c0_i32, %c0_i32_0, %c0_i32_1 : i32, i32, i32
  }
  func.func @transform_8(%arg0: i32) -> (i32, i32) {
    %c0_i32 = arith.constant 0 : i32
    %c0_i32_0 = arith.constant 0 : i32
    %c0_i32_1 = arith.constant 0 : i32
    return %c0_i32, %c0_i32_0 : i32, i32
  }
  func.func @transform_9(%arg0: i32) -> (i32, i32) {
    %c0_i32 = arith.constant 0 : i32
    %c0_i32_0 = arith.constant 0 : i32
    %c0_i32_1 = arith.constant 0 : i32
    return %c0_i32, %c0_i32_0 : i32, i32
  }
  func.func @transform_10(%arg0: i32) -> (i32, i32) {
    %c0_i32 = arith.constant 0 : i32
    %c0_i32_0 = arith.constant 0 : i32
    %c0_i32_1 = arith.constant 0 : i32
    return %c0_i32, %c0_i32_0 : i32, i32
  }
  func.func @transform_11(%arg0: i32) -> (i32, i32) {
    %c0_i32 = arith.constant 0 : i32
    %c0_i32_0 = arith.constant 0 : i32
    %c0_i32_1 = arith.constant 0 : i32
    return %c0_i32, %c0_i32_0 : i32, i32
  }
  func.func @transform_12(%arg0: i32) -> (i32, i32) {
    %c0_i32 = arith.constant 0 : i32
    %c0_i32_0 = arith.constant 0 : i32
    %c0_i32_1 = arith.constant 0 : i32
    return %c0_i32, %c0_i32_0 : i32, i32
  }
  func.func @transform_13(%arg0: i32) -> (i32, i32) {
    %c0_i32 = arith.constant 0 : i32
    %c0_i32_0 = arith.constant 0 : i32
    %c0_i32_1 = arith.constant 0 : i32
    return %c0_i32, %c0_i32_0 : i32, i32
  }
  func.func @transform_14(%arg0: i32) -> (i32, i32) {
    %c0_i32 = arith.constant 0 : i32
    %c0_i32_0 = arith.constant 0 : i32
    %c0_i32_1 = arith.constant 0 : i32
    return %c0_i32, %c0_i32_0 : i32, i32
  }
  func.func @transform_15(%arg0: i32) -> (i32, i32) {
    %c0_i32 = arith.constant 0 : i32
    %c0_i32_0 = arith.constant 0 : i32
    %c0_i32_1 = arith.constant 0 : i32
    return %c0_i32, %c0_i32_0 : i32, i32
  }
  func.func @transform_16(%arg0: i32) -> (i32, i32) {
    %c0_i32 = arith.constant 0 : i32
    %c0_i32_0 = arith.constant 0 : i32
    %c0_i32_1 = arith.constant 0 : i32
    return %c0_i32, %c0_i32_0 : i32, i32
  }
  func.func @transform_17(%arg0: i32) -> (i32, i32) {
    %c0_i32 = arith.constant 0 : i32
    %c0_i32_0 = arith.constant 0 : i32
    %c0_i32_1 = arith.constant 0 : i32
    return %c0_i32, %c0_i32_0 : i32, i32
  }
  func.func @transform_18(%arg0: i32) -> (i32, i32) {
    %c0_i32 = arith.constant 0 : i32
    %c0_i32_0 = arith.constant 0 : i32
    %c0_i32_1 = arith.constant 0 : i32
    return %c0_i32, %c0_i32_0 : i32, i32
  }
  func.func @transform_19(%arg0: i32) -> (i32, i32) {
    %c0_i32 = arith.constant 0 : i32
    %c0_i32_0 = arith.constant 0 : i32
    %c0_i32_1 = arith.constant 0 : i32
    return %c0_i32, %c0_i32_0 : i32, i32
  }
  func.func @transform_20(%arg0: i32) -> (i32, i32) {
    %c0_i32 = arith.constant 0 : i32
    %c0_i32_0 = arith.constant 0 : i32
    %c0_i32_1 = arith.constant 0 : i32
    return %c0_i32, %c0_i32_0 : i32, i32
  }
  func.func @transform_21(%arg0: i32) -> (i32, i32) {
    %c0_i32 = arith.constant 0 : i32
    %c0_i32_0 = arith.constant 0 : i32
    %c0_i32_1 = arith.constant 0 : i32
    return %c0_i32, %c0_i32_0 : i32, i32
  }
  func.func @transform_22(%arg0: i32) -> (i32, i32) {
    %c0_i32 = arith.constant 0 : i32
    %c0_i32_0 = arith.constant 0 : i32
    %c0_i32_1 = arith.constant 0 : i32
    return %c0_i32, %c0_i32_0 : i32, i32
  }
  func.func @transform_23(%arg0: i32) -> (i32, i32) {
    %c0_i32 = arith.constant 0 : i32
    %c0_i32_0 = arith.constant 0 : i32
    %c0_i32_1 = arith.constant 0 : i32
    return %c0_i32, %c0_i32_0 : i32, i32
  }
  func.func @transform_24(%arg0: i32) -> (i32, i32) {
    %c0_i32 = arith.constant 0 : i32
    %c0_i32_0 = arith.constant 0 : i32
    %c0_i32_1 = arith.constant 0 : i32
    return %c0_i32, %c0_i32_0 : i32, i32
  }
  func.func @transform_25(%arg0: i32) -> (i32, i32) {
    %c0_i32 = arith.constant 0 : i32
    %c0_i32_0 = arith.constant 0 : i32
    %c0_i32_1 = arith.constant 0 : i32
    return %c0_i32, %c0_i32_0 : i32, i32
  }
  func.func @transform_26(%arg0: i32) -> (i32, i32, i32) {
    %c0_i32 = arith.constant 0 : i32
    %c0_i32_0 = arith.constant 0 : i32
    %c0_i32_1 = arith.constant 0 : i32
    return %arg0, %c0_i32, %c0_i32_0 : i32, i32, i32
  }
}

</mosaic_0001>

<llo_original>
// kernel: tpu_custom_call.1
$region0: #{tpu_custom_call.1}
  #allocation0 [shape = 'u32[]', space=smem, size = 0x4, offset = 0x4, fixed_abs, tag = 'smem constant byte address 0x4 - core index']
  #allocation1 [shape = 'u32[72,128]{1,0:T(1,128)}', space=vmem, size = 0x9000, scoped, tag = 'internal scratch']
  #allocation2 [shape = 'f32[1,1]{1,0:T(1,128)S(1)}', space=vmem, size = 0x200, scoped, tag = 'scoped memory for tpu_custom_call.1']
  #allocation3 [shape = 'f32[1,1]{1,0:T(1,128)S(1)}', space=vmem, size = 0x200, scoped, tag = 'scoped memory for tpu_custom_call.1']
  %s0 = inlined_call_operand.vmem [shape: f32[2,16,256], index: 0, kind: input, shape index: {}]
  %s1 = inlined_call_operand.<no memory space> [shape: f32[1,1], index: 1, kind: input, shape index: {}]
  %s2 = inlined_call_operand.<no memory space> [shape: f32[1,1], index: 2, kind: input, shape index: {}]
  %s3 = inlined_call_operand.hbm [shape: f32[3,256,256], index: 3, kind: input, shape index: {}]
  %s4 = inlined_call_operand.hbm [shape: f32[3,256,256], index: 4, kind: input, shape index: {}]
  %s5 = inlined_call_operand.hbm [shape: f32[3,128,128], index: 5, kind: input, shape index: {}]
  %s6 = inlined_call_operand.hbm [shape: f32[2,16,256], index: 6, kind: input, shape index: {}]
  %s7 = inlined_call_operand.vmem [shape: f32[2,8,128], index: 7, kind: input, shape index: {}]
  %s8 = inlined_call_operand.hbm [shape: f32[256,256], index: 8, kind: input, shape index: {}]
  %s9 = inlined_call_operand.vmem [shape: f32[128,128], index: 9, kind: input, shape index: {}]
  %s10 = inlined_call_operand.vmem [shape: f32[1,256], index: 10, kind: input, shape index: {}]
  %s11 = inlined_call_operand.vmem [shape: f32[1,128], index: 11, kind: input, shape index: {}]
  %s12 = inlined_call_operand.hbm [shape: f32[256,256], index: 12, kind: input, shape index: {}]
  %s13 = inlined_call_operand.hbm [shape: f32[128,128], index: 13, kind: input, shape index: {}]
  %s14 = inlined_call_operand.vmem [shape: f32[1,256], index: 14, kind: input, shape index: {}]
  %s15 = inlined_call_operand.vmem [shape: f32[1,128], index: 15, kind: input, shape index: {}]
  %s16 = inlined_call_operand.hbm [shape: f32[64,64], index: 16, kind: input, shape index: {}]
  %s17 = inlined_call_operand.vmem [shape: f32[1,64], index: 17, kind: input, shape index: {}]
  %s18 = inlined_call_operand.vmem [shape: f32[8,16], index: 18, kind: input, shape index: {}]
  %s19 = inlined_call_operand.vmem [shape: f32[4,8], index: 19, kind: input, shape index: {}]
  %s20 = inlined_call_operand.hbm [shape: f32[256,128], index: 20, kind: input, shape index: {}]
  %s21 = inlined_call_operand.vmem [shape: f32[128,64], index: 21, kind: input, shape index: {}]
  %s22 = inlined_call_operand.vmem [shape: f32[16,8], index: 22, kind: input, shape index: {}]
  %s23 = inlined_call_operand.vmem [shape: f32[8,4], index: 23, kind: input, shape index: {}]
  %s24 = inlined_call_operand.hbm [shape: f32[128,256], index: 24, kind: input, shape index: {}]
  %s25 = inlined_call_operand.hbm [shape: f32[64,128], index: 25, kind: input, shape index: {}]
  %s26 = inlined_call_operand.hbm [shape: f32[2,16,256], index: 26, kind: output, shape index: {}]
  %s27 = sld [smem:[#allocation0]]
  $region181: #{tpu_custom_call.1} parent=0
    _
  %s29 = ssub.s32 1, %s27
  %s30 = scalar_select 0, %s29, %s27
  %v31 = vstv %s1
  %32 = vst [vmem:[#allocation2] sm:$0x1] %v31
  %v33 = vstv %s2
  %34 = vst [vmem:[#allocation3] sm:$0x1] %v33
  $region1: #{tpu_custom_call.1} parent=0
    #allocation4 [shape = 'u8[786432]{0}', space=vmem, size = 0xc0000, scoped, tag = 'input window, operand 3, single buffered']
    #allocation5 [shape = 's32[2]{0}', space=sflag, size = 0x8, scoped, tag = 'scoped memory for tpu_custom_call.1']
    #allocation6 [shape = 's32[2]{0}', space=sflag, size = 0x8, scoped, tag = 'scoped memory for tpu_custom_call.1']
    #allocation7 [shape = 'u8[786432]{0}', space=vmem, size = 0xc0000, scoped, tag = 'input window, operand 4, single buffered']
    #allocation8 [shape = 's32[1]{0}', space=sflag, size = 0x4, scoped, tag = 'scoped memory for tpu_custom_call.1']
    #allocation9 [shape = 'u8[196608]{0}', space=vmem, size = 0x30000, scoped, tag = 'input window, operand 5, single buffered']
    #allocation10 [shape = 'u8[32768]{0}', space=vmem, size = 0x8000, scoped, tag = 'input window, operand 6, single buffered']
    #allocation11 [shape = 's32[1]{0}', space=sflag, size = 0x4, scoped, tag = 'scoped memory for tpu_custom_call.1']
    #allocation12 [shape = 'u8[262144]{0}', space=vmem, size = 0x40000, scoped, tag = 'input window, operand 8, single buffered']
    #allocation13 [shape = 'u8[262144]{0}', space=vmem, size = 0x40000, scoped, tag = 'input window, operand 12, single buffered']
    #allocation14 [shape = 's32[1]{0}', space=sflag, size = 0x4, scoped, tag = 'scoped memory for tpu_custom_call.1']
    #allocation15 [shape = 'u8[65536]{0}', space=vmem, size = 0x10000, scoped, tag = 'input window, operand 13, single buffered']
    #allocation16 [shape = 'u8[32768]{0}', space=vmem, size = 0x8000, scoped, tag = 'input window, operand 16, single buffered']
    #allocation17 [shape = 's32[1]{0}', space=sflag, size = 0x4, scoped, tag = 'scoped memory for tpu_custom_call.1']
    #allocation18 [shape = 'u8[131072]{0}', space=vmem, size = 0x20000, scoped, tag = 'input window, operand 20, single buffered']
    #allocation19 [shape = 'u8[131072]{0}', space=vmem, size = 0x20000, scoped, tag = 'input window, operand 24, single buffered']
    #allocation20 [shape = 's32[1]{0}', space=sflag, size = 0x4, scoped, tag = 'scoped memory for tpu_custom_call.1']
    #allocation21 [shape = 'u8[32768]{0}', space=vmem, size = 0x8000, scoped, tag = 'input window, operand 25, single buffered']
    #allocation22 [shape = 'u8[32768]{0}', space=vmem, size = 0x8000, scoped, tag = 'output window, operand 0']
    %35 = vsyncpa [#allocation5], 0
    %36 = vsyncpa [#allocation8], 0
    %37 = vsyncpa [#allocation11], 0
    %38 = vsyncpa [#allocation14], 0
    %39 = vsyncpa [#allocation17], 0
    %40 = vsyncpa [#allocation20], 0
    %41 = vsyncpa [#allocation6], 0
    %s42 = scalar_lea.sflag [#allocation6], 1
    %43 = vsyncpa %s42, 0
    loop: start=0, step=1, limit=4
    $region2: #{tpu_custom_call.1} parent=1 // loop_pre_header
      _
    $region3: #{tpu_custom_call.1} parent=1 // loop_header
      %s45 = sphi 0, %s49
      %p46 = scmp.ge.s32.totalorder %s45, 4
      %s55 = sphi 0, %s57
      %s58 = sphi 0, %s55
      %s59 = sphi 0, %s58
      %s75 = sphi 0, %s59
      %s79 = sphi 0, %s79
      %s81 = sphi 0, %s79
      %s82 = sphi 0, %s81
      %s96 = sphi 0, %s82
      %s100 = sphi 0, %s100
      %s102 = sphi 0, %s100
      %s103 = sphi 0, %s102
      %s117 = sphi 0, %s103
      %s121 = sphi 0, %s121
      %s123 = sphi 0, %s121
      %s124 = sphi 0, %s123
      %s138 = sphi 0, %s124
      %s142 = sphi 0, %s142
      %s144 = sphi 0, %s142
      %s145 = sphi 0, %s144
      %s159 = sphi 0, %s145
      %s163 = sphi 0, %s163
      %s165 = sphi 0, %s163
      %s166 = sphi 0, %s165
      %s180 = sphi 0, %s166
      %s184 = sphi 0, %s184
      %s186 = sphi 0, %s184
      %s187 = sphi 0, %s186
      %s201 = sphi 0, %s187
      %s205 = sphi 0, %s205
      %s207 = sphi 0, %s205
      %s208 = sphi 0, %s207
      %s222 = sphi 0, %s208
      %s226 = sphi 0, %s226
      %s228 = sphi 0, %s226
      %s229 = sphi 0, %s228
      %s243 = sphi 0, %s229
      %s247 = sphi 0, %s247
      %s249 = sphi 0, %s247
      %s250 = sphi 0, %s249
      %s264 = sphi 0, %s250
      %s268 = sphi 0, %s268
      %s270 = sphi 0, %s268
      %s271 = sphi 0, %s270
      %s285 = sphi 0, %s271
      %s289 = sphi 0, %s289
      %s291 = sphi 0, %s289
      %s292 = sphi 0, %s291
      %s306 = sphi 0, %s292
      %s310 = sphi 0, %s310
      %s312 = sphi 0, %s310
      %s313 = sphi 0, %s312
      %s327 = sphi 0, %s313
      %s331 = sphi 0, %s331
      %s333 = sphi 0, %s331
      %s334 = sphi 0, %s333
      %s348 = sphi 0, %s334
      %s352 = sphi 0, %s352
      %s354 = sphi 0, %s352
      %s355 = sphi 0, %s354
      %s369 = sphi 0, %s355
      %s373 = sphi 0, %s373
      %s375 = sphi 0, %s373
      %s376 = sphi 0, %s375
      %s390 = sphi 0, %s376
      %s394 = sphi 0, %s394
      %s396 = sphi 0, %s394
      %s397 = sphi 0, %s396
      %s411 = sphi 0, %s397
      %s415 = sphi 0, %s415
      %s417 = sphi 0, %s415
      %s418 = sphi 0, %s417
      %s432 = sphi 0, %s418
      %s436 = sphi 0, %s436
      %s438 = sphi 0, %s436
      %s439 = sphi 0, %s438
      %s453 = sphi 0, %s439
      %s457 = sphi 0, %s457
      %s459 = sphi 0, %s457
      %s460 = sphi 0, %s459
      %s474 = sphi 0, %s460
      %s478 = sphi 0, %s478
      %s480 = sphi 0, %s478
      %s481 = sphi 0, %s480
      %s495 = sphi 0, %s481
      %s499 = sphi 0, %s499
      %s501 = sphi 0, %s499
      %s502 = sphi 0, %s501
      %s516 = sphi 0, %s502
      %s520 = sphi 0, %s520
      %s522 = sphi 0, %s520
      %s523 = sphi 0, %s522
      %s537 = sphi 0, %s523
      %s541 = sphi 0, %s541
      %s543 = sphi 0, %s541
      %s544 = sphi 0, %s543
      %s558 = sphi 0, %s544
      %s562 = sphi 0, %s562
      %s564 = sphi 0, %s562
      %s565 = sphi 0, %s564
      %s579 = sphi 0, %s565
      %s583 = sphi 0, %s583
      %s585 = sphi 0, %s583
      %s586 = sphi 0, %s585
      %s600 = sphi 0, %s586
      %s606 = sphi 0, %s608
      %s609 = sphi 0, %s606
      %s610 = sphi 0, %s609
      %s626 = sphi 0, %s610
    $region4: #{tpu_custom_call.1} parent=1 // loop_header_branch
      %48 = sbr.rel (%p46) target = $region8
    $region5: #{tpu_custom_call.1} parent=1 // loop_body
      %s50 = ssub.s32 %s45, 1
      %s51 = ssub.s32 %s45, 2
      %s52 = sadd.s32 %s45, 1
      %s53 = ssub.s32 %s45, %s52
      %p54 = scmp.eq.s32.totalorder %s53, 0
      %s56 = sadd.s32 %s55, 1
      %s57 = scalar_select %p54, %s55, %s56
      %p60 = pneg %p54
      %p61 = scmp.eq.s32.totalorder %s45, 1
      %p62 = por %p60, %p61
      %p63 = scmp.ne.s32.totalorder %s55, %s58
      %p64 = scmp.eq.s32.totalorder %s45, 0
      %p65 = por %p63, %p64
      %p66 = scmp.ne.s32.totalorder %s55, %s58
      %p67 = scmp.eq.s32.totalorder %s50, 1
      %p68 = por %p66, %p67
      %p69 = scmp.ne.s32.totalorder %s58, %s59
      %p70 = scmp.eq.s32.totalorder %s50, 0
      %p71 = por %p69, %p70
      %p72 = scmp.ne.s32.totalorder %s58, %s59
      %p73 = scmp.eq.s32.totalorder %s51, 1
      %p74 = por %p72, %p73
      %p76 = scmp.ne.s32.totalorder %s59, %s75
      %p77 = scmp.eq.s32.totalorder %s51, 0
      %p78 = por %p76, %p77
      %s80 = sadd.s32 %s79, 1
      %p83 = scmp.eq.s32.totalorder %s45, 1
      %p84 = scmp.ne.s32.totalorder %s79, %s81
      %p85 = scmp.eq.s32.totalorder %s45, 0
      %p86 = por %p84, %p85
      %p87 = scmp.ne.s32.totalorder %s79, %s81
      %p88 = scmp.eq.s32.totalorder %s50, 1
      %p89 = por %p87, %p88
      %p90 = scmp.ne.s32.totalorder %s81, %s82
      %p91 = scmp.eq.s32.totalorder %s50, 0
      %p92 = por %p90, %p91
      %p93 = scmp.ne.s32.totalorder %s81, %s82
      %p94 = scmp.eq.s32.totalorder %s51, 1
      %p95 = por %p93, %p94
      %p97 = scmp.ne.s32.totalorder %s82, %s96
      %p98 = scmp.eq.s32.totalorder %s51, 0
      %p99 = por %p97, %p98
      %s101 = sadd.s32 %s100, 1
      %p104 = scmp.eq.s32.totalorder %s45, 1
      %p105 = scmp.ne.s32.totalorder %s100, %s102
      %p106 = scmp.eq.s32.totalorder %s45, 0
      %p107 = por %p105, %p106
      %p108 = scmp.ne.s32.totalorder %s100, %s102
      %p109 = scmp.eq.s32.totalorder %s50, 1
      %p110 = por %p108, %p109
      %p111 = scmp.ne.s32.totalorder %s102, %s103
      %p112 = scmp.eq.s32.totalorder %s50, 0
      %p113 = por %p111, %p112
      %p114 = scmp.ne.s32.totalorder %s102, %s103
      %p115 = scmp.eq.s32.totalorder %s51, 1
      %p116 = por %p114, %p115
      %p118 = scmp.ne.s32.totalorder %s103, %s117
      %p119 = scmp.eq.s32.totalorder %s51, 0
      %p120 = por %p118, %p119
      %s122 = sadd.s32 %s121, 1
      %p125 = scmp.eq.s32.totalorder %s45, 1
      %p126 = scmp.ne.s32.totalorder %s121, %s123
      %p127 = scmp.eq.s32.totalorder %s45, 0
      %p128 = por %p126, %p127
      %p129 = scmp.ne.s32.totalorder %s121, %s123
      %p130 = scmp.eq.s32.totalorder %s50, 1
      %p131 = por %p129, %p130
      %p132 = scmp.ne.s32.totalorder %s123, %s124
      %p133 = scmp.eq.s32.totalorder %s50, 0
      %p134 = por %p132, %p133
      %p135 = scmp.ne.s32.totalorder %s123, %s124
      %p136 = scmp.eq.s32.totalorder %s51, 1
      %p137 = por %p135, %p136
      %p139 = scmp.ne.s32.totalorder %s124, %s138
      %p140 = scmp.eq.s32.totalorder %s51, 0
      %p141 = por %p139, %p140
      %s143 = sadd.s32 %s142, 1
      %p146 = scmp.eq.s32.totalorder %s45, 1
      %p147 = scmp.ne.s32.totalorder %s142, %s144
      %p148 = scmp.eq.s32.totalorder %s45, 0
      %p149 = por %p147, %p148
      %p150 = scmp.ne.s32.totalorder %s142, %s144
      %p151 = scmp.eq.s32.totalorder %s50, 1
      %p152 = por %p150, %p151
      %p153 = scmp.ne.s32.totalorder %s144, %s145
      %p154 = scmp.eq.s32.totalorder %s50, 0
      %p155 = por %p153, %p154
      %p156 = scmp.ne.s32.totalorder %s144, %s145
      %p157 = scmp.eq.s32.totalorder %s51, 1
      %p158 = por %p156, %p157
      %p160 = scmp.ne.s32.totalorder %s145, %s159
      %p161 = scmp.eq.s32.totalorder %s51, 0
      %p162 = por %p160, %p161
      %s164 = sadd.s32 %s163, 1
      %p167 = scmp.eq.s32.totalorder %s45, 1
      %p168 = scmp.ne.s32.totalorder %s163, %s165
      %p169 = scmp.eq.s32.totalorder %s45, 0
      %p170 = por %p168, %p169
      %p171 = scmp.ne.s32.totalorder %s163, %s165
      %p172 = scmp.eq.s32.totalorder %s50, 1
      %p173 = por %p171, %p172
      %p174 = scmp.ne.s32.totalorder %s165, %s166
      %p175 = scmp.eq.s32.totalorder %s50, 0
      %p176 = por %p174, %p175
      %p177 = scmp.ne.s32.totalorder %s165, %s166
      %p178 = scmp.eq.s32.totalorder %s51, 1
      %p179 = por %p177, %p178
      %p181 = scmp.ne.s32.totalorder %s166, %s180
      %p182 = scmp.eq.s32.totalorder %s51, 0
      %p183 = por %p181, %p182
      %s185 = sadd.s32 %s184, 1
      %p188 = scmp.eq.s32.totalorder %s45, 1
      %p189 = scmp.ne.s32.totalorder %s184, %s186
      %p190 = scmp.eq.s32.totalorder %s45, 0
      %p191 = por %p189, %p190
      %p192 = scmp.ne.s32.totalorder %s184, %s186
      %p193 = scmp.eq.s32.totalorder %s50, 1
      %p194 = por %p192, %p193
      %p195 = scmp.ne.s32.totalorder %s186, %s187
      %p196 = scmp.eq.s32.totalorder %s50, 0
      %p197 = por %p195, %p196
      %p198 = scmp.ne.s32.totalorder %s186, %s187
      %p199 = scmp.eq.s32.totalorder %s51, 1
      %p200 = por %p198, %p199
      %p202 = scmp.ne.s32.totalorder %s187, %s201
      %p203 = scmp.eq.s32.totalorder %s51, 0
      %p204 = por %p202, %p203
      %s206 = sadd.s32 %s205, 1
      %p209 = scmp.eq.s32.totalorder %s45, 1
      %p210 = scmp.ne.s32.totalorder %s205, %s207
      %p211 = scmp.eq.s32.totalorder %s45, 0
      %p212 = por %p210, %p211
      %p213 = scmp.ne.s32.totalorder %s205, %s207
      %p214 = scmp.eq.s32.totalorder %s50, 1
      %p215 = por %p213, %p214
      %p216 = scmp.ne.s32.totalorder %s207, %s208
      %p217 = scmp.eq.s32.totalorder %s50, 0
      %p218 = por %p216, %p217
      %p219 = scmp.ne.s32.totalorder %s207, %s208
      %p220 = scmp.eq.s32.totalorder %s51, 1
      %p221 = por %p219, %p220
      %p223 = scmp.ne.s32.totalorder %s208, %s222
      %p224 = scmp.eq.s32.totalorder %s51, 0
      %p225 = por %p223, %p224
      %s227 = sadd.s32 %s226, 1
      %p230 = scmp.eq.s32.totalorder %s45, 1
      %p231 = scmp.ne.s32.totalorder %s226, %s228
      %p232 = scmp.eq.s32.totalorder %s45, 0
      %p233 = por %p231, %p232
      %p234 = scmp.ne.s32.totalorder %s226, %s228
      %p235 = scmp.eq.s32.totalorder %s50, 1
      %p236 = por %p234, %p235
      %p237 = scmp.ne.s32.totalorder %s228, %s229
      %p238 = scmp.eq.s32.totalorder %s50, 0
      %p239 = por %p237, %p238
      %p240 = scmp.ne.s32.totalorder %s228, %s229
      %p241 = scmp.eq.s32.totalorder %s51, 1
      %p242 = por %p240, %p241
      %p244 = scmp.ne.s32.totalorder %s229, %s243
      %p245 = scmp.eq.s32.totalorder %s51, 0
      %p246 = por %p244, %p245
      %s248 = sadd.s32 %s247, 1
      %p251 = scmp.eq.s32.totalorder %s45, 1
      %p252 = scmp.ne.s32.totalorder %s247, %s249
      %p253 = scmp.eq.s32.totalorder %s45, 0
      %p254 = por %p252, %p253
      %p255 = scmp.ne.s32.totalorder %s247, %s249
      %p256 = scmp.eq.s32.totalorder %s50, 1
      %p257 = por %p255, %p256
      %p258 = scmp.ne.s32.totalorder %s249, %s250
      %p259 = scmp.eq.s32.totalorder %s50, 0
      %p260 = por %p258, %p259
      %p261 = scmp.ne.s32.totalorder %s249, %s250
      %p262 = scmp.eq.s32.totalorder %s51, 1
      %p263 = por %p261, %p262
      %p265 = scmp.ne.s32.totalorder %s250, %s264
      %p266 = scmp.eq.s32.totalorder %s51, 0
      %p267 = por %p265, %p266
      %s269 = sadd.s32 %s268, 1
      %p272 = scmp.eq.s32.totalorder %s45, 1
      %p273 = scmp.ne.s32.totalorder %s268, %s270
      %p274 = scmp.eq.s32.totalorder %s45, 0
      %p275 = por %p273, %p274
      %p276 = scmp.ne.s32.totalorder %s268, %s270
      %p277 = scmp.eq.s32.totalorder %s50, 1
      %p278 = por %p276, %p277
      %p279 = scmp.ne.s32.totalorder %s270, %s271
      %p280 = scmp.eq.s32.totalorder %s50, 0
      %p281 = por %p279, %p280
      %p282 = scmp.ne.s32.totalorder %s270, %s271
      %p283 = scmp.eq.s32.totalorder %s51, 1
      %p284 = por %p282, %p283
      %p286 = scmp.ne.s32.totalorder %s271, %s285
      %p287 = scmp.eq.s32.totalorder %s51, 0
      %p288 = por %p286, %p287
      %s290 = sadd.s32 %s289, 1
      %p293 = scmp.eq.s32.totalorder %s45, 1
      %p294 = scmp.ne.s32.totalorder %s289, %s291
      %p295 = scmp.eq.s32.totalorder %s45, 0
      %p296 = por %p294, %p295
      %p297 = scmp.ne.s32.totalorder %s289, %s291
      %p298 = scmp.eq.s32.totalorder %s50, 1
      %p299 = por %p297, %p298
      %p300 = scmp.ne.s32.totalorder %s291, %s292
      %p301 = scmp.eq.s32.totalorder %s50, 0
      %p302 = por %p300, %p301
      %p303 = scmp.ne.s32.totalorder %s291, %s292
      %p304 = scmp.eq.s32.totalorder %s51, 1
      %p305 = por %p303, %p304
      %p307 = scmp.ne.s32.totalorder %s292, %s306
      %p308 = scmp.eq.s32.totalorder %s51, 0
      %p309 = por %p307, %p308
      %s311 = sadd.s32 %s310, 1
      %p314 = scmp.eq.s32.totalorder %s45, 1
      %p315 = scmp.ne.s32.totalorder %s310, %s312
      %p316 = scmp.eq.s32.totalorder %s45, 0
      %p317 = por %p315, %p316
      %p318 = scmp.ne.s32.totalorder %s310, %s312
      %p319 = scmp.eq.s32.totalorder %s50, 1
      %p320 = por %p318, %p319
      %p321 = scmp.ne.s32.totalorder %s312, %s313
      %p322 = scmp.eq.s32.totalorder %s50, 0
      %p323 = por %p321, %p322
      %p324 = scmp.ne.s32.totalorder %s312, %s313
      %p325 = scmp.eq.s32.totalorder %s51, 1
      %p326 = por %p324, %p325
      %p328 = scmp.ne.s32.totalorder %s313, %s327
      %p329 = scmp.eq.s32.totalorder %s51, 0
      %p330 = por %p328, %p329
      %s332 = sadd.s32 %s331, 1
      %p335 = scmp.eq.s32.totalorder %s45, 1
      %p336 = scmp.ne.s32.totalorder %s331, %s333
      %p337 = scmp.eq.s32.totalorder %s45, 0
      %p338 = por %p336, %p337
      %p339 = scmp.ne.s32.totalorder %s331, %s333
      %p340 = scmp.eq.s32.totalorder %s50, 1
      %p341 = por %p339, %p340
      %p342 = scmp.ne.s32.totalorder %s333, %s334
      %p343 = scmp.eq.s32.totalorder %s50, 0
      %p344 = por %p342, %p343
      %p345 = scmp.ne.s32.totalorder %s333, %s334
      %p346 = scmp.eq.s32.totalorder %s51, 1
      %p347 = por %p345, %p346
      %p349 = scmp.ne.s32.totalorder %s334, %s348
      %p350 = scmp.eq.s32.totalorder %s51, 0
      %p351 = por %p349, %p350
      %s353 = sadd.s32 %s352, 1
      %p356 = scmp.eq.s32.totalorder %s45, 1
      %p357 = scmp.ne.s32.totalorder %s352, %s354
      %p358 = scmp.eq.s32.totalorder %s45, 0
      %p359 = por %p357, %p358
      %p360 = scmp.ne.s32.totalorder %s352, %s354
      %p361 = scmp.eq.s32.totalorder %s50, 1
      %p362 = por %p360, %p361
      %p363 = scmp.ne.s32.totalorder %s354, %s355
      %p364 = scmp.eq.s32.totalorder %s50, 0
      %p365 = por %p363, %p364
      %p366 = scmp.ne.s32.totalorder %s354, %s355
      %p367 = scmp.eq.s32.totalorder %s51, 1
      %p368 = por %p366, %p367
      %p370 = scmp.ne.s32.totalorder %s355, %s369
      %p371 = scmp.eq.s32.totalorder %s51, 0
      %p372 = por %p370, %p371
      %s374 = sadd.s32 %s373, 1
      %p377 = scmp.eq.s32.totalorder %s45, 1
      %p378 = scmp.ne.s32.totalorder %s373, %s375
      %p379 = scmp.eq.s32.totalorder %s45, 0
      %p380 = por %p378, %p379
      %p381 = scmp.ne.s32.totalorder %s373, %s375
      %p382 = scmp.eq.s32.totalorder %s50, 1
      %p383 = por %p381, %p382
      %p384 = scmp.ne.s32.totalorder %s375, %s376
      %p385 = scmp.eq.s32.totalorder %s50, 0
      %p386 = por %p384, %p385
      %p387 = scmp.ne.s32.totalorder %s375, %s376
      %p388 = scmp.eq.s32.totalorder %s51, 1
      %p389 = por %p387, %p388
      %p391 = scmp.ne.s32.totalorder %s376, %s390
      %p392 = scmp.eq.s32.totalorder %s51, 0
      %p393 = por %p391, %p392
      %s395 = sadd.s32 %s394, 1
      %p398 = scmp.eq.s32.totalorder %s45, 1
      %p399 = scmp.ne.s32.totalorder %s394, %s396
      %p400 = scmp.eq.s32.totalorder %s45, 0
      %p401 = por %p399, %p400
      %p402 = scmp.ne.s32.totalorder %s394, %s396
      %p403 = scmp.eq.s32.totalorder %s50, 1
      %p404 = por %p402, %p403
      %p405 = scmp.ne.s32.totalorder %s396, %s397
      %p406 = scmp.eq.s32.totalorder %s50, 0
      %p407 = por %p405, %p406
      %p408 = scmp.ne.s32.totalorder %s396, %s397
      %p409 = scmp.eq.s32.totalorder %s51, 1
      %p410 = por %p408, %p409
      %p412 = scmp.ne.s32.totalorder %s397, %s411
      %p413 = scmp.eq.s32.totalorder %s51, 0
      %p414 = por %p412, %p413
      %s416 = sadd.s32 %s415, 1
      %p419 = scmp.eq.s32.totalorder %s45, 1
      %p420 = scmp.ne.s32.totalorder %s415, %s417
      %p421 = scmp.eq.s32.totalorder %s45, 0
      %p422 = por %p420, %p421
      %p423 = scmp.ne.s32.totalorder %s415, %s417
      %p424 = scmp.eq.s32.totalorder %s50, 1
      %p425 = por %p423, %p424
      %p426 = scmp.ne.s32.totalorder %s417, %s418
      %p427 = scmp.eq.s32.totalorder %s50, 0
      %p428 = por %p426, %p427
      %p429 = scmp.ne.s32.totalorder %s417, %s418
      %p430 = scmp.eq.s32.totalorder %s51, 1
      %p431 = por %p429, %p430
      %p433 = scmp.ne.s32.totalorder %s418, %s432
      %p434 = scmp.eq.s32.totalorder %s51, 0
      %p435 = por %p433, %p434
      %s437 = sadd.s32 %s436, 1
      %p440 = scmp.eq.s32.totalorder %s45, 1
      %p441 = scmp.ne.s32.totalorder %s436, %s438
      %p442 = scmp.eq.s32.totalorder %s45, 0
      %p443 = por %p441, %p442
      %p444 = scmp.ne.s32.totalorder %s436, %s438
      %p445 = scmp.eq.s32.totalorder %s50, 1
      %p446 = por %p444, %p445
      %p447 = scmp.ne.s32.totalorder %s438, %s439
      %p448 = scmp.eq.s32.totalorder %s50, 0
      %p449 = por %p447, %p448
      %p450 = scmp.ne.s32.totalorder %s438, %s439
      %p451 = scmp.eq.s32.totalorder %s51, 1
      %p452 = por %p450, %p451
      %p454 = scmp.ne.s32.totalorder %s439, %s453
      %p455 = scmp.eq.s32.totalorder %s51, 0
      %p456 = por %p454, %p455
      %s458 = sadd.s32 %s457, 1
      %p461 = scmp.eq.s32.totalorder %s45, 1
      %p462 = scmp.ne.s32.totalorder %s457, %s459
      %p463 = scmp.eq.s32.totalorder %s45, 0
      %p464 = por %p462, %p463
      %p465 = scmp.ne.s32.totalorder %s457, %s459
      %p466 = scmp.eq.s32.totalorder %s50, 1
      %p467 = por %p465, %p466
      %p468 = scmp.ne.s32.totalorder %s459, %s460
      %p469 = scmp.eq.s32.totalorder %s50, 0
      %p470 = por %p468, %p469
      %p471 = scmp.ne.s32.totalorder %s459, %s460
      %p472 = scmp.eq.s32.totalorder %s51, 1
      %p473 = por %p471, %p472
      %p475 = scmp.ne.s32.totalorder %s460, %s474
      %p476 = scmp.eq.s32.totalorder %s51, 0
      %p477 = por %p475, %p476
      %s479 = sadd.s32 %s478, 1
      %p482 = scmp.eq.s32.totalorder %s45, 1
      %p483 = scmp.ne.s32.totalorder %s478, %s480
      %p484 = scmp.eq.s32.totalorder %s45, 0
      %p485 = por %p483, %p484
      %p486 = scmp.ne.s32.totalorder %s478, %s480
      %p487 = scmp.eq.s32.totalorder %s50, 1
      %p488 = por %p486, %p487
      %p489 = scmp.ne.s32.totalorder %s480, %s481
      %p490 = scmp.eq.s32.totalorder %s50, 0
      %p491 = por %p489, %p490
      %p492 = scmp.ne.s32.totalorder %s480, %s481
      %p493 = scmp.eq.s32.totalorder %s51, 1
      %p494 = por %p492, %p493
      %p496 = scmp.ne.s32.totalorder %s481, %s495
      %p497 = scmp.eq.s32.totalorder %s51, 0
      %p498 = por %p496, %p497
      %s500 = sadd.s32 %s499, 1
      %p503 = scmp.eq.s32.totalorder %s45, 1
      %p504 = scmp.ne.s32.totalorder %s499, %s501
      %p505 = scmp.eq.s32.totalorder %s45, 0
      %p506 = por %p504, %p505
      %p507 = scmp.ne.s32.totalorder %s499, %s501
      %p508 = scmp.eq.s32.totalorder %s50, 1
      %p509 = por %p507, %p508
      %p510 = scmp.ne.s32.totalorder %s501, %s502
      %p511 = scmp.eq.s32.totalorder %s50, 0
      %p512 = por %p510, %p511
      %p513 = scmp.ne.s32.totalorder %s501, %s502
      %p514 = scmp.eq.s32.totalorder %s51, 1
      %p515 = por %p513, %p514
      %p517 = scmp.ne.s32.totalorder %s502, %s516
      %p518 = scmp.eq.s32.totalorder %s51, 0
      %p519 = por %p517, %p518
      %s521 = sadd.s32 %s520, 1
      %p524 = scmp.eq.s32.totalorder %s45, 1
      %p525 = scmp.ne.s32.totalorder %s520, %s522
      %p526 = scmp.eq.s32.totalorder %s45, 0
      %p527 = por %p525, %p526
      %p528 = scmp.ne.s32.totalorder %s520, %s522
      %p529 = scmp.eq.s32.totalorder %s50, 1
      %p530 = por %p528, %p529
      %p531 = scmp.ne.s32.totalorder %s522, %s523
      %p532 = scmp.eq.s32.totalorder %s50, 0
      %p533 = por %p531, %p532
      %p534 = scmp.ne.s32.totalorder %s522, %s523
      %p535 = scmp.eq.s32.totalorder %s51, 1
      %p536 = por %p534, %p535
      %p538 = scmp.ne.s32.totalorder %s523, %s537
      %p539 = scmp.eq.s32.totalorder %s51, 0
      %p540 = por %p538, %p539
      %s542 = sadd.s32 %s541, 1
      %p545 = scmp.eq.s32.totalorder %s45, 1
      %p546 = scmp.ne.s32.totalorder %s541, %s543
      %p547 = scmp.eq.s32.totalorder %s45, 0
      %p548 = por %p546, %p547
      %p549 = scmp.ne.s32.totalorder %s541, %s543
      %p550 = scmp.eq.s32.totalorder %s50, 1
      %p551 = por %p549, %p550
      %p552 = scmp.ne.s32.totalorder %s543, %s544
      %p553 = scmp.eq.s32.totalorder %s50, 0
      %p554 = por %p552, %p553
      %p555 = scmp.ne.s32.totalorder %s543, %s544
      %p556 = scmp.eq.s32.totalorder %s51, 1
      %p557 = por %p555, %p556
      %p559 = scmp.ne.s32.totalorder %s544, %s558
      %p560 = scmp.eq.s32.totalorder %s51, 0
      %p561 = por %p559, %p560
      %s563 = sadd.s32 %s562, 1
      %p566 = scmp.eq.s32.totalorder %s45, 1
      %p567 = scmp.ne.s32.totalorder %s562, %s564
      %p568 = scmp.eq.s32.totalorder %s45, 0
      %p569 = por %p567, %p568
      %p570 = scmp.ne.s32.totalorder %s562, %s564
      %p571 = scmp.eq.s32.totalorder %s50, 1
      %p572 = por %p570, %p571
      %p573 = scmp.ne.s32.totalorder %s564, %s565
      %p574 = scmp.eq.s32.totalorder %s50, 0
      %p575 = por %p573, %p574
      %p576 = scmp.ne.s32.totalorder %s564, %s565
      %p577 = scmp.eq.s32.totalorder %s51, 1
      %p578 = por %p576, %p577
      %p580 = scmp.ne.s32.totalorder %s565, %s579
      %p581 = scmp.eq.s32.totalorder %s51, 0
      %p582 = por %p580, %p581
      %s584 = sadd.s32 %s583, 1
      %p587 = scmp.eq.s32.totalorder %s45, 1
      %p588 = scmp.ne.s32.totalorder %s583, %s585
      %p589 = scmp.eq.s32.totalorder %s45, 0
      %p590 = por %p588, %p589
      %p591 = scmp.ne.s32.totalorder %s583, %s585
      %p592 = scmp.eq.s32.totalorder %s50, 1
      %p593 = por %p591, %p592
      %p594 = scmp.ne.s32.totalorder %s585, %s586
      %p595 = scmp.eq.s32.totalorder %s50, 0
      %p596 = por %p594, %p595
      %p597 = scmp.ne.s32.totalorder %s585, %s586
      %p598 = scmp.eq.s32.totalorder %s51, 1
      %p599 = por %p597, %p598
      %p601 = scmp.ne.s32.totalorder %s586, %s600
      %p602 = scmp.eq.s32.totalorder %s51, 0
      %p603 = por %p601, %p602
      %s604 = ssub.s32 %s45, %s52
      %p605 = scmp.eq.s32.totalorder %s604, 0
      %s607 = sadd.s32 %s606, 1
      %s608 = scalar_select %p605, %s606, %s607
      %p611 = pneg %p605
      %p612 = scmp.eq.s32.totalorder %s45, 1
      %p613 = por %p611, %p612
      %p614 = scmp.ne.s32.totalorder %s606, %s609
      %p615 = scmp.eq.s32.totalorder %s45, 0
      %p616 = por %p614, %p615
      %p617 = scmp.ne.s32.totalorder %s606, %s609
      %p618 = scmp.eq.s32.totalorder %s50, 1
      %p619 = por %p617, %p618
      %p620 = scmp.ne.s32.totalorder %s609, %s610
      %p621 = scmp.eq.s32.totalorder %s50, 0
      %p622 = por %p620, %p621
      %p623 = scmp.ne.s32.totalorder %s609, %s610
      %p624 = scmp.eq.s32.totalorder %s51, 1
      %p625 = por %p623, %p624
      %p627 = scmp.ne.s32.totalorder %s610, %s626
      %p628 = scmp.eq.s32.totalorder %s51, 0
      %p629 = por %p627, %p628
      %p630 = scmp.le.s32.totalorder 1, %s45
      %p631 = scmp.lt.s32.totalorder %s45, 3
      %p632 = pnand %p630, %p631
      %p633 = pneg %p632
      // Predicated region
      $region9: #{tpu_custom_call.1} parent=5 // pred_check
        _
      $region10: #{tpu_custom_call.1} parent=5 // pred_check_branch
        %635 = sbr.rel (%p632) target = $region12
      $region11: #{tpu_custom_call.1} parent=5 // pred_region
        %s636 = ssub.s32 %s45, 1
        // Predicated region
        $region13: #{tpu_custom_call.1} parent=11 // pred_check
          %p637 = pneg %p92
        $region14: #{tpu_custom_call.1} parent=11 // pred_check_branch
          %639 = sbr.rel (%p637) target = $region16
        $region15: #{tpu_custom_call.1} parent=11 // pred_region
          _
        $region16: #{tpu_custom_call.1} parent=11 // pred_fallthru
          _
        // Predicated region
        $region17: #{tpu_custom_call.1} parent=11 // pred_check
          %p640 = pneg %p113
        $region18: #{tpu_custom_call.1} parent=11 // pred_check_branch
          %642 = sbr.rel (%p640) target = $region20
        $region19: #{tpu_custom_call.1} parent=11 // pred_region
          _
        $region20: #{tpu_custom_call.1} parent=11 // pred_fallthru
          _
        // Predicated region
        $region21: #{tpu_custom_call.1} parent=11 // pred_check
          %p643 = pneg %p134
        $region22: #{tpu_custom_call.1} parent=11 // pred_check_branch
          %645 = sbr.rel (%p643) target = $region24
        $region23: #{tpu_custom_call.1} parent=11 // pred_region
          %647 = vsyncadd [#allocation5], 0
          %s648 = sshll.u32 %s3, 4
          %s649 = int_to_ptr.hbm [resolvable:$true] %s648
          %s650 = sshll.u32 [#allocation4], 4
          %s651 = int_to_ptr.vmem [resolvable:$true] %s650
          %656 = dma.hbm_to_vmem [thread:$0]  %s649, 24576, %s651, [#allocation5], 256, 256, 16
        $region24: #{tpu_custom_call.1} parent=11 // pred_fallthru
          _
        // Predicated region
        $region25: #{tpu_custom_call.1} parent=11 // pred_check
          %p657 = pneg %p155
        $region26: #{tpu_custom_call.1} parent=11 // pred_check_branch
          %659 = sbr.rel (%p657) target = $region28
        $region27: #{tpu_custom_call.1} parent=11 // pred_region
          %661 = vsyncadd [#allocation8], 0
          %s662 = sshll.u32 %s4, 4
          %s663 = int_to_ptr.hbm [resolvable:$true] %s662
          %s664 = sshll.u32 [#allocation7], 4
          %s665 = int_to_ptr.vmem [resolvable:$true] %s664
          %670 = dma.hbm_to_vmem [thread:$0]  %s663, 24576, %s665, [#allocation8], 256, 256, 16
        $region28: #{tpu_custom_call.1} parent=11 // pred_fallthru
          _
        // Predicated region
        $region29: #{tpu_custom_call.1} parent=11 // pred_check
          %p671 = pneg %p176
        $region30: #{tpu_custom_call.1} parent=11 // pred_check_branch
          %673 = sbr.rel (%p671) target = $region32
        $region31: #{tpu_custom_call.1} parent=11 // pred_region
          %675 = vsyncadd [#allocation8], 0
          %s676 = sshll.u32 %s5, 4
          %s677 = int_to_ptr.hbm [resolvable:$true] %s676
          %s678 = sshll.u32 [#allocation9], 4
          %s679 = int_to_ptr.vmem [resolvable:$true] %s678
          %684 = dma.hbm_to_vmem [thread:$0]  %s677, 6144, %s679, [#allocation8], 128, 128, 8
        $region32: #{tpu_custom_call.1} parent=11 // pred_fallthru
          _
        // Predicated region
        $region33: #{tpu_custom_call.1} parent=11 // pred_check
          %p685 = pneg %p197
        $region34: #{tpu_custom_call.1} parent=11 // pred_check_branch
          %687 = sbr.rel (%p685) target = $region36
        $region35: #{tpu_custom_call.1} parent=11 // pred_region
          %689 = vsyncadd [#allocation11], 0
          %s690 = sshll.u32 %s6, 4
          %s691 = int_to_ptr.hbm [resolvable:$true] %s690
          %s692 = sshll.u32 [#allocation10], 4
          %s693 = int_to_ptr.vmem [resolvable:$true] %s692
          %698 = dma.hbm_to_vmem [thread:$0]  %s691, 1024, %s693, [#allocation11], 256, 256, 16
        $region36: #{tpu_custom_call.1} parent=11 // pred_fallthru
          _
        // Predicated region
        $region37: #{tpu_custom_call.1} parent=11 // pred_check
          %p699 = pneg %p218
        $region38: #{tpu_custom_call.1} parent=11 // pred_check_branch
          %701 = sbr.rel (%p699) target = $region40
        $region39: #{tpu_custom_call.1} parent=11 // pred_region
          _
        $region40: #{tpu_custom_call.1} parent=11 // pred_fallthru
          _
        // Predicated region
        $region41: #{tpu_custom_call.1} parent=11 // pred_check
          %p702 = pneg %p239
        $region42: #{tpu_custom_call.1} parent=11 // pred_check_branch
          %704 = sbr.rel (%p702) target = $region44
        $region43: #{tpu_custom_call.1} parent=11 // pred_region
          %706 = vsyncadd [#allocation11], 0
          %s707 = sshll.u32 %s8, 4
          %s708 = int_to_ptr.hbm [resolvable:$true] %s707
          %s709 = sshll.u32 [#allocation12], 4
          %s710 = int_to_ptr.vmem [resolvable:$true] %s709
          %715 = dma.hbm_to_vmem [thread:$0]  %s708, 8192, %s710, [#allocation11], 256, 256, 16
        $region44: #{tpu_custom_call.1} parent=11 // pred_fallthru
          _
        // Predicated region
        $region45: #{tpu_custom_call.1} parent=11 // pred_check
          %p716 = pneg %p260
        $region46: #{tpu_custom_call.1} parent=11 // pred_check_branch
          %718 = sbr.rel (%p716) target = $region48
        $region47: #{tpu_custom_call.1} parent=11 // pred_region
          _
        $region48: #{tpu_custom_call.1} parent=11 // pred_fallthru
          _
        // Predicated region
        $region49: #{tpu_custom_call.1} parent=11 // pred_check
          %p719 = pneg %p281
        $region50: #{tpu_custom_call.1} parent=11 // pred_check_branch
          %721 = sbr.rel (%p719) target = $region52
        $region51: #{tpu_custom_call.1} parent=11 // pred_region
          _
        $region52: #{tpu_custom_call.1} parent=11 // pred_fallthru
          _
        // Predicated region
        $region53: #{tpu_custom_call.1} parent=11 // pred_check
          %p722 = pneg %p302
        $region54: #{tpu_custom_call.1} parent=11 // pred_check_branch
          %724 = sbr.rel (%p722) target = $region56
        $region55: #{tpu_custom_call.1} parent=11 // pred_region
          _
        $region56: #{tpu_custom_call.1} parent=11 // pred_fallthru
          _
        // Predicated region
        $region57: #{tpu_custom_call.1} parent=11 // pred_check
          %p725 = pneg %p323
        $region58: #{tpu_custom_call.1} parent=11 // pred_check_branch
          %727 = sbr.rel (%p725) target = $region60
        $region59: #{tpu_custom_call.1} parent=11 // pred_region
          %729 = vsyncadd [#allocation14], 0
          %s730 = sshll.u32 %s12, 4
          %s731 = int_to_ptr.hbm [resolvable:$true] %s730
          %s732 = sshll.u32 [#allocation13], 4
          %s733 = int_to_ptr.vmem [resolvable:$true] %s732
          %738 = dma.hbm_to_vmem [thread:$0]  %s731, 8192, %s733, [#allocation14], 256, 256, 16
        $region60: #{tpu_custom_call.1} parent=11 // pred_fallthru
          _
        // Predicated region
        $region61: #{tpu_custom_call.1} parent=11 // pred_check
          %p739 = pneg %p344
        $region62: #{tpu_custom_call.1} parent=11 // pred_check_branch
          %741 = sbr.rel (%p739) target = $region64
        $region63: #{tpu_custom_call.1} parent=11 // pred_region
          %743 = vsyncadd [#allocation14], 0
          %s744 = sshll.u32 %s13, 4
          %s745 = int_to_ptr.hbm [resolvable:$true] %s744
          %s746 = sshll.u32 [#allocation15], 4
          %s747 = int_to_ptr.vmem [resolvable:$true] %s746
          %752 = dma.hbm_to_vmem [thread:$0]  %s745, 2048, %s747, [#allocation14], 128, 128, 8
        $region64: #{tpu_custom_call.1} parent=11 // pred_fallthru
          _
        // Predicated region
        $region65: #{tpu_custom_call.1} parent=11 // pred_check
          %p753 = pneg %p365
        $region66: #{tpu_custom_call.1} parent=11 // pred_check_branch
          %755 = sbr.rel (%p753) target = $region68
        $region67: #{tpu_custom_call.1} parent=11 // pred_region
          _
        $region68: #{tpu_custom_call.1} parent=11 // pred_fallthru
          _
        // Predicated region
        $region69: #{tpu_custom_call.1} parent=11 // pred_check
          %p756 = pneg %p386
        $region70: #{tpu_custom_call.1} parent=11 // pred_check_branch
          %758 = sbr.rel (%p756) target = $region72
        $region71: #{tpu_custom_call.1} parent=11 // pred_region
          _
        $region72: #{tpu_custom_call.1} parent=11 // pred_fallthru
          _
        // Predicated region
        $region73: #{tpu_custom_call.1} parent=11 // pred_check
          %p759 = pneg %p407
        $region74: #{tpu_custom_call.1} parent=11 // pred_check_branch
          %761 = sbr.rel (%p759) target = $region76
        $region75: #{tpu_custom_call.1} parent=11 // pred_region
          %763 = vsyncadd [#allocation17], 0
          %s764 = sshll.u32 %s16, 4
          %s765 = int_to_ptr.hbm [resolvable:$true] %s764
          %s766 = sshll.u32 [#allocation16], 4
          %s767 = int_to_ptr.vmem [resolvable:$true] %s766
          %772 = dma.hbm_to_vmem [thread:$0]  %s765, 1024, %s767, [#allocation17], 128, 128, 8
        $region76: #{tpu_custom_call.1} parent=11 // pred_fallthru
          _
        // Predicated region
        $region77: #{tpu_custom_call.1} parent=11 // pred_check
          %p773 = pneg %p428
        $region78: #{tpu_custom_call.1} parent=11 // pred_check_branch
          %775 = sbr.rel (%p773) target = $region80
        $region79: #{tpu_custom_call.1} parent=11 // pred_region
          _
        $region80: #{tpu_custom_call.1} parent=11 // pred_fallthru
          _
        // Predicated region
        $region81: #{tpu_custom_call.1} parent=11 // pred_check
          %p776 = pneg %p449
        $region82: #{tpu_custom_call.1} parent=11 // pred_check_branch
          %778 = sbr.rel (%p776) target = $region84
        $region83: #{tpu_custom_call.1} parent=11 // pred_region
          _
        $region84: #{tpu_custom_call.1} parent=11 // pred_fallthru
          _
        // Predicated region
        $region85: #{tpu_custom_call.1} parent=11 // pred_check
          %p779 = pneg %p470
        $region86: #{tpu_custom_call.1} parent=11 // pred_check_branch
          %781 = sbr.rel (%p779) target = $region88
        $region87: #{tpu_custom_call.1} parent=11 // pred_region
          _
        $region88: #{tpu_custom_call.1} parent=11 // pred_fallthru
          _
        // Predicated region
        $region89: #{tpu_custom_call.1} parent=11 // pred_check
          %p782 = pneg %p491
        $region90: #{tpu_custom_call.1} parent=11 // pred_check_branch
          %784 = sbr.rel (%p782) target = $region92
        $region91: #{tpu_custom_call.1} parent=11 // pred_region
          %786 = vsyncadd [#allocation17], 0
          %s787 = sshll.u32 %s20, 4
          %s788 = int_to_ptr.hbm [resolvable:$true] %s787
          %s789 = sshll.u32 [#allocation18], 4
          %s790 = int_to_ptr.vmem [resolvable:$true] %s789
          %795 = dma.hbm_to_vmem [thread:$0]  %s788, 4096, %s790, [#allocation17], 128, 128, 8
        $region92: #{tpu_custom_call.1} parent=11 // pred_fallthru
          _
        // Predicated region
        $region93: #{tpu_custom_call.1} parent=11 // pred_check
          %p796 = pneg %p512
        $region94: #{tpu_custom_call.1} parent=11 // pred_check_branch
          %798 = sbr.rel (%p796) target = $region96
        $region95: #{tpu_custom_call.1} parent=11 // pred_region
          _
        $region96: #{tpu_custom_call.1} parent=11 // pred_fallthru
          _
        // Predicated region
        $region97: #{tpu_custom_call.1} parent=11 // pred_check
          %p799 = pneg %p533
        $region98: #{tpu_custom_call.1} parent=11 // pred_check_branch
          %801 = sbr.rel (%p799) target = $region100
        $region99: #{tpu_custom_call.1} parent=11 // pred_region
          _
        $region100: #{tpu_custom_call.1} parent=11 // pred_fallthru
          _
        // Predicated region
        $region101: #{tpu_custom_call.1} parent=11 // pred_check
          %p802 = pneg %p554
        $region102: #{tpu_custom_call.1} parent=11 // pred_check_branch
          %804 = sbr.rel (%p802) target = $region104
        $region103: #{tpu_custom_call.1} parent=11 // pred_region
          _
        $region104: #{tpu_custom_call.1} parent=11 // pred_fallthru
          _
        // Predicated region
        $region105: #{tpu_custom_call.1} parent=11 // pred_check
          %p805 = pneg %p575
        $region106: #{tpu_custom_call.1} parent=11 // pred_check_branch
          %807 = sbr.rel (%p805) target = $region108
        $region107: #{tpu_custom_call.1} parent=11 // pred_region
          %809 = vsyncadd [#allocation20], 0
          %s810 = sshll.u32 %s24, 4
          %s811 = int_to_ptr.hbm [resolvable:$true] %s810
          %s812 = sshll.u32 [#allocation19], 4
          %s813 = int_to_ptr.vmem [resolvable:$true] %s812
          %818 = dma.hbm_to_vmem [thread:$0]  %s811, 4096, %s813, [#allocation20], 256, 256, 16
        $region108: #{tpu_custom_call.1} parent=11 // pred_fallthru
          _
        // Predicated region
        $region109: #{tpu_custom_call.1} parent=11 // pred_check
          %p819 = pneg %p596
        $region110: #{tpu_custom_call.1} parent=11 // pred_check_branch
          %821 = sbr.rel (%p819) target = $region112
        $region111: #{tpu_custom_call.1} parent=11 // pred_region
          %823 = vsyncadd [#allocation20], 0
          %s824 = sshll.u32 %s25, 4
          %s825 = int_to_ptr.hbm [resolvable:$true] %s824
          %s826 = sshll.u32 [#allocation21], 4
          %s827 = int_to_ptr.vmem [resolvable:$true] %s826
          %832 = dma.hbm_to_vmem [thread:$0]  %s825, 1024, %s827, [#allocation20], 128, 128, 8
        $region112: #{tpu_custom_call.1} parent=11 // pred_fallthru
          _
      $region12: #{tpu_custom_call.1} parent=5 // pred_fallthru
        _
      %p833 = scmp.lt.s32.totalorder %s45, 2
      // Predicated region
      $region113: #{tpu_custom_call.1} parent=5 // pred_check
        %p834 = pneg %p833
      $region114: #{tpu_custom_call.1} parent=5 // pred_check_branch
        %836 = sbr.rel (%p834) target = $region116
      $region115: #{tpu_custom_call.1} parent=5 // pred_region
        // Predicated region
        $region117: #{tpu_custom_call.1} parent=115 // pred_check
          %p837 = pneg %p65
        $region118: #{tpu_custom_call.1} parent=115 // pred_check_branch
          %839 = sbr.rel (%p837) target = $region120
        $region119: #{tpu_custom_call.1} parent=115 // pred_region
          %p840 = scmp.lt.s32.totalorder %s45, 1
          %s841 = scalar_select %p840, %s45, 1
          %s842 = smul.addr %s841, 4
          %s843 = smul.addr %s842, 8
          %s844 = scalar_lea.vmem %s0, %s843
        $region120: #{tpu_custom_call.1} parent=115 // pred_fallthru
          _
      $region116: #{tpu_custom_call.1} parent=5 // pred_fallthru
        _
      %p845 = scmp.le.s32.totalorder 1, %s45
      %p846 = scmp.lt.s32.totalorder %s45, 3
      %p847 = pnand %p845, %p846
      %p848 = pneg %p847
      // Predicated region
      $region121: #{tpu_custom_call.1} parent=5 // pred_check
        _
      $region122: #{tpu_custom_call.1} parent=5 // pred_check_branch
        %850 = sbr.rel (%p847) target = $region124
      $region123: #{tpu_custom_call.1} parent=5 // pred_region
        %s851 = ssub.s32 %s45, 1
        // Predicated region
        $region125: #{tpu_custom_call.1} parent=123 // pred_check
          %p852 = pneg %p134
        $region126: #{tpu_custom_call.1} parent=123 // pred_check_branch
          %854 = sbr.rel (%p852) target = $region128
        $region127: #{tpu_custom_call.1} parent=123 // pred_region
          %856 = dma.done [#allocation5], 24576
        $region128: #{tpu_custom_call.1} parent=123 // pred_fallthru
          _
        // Predicated region
        $region129: #{tpu_custom_call.1} parent=123 // pred_check
          %p857 = pneg %p155
        $region130: #{tpu_custom_call.1} parent=123 // pred_check_branch
          %859 = sbr.rel (%p857) target = $region132
        $region131: #{tpu_custom_call.1} parent=123 // pred_region
          %861 = dma.done [#allocation8], 24576
        $region132: #{tpu_custom_call.1} parent=123 // pred_fallthru
          _
        // Predicated region
        $region133: #{tpu_custom_call.1} parent=123 // pred_check
          %p862 = pneg %p176
        $region134: #{tpu_custom_call.1} parent=123 // pred_check_branch
          %864 = sbr.rel (%p862) target = $region136
        $region135: #{tpu_custom_call.1} parent=123 // pred_region
          %866 = dma.done [#allocation8], 6144
        $region136: #{tpu_custom_call.1} parent=123 // pred_fallthru
          _
        // Predicated region
        $region137: #{tpu_custom_call.1} parent=123 // pred_check
          %p867 = pneg %p197
        $region138: #{tpu_custom_call.1} parent=123 // pred_check_branch
          %869 = sbr.rel (%p867) target = $region140
        $region139: #{tpu_custom_call.1} parent=123 // pred_region
          %871 = dma.done [#allocation11], 1024
        $region140: #{tpu_custom_call.1} parent=123 // pred_fallthru
          _
        // Predicated region
        $region141: #{tpu_custom_call.1} parent=123 // pred_check
          %p872 = pneg %p239
        $region142: #{tpu_custom_call.1} parent=123 // pred_check_branch
          %874 = sbr.rel (%p872) target = $region144
        $region143: #{tpu_custom_call.1} parent=123 // pred_region
          %876 = dma.done [#allocation11], 8192
        $region144: #{tpu_custom_call.1} parent=123 // pred_fallthru
          _
        // Predicated region
        $region145: #{tpu_custom_call.1} parent=123 // pred_check
          %p877 = pneg %p323
        $region146: #{tpu_custom_call.1} parent=123 // pred_check_branch
          %879 = sbr.rel (%p877) target = $region148
        $region147: #{tpu_custom_call.1} parent=123 // pred_region
          %881 = dma.done [#allocation14], 8192
        $region148: #{tpu_custom_call.1} parent=123 // pred_fallthru
          _
        // Predicated region
        $region149: #{tpu_custom_call.1} parent=123 // pred_check
          %p882 = pneg %p344
        $region150: #{tpu_custom_call.1} parent=123 // pred_check_branch
          %884 = sbr.rel (%p882) target = $region152
        $region151: #{tpu_custom_call.1} parent=123 // pred_region
          %886 = dma.done [#allocation14], 2048
        $region152: #{tpu_custom_call.1} parent=123 // pred_fallthru
          _
        // Predicated region
        $region153: #{tpu_custom_call.1} parent=123 // pred_check
          %p887 = pneg %p407
        $region154: #{tpu_custom_call.1} parent=123 // pred_check_branch
          %889 = sbr.rel (%p887) target = $region156
        $region155: #{tpu_custom_call.1} parent=123 // pred_region
          %891 = dma.done [#allocation17], 1024
        $region156: #{tpu_custom_call.1} parent=123 // pred_fallthru
          _
        // Predicated region
        $region157: #{tpu_custom_call.1} parent=123 // pred_check
          %p892 = pneg %p491
        $region158: #{tpu_custom_call.1} parent=123 // pred_check_branch
          %894 = sbr.rel (%p892) target = $region160
        $region159: #{tpu_custom_call.1} parent=123 // pred_region
          %896 = dma.done [#allocation17], 4096
        $region160: #{tpu_custom_call.1} parent=123 // pred_fallthru
          _
        // Predicated region
        $region161: #{tpu_custom_call.1} parent=123 // pred_check
          %p897 = pneg %p575
        $region162: #{tpu_custom_call.1} parent=123 // pred_check_branch
          %899 = sbr.rel (%p897) target = $region164
        $region163: #{tpu_custom_call.1} parent=123 // pred_region
          %901 = dma.done [#allocation20], 4096
        $region164: #{tpu_custom_call.1} parent=123 // pred_fallthru
          _
        // Predicated region
        $region165: #{tpu_custom_call.1} parent=123 // pred_check
          %p902 = pneg %p596
        $region166: #{tpu_custom_call.1} parent=123 // pred_check_branch
          %904 = sbr.rel (%p902) target = $region168
        $region167: #{tpu_custom_call.1} parent=123 // pred_region
          %906 = dma.done [#allocation20], 1024
        $region168: #{tpu_custom_call.1} parent=123 // pred_fallthru
          _
        %p907 = scmp.lt.s32.totalorder %s50, 1
        %s908 = scalar_select %p907, %s50, 1
        %s909 = smul.addr %s908, 4
        %s910 = smul.addr %s909, 8
        %s911 = scalar_lea.vmem %s0, %s910
        %p912 = pneg %p71
        %p913 = pneg %p68
        %p914 = pneg %p92
        %p915 = pneg %p89
        %p916 = pneg %p113
        %p917 = pneg %p110
        %p918 = pneg %p134
        %p919 = pneg %p131
        %p920 = pneg %p155
        %p921 = pneg %p152
        %p922 = pneg %p176
        %p923 = pneg %p173
        %p924 = pneg %p197
        %p925 = pneg %p194
        %p926 = pneg %p218
        %p927 = pneg %p215
        %p928 = pneg %p239
        %p929 = pneg %p236
        %p930 = pneg %p260
        %p931 = pneg %p257
        %p932 = pneg %p281
        %p933 = pneg %p278
        %p934 = pneg %p302
        %p935 = pneg %p299
        %p936 = pneg %p323
        %p937 = pneg %p320
        %p938 = pneg %p344
        %p939 = pneg %p341
        %p940 = pneg %p365
        %p941 = pneg %p362
        %p942 = pneg %p386
        %p943 = pneg %p383
        %p944 = pneg %p407
        %p945 = pneg %p404
        %p946 = pneg %p428
        %p947 = pneg %p425
        %p948 = pneg %p449
        %p949 = pneg %p446
        %p950 = pneg %p470
        %p951 = pneg %p467
        %p952 = pneg %p491
        %p953 = pneg %p488
        %p954 = pneg %p512
        %p955 = pneg %p509
        %p956 = pneg %p533
        %p957 = pneg %p530
        %p958 = pneg %p554
        %p959 = pneg %p551
        %p960 = pneg %p575
        %p961 = pneg %p572
        %p962 = pneg %p596
        %p963 = pneg %p593
        %p964 = pneg %p622
        %p965 = pneg %p619
        %s966 = sand.u32 %s609, 1
        %s967 = scalar_lea.sflag [#allocation6], %s966
        %s968 = sand.u32 %s609, 1
        %s969 = smul.addr %s968, 32
        %s970 = scalar_lea.vmem [#allocation22], %s969
        %p971 = scmp.lt.s32.totalorder %s50, 1
        %s972 = scalar_select %p971, %s50, 1
        %s973 = smul.addr %s972, 4
        %s974 = smul.addr %s973, 8
        %s975 = scalar_lea.vmem %s0, %s974
        %v976 = vld [vmem:[#allocation2] sm:$0x1]
        %v977 = vld [vmem:[#allocation3] sm:$0x1]
        %v978 = vld [vmem:[#allocation4] sm:$0xff]
        %v979 = vld [vmem:[#allocation4 + $0x8] sm:$0xff]
        %v980 = vld [vmem:[#allocation4 + $0x10] sm:$0xff]
        %v981 = vld [vmem:[#allocation4 + $0x18] sm:$0xff]
        %v982 = vld [vmem:[#allocation4 + $0x20] sm:$0xff]
        %v983 = vld [vmem:[#allocation4 + $0x28] sm:$0xff]
        %v984 = vld [vmem:[#allocation4 + $0x30] sm:$0xff]
        %v985 = vld [vmem:[#allocation4 + $0x38] sm:$0xff]
        %v986 = vld [vmem:[#allocation4 + $0x40] sm:$0xff]
        %v987 = vld [vmem:[#allocation4 + $0x48] sm:$0xff]
        %v988 = vld [vmem:[#allocation4 + $0x50] sm:$0xff]
        %v989 = vld [vmem:[#allocation4 + $0x58] sm:$0xff]
        %v990 = vld [vmem:[#allocation4 + $0x60] sm:$0xff]
        %v991 = vld [vmem:[#allocation4 + $0x68] sm:$0xff]
        %v992 = vld [vmem:[#allocation4 + $0x70] sm:$0xff]
        %v993 = vld [vmem:[#allocation4 + $0x78] sm:$0xff]
        %v994 = vld [vmem:[#allocation4 + $0x80] sm:$0xff]
        %v995 = vld [vmem:[#allocation4 + $0x88] sm:$0xff]
        %v996 = vld [vmem:[#allocation4 + $0x90] sm:$0xff]
        %v997 = vld [vmem:[#allocation4 + $0x98] sm:$0xff]
        %v998 = vld [vmem:[#allocation4 + $0xa0] sm:$0xff]
        %v999 = vld [vmem:[#allocation4 + $0xa8] sm:$0xff]
        %v1000 = vld [vmem:[#allocation4 + $0xb0] sm:$0xff]
        %v1001 = vld [vmem:[#allocation4 + $0xb8] sm:$0xff]
        %v1002 = vld [vmem:[#allocation4 + $0xc0] sm:$0xff]
        %v1003 = vld [vmem:[#allocation4 + $0xc8] sm:$0xff]
        %v1004 = vld [vmem:[#allocation4 + $0xd0] sm:$0xff]
        %v1005 = vld [vmem:[#allocation4 + $0xd8] sm:$0xff]
        %v1006 = vld [vmem:[#allocation4 + $0xe0] sm:$0xff]
        %v1007 = vld [vmem:[#allocation4 + $0xe8] sm:$0xff]
        %v1008 = vld [vmem:[#allocation4 + $0xf0] sm:$0xff]
        %v1009 = vld [vmem:[#allocation4 + $0xf8] sm:$0xff]
        %v1010 = vld [vmem:[#allocation4 + $0x100] sm:$0xff]
        %v1011 = vld [vmem:[#allocation4 + $0x108] sm:$0xff]
        %v1012 = vld [vmem:[#allocation4 + $0x110] sm:$0xff]
        %v1013 = vld [vmem:[#allocation4 + $0x118] sm:$0xff]
        %v1014 = vld [vmem:[#allocation4 + $0x120] sm:$0xff]
        %v1015 = vld [vmem:[#allocation4 + $0x128] sm:$0xff]
        %v1016 = vld [vmem:[#allocation4 + $0x130] sm:$0xff]
        %v1017 = vld [vmem:[#allocation4 + $0x138] sm:$0xff]
        %v1018 = vld [vmem:[#allocation4 + $0x140] sm:$0xff]
        %v1019 = vld [vmem:[#allocation4 + $0x148] sm:$0xff]
        %v1020 = vld [vmem:[#allocation4 + $0x150] sm:$0xff]
        %v1021 = vld [vmem:[#allocation4 + $0x158] sm:$0xff]
        %v1022 = vld [vmem:[#allocation4 + $0x160] sm:$0xff]
        %v1023 = vld [vmem:[#allocation4 + $0x168] sm:$0xff]
        %v1024 = vld [vmem:[#allocation4 + $0x170] sm:$0xff]
        %v1025 = vld [vmem:[#allocation4 + $0x178] sm:$0xff]
        %v1026 = vld [vmem:[#allocation4 + $0x180] sm:$0xff]
        %v1027 = vld [vmem:[#allocation4 + $0x188] sm:$0xff]
        %v1028 = vld [vmem:[#allocation4 + $0x190] sm:$0xff]
        %v1029 = vld [vmem:[#allocation4 + $0x198] sm:$0xff]
        %v1030 = vld [vmem:[#allocation4 + $0x1a0] sm:$0xff]
        %v1031 = vld [vmem:[#allocation4 + $0x1a8] sm:$0xff]
        %v1032 = vld [vmem:[#allocation4 + $0x1b0] sm:$0xff]
        %v1033 = vld [vmem:[#allocation4 + $0x1b8] sm:$0xff]
        %v1034 = vld [vmem:[#allocation4 + $0x1c0] sm:$0xff]
        %v1035 = vld [vmem:[#allocation4 + $0x1c8] sm:$0xff]
        %v1036 = vld [vmem:[#allocation4 + $0x1d0] sm:$0xff]
        %v1037 = vld [vmem:[#allocation4 + $0x1d8] sm:$0xff]
        %v1038 = vld [vmem:[#allocation4 + $0x1e0] sm:$0xff]
        %v1039 = vld [vmem:[#allocation4 + $0x1e8] sm:$0xff]
        %v1040 = vld [vmem:[#allocation4 + $0x1f0] sm:$0xff]
        %v1041 = vld [vmem:[#allocation4 + $0x1f8] sm:$0xff]
        %s1042 = scalar_lea.vmem [#allocation4], 512
        %v1043 = vld [vmem:[%s1042] sm:$0xff]
        %v1044 = vld [vmem:[%s1042 + $0x8] sm:$0xff]
        %v1045 = vld [vmem:[%s1042 + $0x10] sm:$0xff]
        %v1046 = vld [vmem:[%s1042 + $0x18] sm:$0xff]
        %v1047 = vld [vmem:[%s1042 + $0x20] sm:$0xff]
        %v1048 = vld [vmem:[%s1042 + $0x28] sm:$0xff]
        %v1049 = vld [vmem:[%s1042 + $0x30] sm:$0xff]
        %v1050 = vld [vmem:[%s1042 + $0x38] sm:$0xff]
        %v1051 = vld [vmem:[%s1042 + $0x40] sm:$0xff]
        %v1052 = vld [vmem:[%s1042 + $0x48] sm:$0xff]
        %v1053 = vld [vmem:[%s1042 + $0x50] sm:$0xff]
        %v1054 = vld [vmem:[%s1042 + $0x58] sm:$0xff]
        %v1055 = vld [vmem:[%s1042 + $0x60] sm:$0xff]
        %v1056 = vld [vmem:[%s1042 + $0x68] sm:$0xff]
        %v1057 = vld [vmem:[%s1042 + $0x70] sm:$0xff]
        %v1058 = vld [vmem:[%s1042 + $0x78] sm:$0xff]
        %v1059 = vld [vmem:[%s1042 + $0x80] sm:$0xff]
        %v1060 = vld [vmem:[%s1042 + $0x88] sm:$0xff]
        %v1061 = vld [vmem:[%s1042 + $0x90] sm:$0xff]
        %v1062 = vld [vmem:[%s1042 + $0x98] sm:$0xff]
        %v1063 = vld [vmem:[%s1042 + $0xa0] sm:$0xff]
        %v1064 = vld [vmem:[%s1042 + $0xa8] sm:$0xff]
        %v1065 = vld [vmem:[%s1042 + $0xb0] sm:$0xff]
        %v1066 = vld [vmem:[%s1042 + $0xb8] sm:$0xff]
        %v1067 = vld [vmem:[%s1042 + $0xc0] sm:$0xff]
        %v1068 = vld [vmem:[%s1042 + $0xc8] sm:$0xff]
        %v1069 = vld [vmem:[%s1042 + $0xd0] sm:$0xff]
        %v1070 = vld [vmem:[%s1042 + $0xd8] sm:$0xff]
        %v1071 = vld [vmem:[%s1042 + $0xe0] sm:$0xff]
        %v1072 = vld [vmem:[%s1042 + $0xe8] sm:$0xff]
        %v1073 = vld [vmem:[%s1042 + $0xf0] sm:$0xff]
        %v1074 = vld [vmem:[%s1042 + $0xf8] sm:$0xff]
        %v1075 = vld [vmem:[%s1042 + $0x100] sm:$0xff]
        %v1076 = vld [vmem:[%s1042 + $0x108] sm:$0xff]
        %v1077 = vld [vmem:[%s1042 + $0x110] sm:$0xff]
        %v1078 = vld [vmem:[%s1042 + $0x118] sm:$0xff]
        %v1079 = vld [vmem:[%s1042 + $0x120] sm:$0xff]
        %v1080 = vld [vmem:[%s1042 + $0x128] sm:$0xff]
        %v1081 = vld [vmem:[%s1042 + $0x130] sm:$0xff]
        %v1082 = vld [vmem:[%s1042 + $0x138] sm:$0xff]
        %v1083 = vld [vmem:[%s1042 + $0x140] sm:$0xff]
        %v1084 = vld [vmem:[%s1042 + $0x148] sm:$0xff]
        %v1085 = vld [vmem:[%s1042 + $0x150] sm:$0xff]
        %v1086 = vld [vmem:[%s1042 + $0x158] sm:$0xff]
        %v1087 = vld [vmem:[%s1042 + $0x160] sm:$0xff]
        %v1088 = vld [vmem:[%s1042 + $0x168] sm:$0xff]
        %v1089 = vld [vmem:[%s1042 + $0x170] sm:$0xff]
        %v1090 = vld [vmem:[%s1042 + $0x178] sm:$0xff]
        %v1091 = vld [vmem:[%s1042 + $0x180] sm:$0xff]
        %v1092 = vld [vmem:[%s1042 + $0x188] sm:$0xff]
        %v1093 = vld [vmem:[%s1042 + $0x190] sm:$0xff]
        %v1094 = vld [vmem:[%s1042 + $0x198] sm:$0xff]
        %v1095 = vld [vmem:[%s1042 + $0x1a0] sm:$0xff]
        %v1096 = vld [vmem:[%s1042 + $0x1a8] sm:$0xff]
        %v1097 = vld [vmem:[%s1042 + $0x1b0] sm:$0xff]
        %v1098 = vld [vmem:[%s1042 + $0x1b8] sm:$0xff]
        %v1099 = vld [vmem:[%s1042 + $0x1c0] sm:$0xff]
        %v1100 = vld [vmem:[%s1042 + $0x1c8] sm:$0xff]
        %v1101 = vld [vmem:[%s1042 + $0x1d0] sm:$0xff]
        %v1102 = vld [vmem:[%s1042 + $0x1d8] sm:$0xff]
        %v1103 = vld [vmem:[%s1042 + $0x1e0] sm:$0xff]
        %v1104 = vld [vmem:[%s1042 + $0x1e8] sm:$0xff]
        %v1105 = vld [vmem:[%s1042 + $0x1f0] sm:$0xff]
        %v1106 = vld [vmem:[%s1042 + $0x1f8] sm:$0xff]
        %s1107 = scalar_lea.vmem [#allocation4], 1024
        %v1108 = vld [vmem:[%s1107] sm:$0xff]
        %v1109 = vld [vmem:[%s1107 + $0x8] sm:$0xff]
        %v1110 = vld [vmem:[%s1107 + $0x10] sm:$0xff]
        %v1111 = vld [vmem:[%s1107 + $0x18] sm:$0xff]
        %v1112 = vld [vmem:[%s1107 + $0x20] sm:$0xff]
        %v1113 = vld [vmem:[%s1107 + $0x28] sm:$0xff]
        %v1114 = vld [vmem:[%s1107 + $0x30] sm:$0xff]
        %v1115 = vld [vmem:[%s1107 + $0x38] sm:$0xff]
        %v1116 = vld [vmem:[%s1107 + $0x40] sm:$0xff]
        %v1117 = vld [vmem:[%s1107 + $0x48] sm:$0xff]
        %v1118 = vld [vmem:[%s1107 + $0x50] sm:$0xff]
        %v1119 = vld [vmem:[%s1107 + $0x58] sm:$0xff]
        %v1120 = vld [vmem:[%s1107 + $0x60] sm:$0xff]
        %v1121 = vld [vmem:[%s1107 + $0x68] sm:$0xff]
        %v1122 = vld [vmem:[%s1107 + $0x70] sm:$0xff]
        %v1123 = vld [vmem:[%s1107 + $0x78] sm:$0xff]
        %v1124 = vld [vmem:[%s1107 + $0x80] sm:$0xff]
        %v1125 = vld [vmem:[%s1107 + $0x88] sm:$0xff]
        %v1126 = vld [vmem:[%s1107 + $0x90] sm:$0xff]
        %v1127 = vld [vmem:[%s1107 + $0x98] sm:$0xff]
        %v1128 = vld [vmem:[%s1107 + $0xa0] sm:$0xff]
        %v1129 = vld [vmem:[%s1107 + $0xa8] sm:$0xff]
        %v1130 = vld [vmem:[%s1107 + $0xb0] sm:$0xff]
        %v1131 = vld [vmem:[%s1107 + $0xb8] sm:$0xff]
        %v1132 = vld [vmem:[%s1107 + $0xc0] sm:$0xff]
        %v1133 = vld [vmem:[%s1107 + $0xc8] sm:$0xff]
        %v1134 = vld [vmem:[%s1107 + $0xd0] sm:$0xff]
        %v1135 = vld [vmem:[%s1107 + $0xd8] sm:$0xff]
        %v1136 = vld [vmem:[%s1107 + $0xe0] sm:$0xff]
        %v1137 = vld [vmem:[%s1107 + $0xe8] sm:$0xff]
        %v1138 = vld [vmem:[%s1107 + $0xf0] sm:$0xff]
        %v1139 = vld [vmem:[%s1107 + $0xf8] sm:$0xff]
        %v1140 = vld [vmem:[%s1107 + $0x100] sm:$0xff]
        %v1141 = vld [vmem:[%s1107 + $0x108] sm:$0xff]
        %v1142 = vld [vmem:[%s1107 + $0x110] sm:$0xff]
        %v1143 = vld [vmem:[%s1107 + $0x118] sm:$0xff]
        %v1144 = vld [vmem:[%s1107 + $0x120] sm:$0xff]
        %v1145 = vld [vmem:[%s1107 + $0x128] sm:$0xff]
        %v1146 = vld [vmem:[%s1107 + $0x130] sm:$0xff]
        %v1147 = vld [vmem:[%s1107 + $0x138] sm:$0xff]
        %v1148 = vld [vmem:[%s1107 + $0x140] sm:$0xff]
        %v1149 = vld [vmem:[%s1107 + $0x148] sm:$0xff]
        %v1150 = vld [vmem:[%s1107 + $0x150] sm:$0xff]
        %v1151 = vld [vmem:[%s1107 + $0x158] sm:$0xff]
        %v1152 = vld [vmem:[%s1107 + $0x160] sm:$0xff]
        %v1153 = vld [vmem:[%s1107 + $0x168] sm:$0xff]
        %v1154 = vld [vmem:[%s1107 + $0x170] sm:$0xff]
        %v1155 = vld [vmem:[%s1107 + $0x178] sm:$0xff]
        %v1156 = vld [vmem:[%s1107 + $0x180] sm:$0xff]
        %v1157 = vld [vmem:[%s1107 + $0x188] sm:$0xff]
        %v1158 = vld [vmem:[%s1107 + $0x190] sm:$0xff]
        %v1159 = vld [vmem:[%s1107 + $0x198] sm:$0xff]
        %v1160 = vld [vmem:[%s1107 + $0x1a0] sm:$0xff]
        %v1161 = vld [vmem:[%s1107 + $0x1a8] sm:$0xff]
        %v1162 = vld [vmem:[%s1107 + $0x1b0] sm:$0xff]
        %v1163 = vld [vmem:[%s1107 + $0x1b8] sm:$0xff]
        %v1164 = vld [vmem:[%s1107 + $0x1c0] sm:$0xff]
        %v1165 = vld [vmem:[%s1107 + $0x1c8] sm:$0xff]
        %v1166 = vld [vmem:[%s1107 + $0x1d0] sm:$0xff]
        %v1167 = vld [vmem:[%s1107 + $0x1d8] sm:$0xff]
        %v1168 = vld [vmem:[%s1107 + $0x1e0] sm:$0xff]
        %v1169 = vld [vmem:[%s1107 + $0x1e8] sm:$0xff]
        %v1170 = vld [vmem:[%s1107 + $0x1f0] sm:$0xff]
        %v1171 = vld [vmem:[%s1107 + $0x1f8] sm:$0xff]
        %v1172 = vld [vmem:[#allocation7] sm:$0xff]
        %v1173 = vld [vmem:[#allocation7 + $0x8] sm:$0xff]
        %v1174 = vld [vmem:[#allocation7 + $0x10] sm:$0xff]
        %v1175 = vld [vmem:[#allocation7 + $0x18] sm:$0xff]
        %v1176 = vld [vmem:[#allocation7 + $0x20] sm:$0xff]
        %v1177 = vld [vmem:[#allocation7 + $0x28] sm:$0xff]
        %v1178 = vld [vmem:[#allocation7 + $0x30] sm:$0xff]
        %v1179 = vld [vmem:[#allocation7 + $0x38] sm:$0xff]
        %v1180 = vld [vmem:[#allocation7 + $0x40] sm:$0xff]
        %v1181 = vld [vmem:[#allocation7 + $0x48] sm:$0xff]
        %v1182 = vld [vmem:[#allocation7 + $0x50] sm:$0xff]
        %v1183 = vld [vmem:[#allocation7 + $0x58] sm:$0xff]
        %v1184 = vld [vmem:[#allocation7 + $0x60] sm:$0xff]
        %v1185 = vld [vmem:[#allocation7 + $0x68] sm:$0xff]
        %v1186 = vld [vmem:[#allocation7 + $0x70] sm:$0xff]
        %v1187 = vld [vmem:[#allocation7 + $0x78] sm:$0xff]
        %v1188 = vld [vmem:[#allocation7 + $0x80] sm:$0xff]
        %v1189 = vld [vmem:[#allocation7 + $0x88] sm:$0xff]
        %v1190 = vld [vmem:[#allocation7 + $0x90] sm:$0xff]
        %v1191 = vld [vmem:[#allocation7 + $0x98] sm:$0xff]
        %v1192 = vld [vmem:[#allocation7 + $0xa0] sm:$0xff]
        %v1193 = vld [vmem:[#allocation7 + $0xa8] sm:$0xff]
        %v1194 = vld [vmem:[#allocation7 + $0xb0] sm:$0xff]
        %v1195 = vld [vmem:[#allocation7 + $0xb8] sm:$0xff]
        %v1196 = vld [vmem:[#allocation7 + $0xc0] sm:$0xff]
        %v1197 = vld [vmem:[#allocation7 + $0xc8] sm:$0xff]
        %v1198 = vld [vmem:[#allocation7 + $0xd0] sm:$0xff]
        %v1199 = vld [vmem:[#allocation7 + $0xd8] sm:$0xff]
        %v1200 = vld [vmem:[#allocation7 + $0xe0] sm:$0xff]
        %v1201 = vld [vmem:[#allocation7 + $0xe8] sm:$0xff]
        %v1202 = vld [vmem:[#allocation7 + $0xf0] sm:$0xff]
        %v1203 = vld [vmem:[#allocation7 + $0xf8] sm:$0xff]
        %v1204 = vld [vmem:[#allocation7 + $0x100] sm:$0xff]
        %v1205 = vld [vmem:[#allocation7 + $0x108] sm:$0xff]
        %v1206 = vld [vmem:[#allocation7 + $0x110] sm:$0xff]
        %v1207 = vld [vmem:[#allocation7 + $0x118] sm:$0xff]
        %v1208 = vld [vmem:[#allocation7 + $0x120] sm:$0xff]
        %v1209 = vld [vmem:[#allocation7 + $0x128] sm:$0xff]
        %v1210 = vld [vmem:[#allocation7 + $0x130] sm:$0xff]
        %v1211 = vld [vmem:[#allocation7 + $0x138] sm:$0xff]
        %v1212 = vld [vmem:[#allocation7 + $0x140] sm:$0xff]
        %v1213 = vld [vmem:[#allocation7 + $0x148] sm:$0xff]
        %v1214 = vld [vmem:[#allocation7 + $0x150] sm:$0xff]
        %v1215 = vld [vmem:[#allocation7 + $0x158] sm:$0xff]
        %v1216 = vld [vmem:[#allocation7 + $0x160] sm:$0xff]
        %v1217 = vld [vmem:[#allocation7 + $0x168] sm:$0xff]
        %v1218 = vld [vmem:[#allocation7 + $0x170] sm:$0xff]
        %v1219 = vld [vmem:[#allocation7 + $0x178] sm:$0xff]
        %v1220 = vld [vmem:[#allocation7 + $0x180] sm:$0xff]
        %v1221 = vld [vmem:[#allocation7 + $0x188] sm:$0xff]
        %v1222 = vld [vmem:[#allocation7 + $0x190] sm:$0xff]
        %v1223 = vld [vmem:[#allocation7 + $0x198] sm:$0xff]
        %v1224 = vld [vmem:[#allocation7 + $0x1a0] sm:$0xff]
        %v1225 = vld [vmem:[#allocation7 + $0x1a8] sm:$0xff]
        %v1226 = vld [vmem:[#allocation7 + $0x1b0] sm:$0xff]
        %v1227 = vld [vmem:[#allocation7 + $0x1b8] sm:$0xff]
        %v1228 = vld [vmem:[#allocation7 + $0x1c0] sm:$0xff]
        %v1229 = vld [vmem:[#allocation7 + $0x1c8] sm:$0xff]
        %v1230 = vld [vmem:[#allocation7 + $0x1d0] sm:$0xff]
        %v1231 = vld [vmem:[#allocation7 + $0x1d8] sm:$0xff]
        %v1232 = vld [vmem:[#allocation7 + $0x1e0] sm:$0xff]
        %v1233 = vld [vmem:[#allocation7 + $0x1e8] sm:$0xff]
        %v1234 = vld [vmem:[#allocation7 + $0x1f0] sm:$0xff]
        %v1235 = vld [vmem:[#allocation7 + $0x1f8] sm:$0xff]
        %s1236 = scalar_lea.vmem [#allocation7], 512
        %v1237 = vld [vmem:[%s1236] sm:$0xff]
        %v1238 = vld [vmem:[%s1236 + $0x8] sm:$0xff]
        %v1239 = vld [vmem:[%s1236 + $0x10] sm:$0xff]
        %v1240 = vld [vmem:[%s1236 + $0x18] sm:$0xff]
        %v1241 = vld [vmem:[%s1236 + $0x20] sm:$0xff]
        %v1242 = vld [vmem:[%s1236 + $0x28] sm:$0xff]
        %v1243 = vld [vmem:[%s1236 + $0x30] sm:$0xff]
        %v1244 = vld [vmem:[%s1236 + $0x38] sm:$0xff]
        %v1245 = vld [vmem:[%s1236 + $0x40] sm:$0xff]
        %v1246 = vld [vmem:[%s1236 + $0x48] sm:$0xff]
        %v1247 = vld [vmem:[%s1236 + $0x50] sm:$0xff]
        %v1248 = vld [vmem:[%s1236 + $0x58] sm:$0xff]
        %v1249 = vld [vmem:[%s1236 + $0x60] sm:$0xff]
        %v1250 = vld [vmem:[%s1236 + $0x68] sm:$0xff]
        %v1251 = vld [vmem:[%s1236 + $0x70] sm:$0xff]
        %v1252 = vld [vmem:[%s1236 + $0x78] sm:$0xff]
        %v1253 = vld [vmem:[%s1236 + $0x80] sm:$0xff]
        %v1254 = vld [vmem:[%s1236 + $0x88] sm:$0xff]
        %v1255 = vld [vmem:[%s1236 + $0x90] sm:$0xff]
        %v1256 = vld [vmem:[%s1236 + $0x98] sm:$0xff]
        %v1257 = vld [vmem:[%s1236 + $0xa0] sm:$0xff]
        %v1258 = vld [vmem:[%s1236 + $0xa8] sm:$0xff]
        %v1259 = vld [vmem:[%s1236 + $0xb0] sm:$0xff]
        %v1260 = vld [vmem:[%s1236 + $0xb8] sm:$0xff]
        %v1261 = vld [vmem:[%s1236 + $0xc0] sm:$0xff]
        %v1262 = vld [vmem:[%s1236 + $0xc8] sm:$0xff]
        %v1263 = vld [vmem:[%s1236 + $0xd0] sm:$0xff]
        %v1264 = vld [vmem:[%s1236 + $0xd8] sm:$0xff]
        %v1265 = vld [vmem:[%s1236 + $0xe0] sm:$0xff]
        %v1266 = vld [vmem:[%s1236 + $0xe8] sm:$0xff]
        %v1267 = vld [vmem:[%s1236 + $0xf0] sm:$0xff]
        %v1268 = vld [vmem:[%s1236 + $0xf8] sm:$0xff]
        %v1269 = vld [vmem:[%s1236 + $0x100] sm:$0xff]
        %v1270 = vld [vmem:[%s1236 + $0x108] sm:$0xff]
        %v1271 = vld [vmem:[%s1236 + $0x110] sm:$0xff]
        %v1272 = vld [vmem:[%s1236 + $0x118] sm:$0xff]
        %v1273 = vld [vmem:[%s1236 + $0x120] sm:$0xff]
        %v1274 = vld [vmem:[%s1236 + $0x128] sm:$0xff]
        %v1275 = vld [vmem:[%s1236 + $0x130] sm:$0xff]
        %v1276 = vld [vmem:[%s1236 + $0x138] sm:$0xff]
        %v1277 = vld [vmem:[%s1236 + $0x140] sm:$0xff]
        %v1278 = vld [vmem:[%s1236 + $0x148] sm:$0xff]
        %v1279 = vld [vmem:[%s1236 + $0x150] sm:$0xff]
        %v1280 = vld [vmem:[%s1236 + $0x158] sm:$0xff]
        %v1281 = vld [vmem:[%s1236 + $0x160] sm:$0xff]
        %v1282 = vld [vmem:[%s1236 + $0x168] sm:$0xff]
        %v1283 = vld [vmem:[%s1236 + $0x170] sm:$0xff]
        %v1284 = vld [vmem:[%s1236 + $0x178] sm:$0xff]
        %v1285 = vld [vmem:[%s1236 + $0x180] sm:$0xff]
        %v1286 = vld [vmem:[%s1236 + $0x188] sm:$0xff]
        %v1287 = vld [vmem:[%s1236 + $0x190] sm:$0xff]
        %v1288 = vld [vmem:[%s1236 + $0x198] sm:$0xff]
        %v1289 = vld [vmem:[%s1236 + $0x1a0] sm:$0xff]
        %v1290 = vld [vmem:[%s1236 + $0x1a8] sm:$0xff]
        %v1291 = vld [vmem:[%s1236 + $0x1b0] sm:$0xff]
        %v1292 = vld [vmem:[%s1236 + $0x1b8] sm:$0xff]
        %v1293 = vld [vmem:[%s1236 + $0x1c0] sm:$0xff]
        %v1294 = vld [vmem:[%s1236 + $0x1c8] sm:$0xff]
        %v1295 = vld [vmem:[%s1236 + $0x1d0] sm:$0xff]
        %v1296 = vld [vmem:[%s1236 + $0x1d8] sm:$0xff]
        %v1297 = vld [vmem:[%s1236 + $0x1e0] sm:$0xff]
        %v1298 = vld [vmem:[%s1236 + $0x1e8] sm:$0xff]
        %v1299 = vld [vmem:[%s1236 + $0x1f0] sm:$0xff]
        %v1300 = vld [vmem:[%s1236 + $0x1f8] sm:$0xff]
        %s1301 = scalar_lea.vmem [#allocation7], 1024
        %v1302 = vld [vmem:[%s1301] sm:$0xff]
        %v1303 = vld [vmem:[%s1301 + $0x8] sm:$0xff]
        %v1304 = vld [vmem:[%s1301 + $0x10] sm:$0xff]
        %v1305 = vld [vmem:[%s1301 + $0x18] sm:$0xff]
        %v1306 = vld [vmem:[%s1301 + $0x20] sm:$0xff]
        %v1307 = vld [vmem:[%s1301 + $0x28] sm:$0xff]
        %v1308 = vld [vmem:[%s1301 + $0x30] sm:$0xff]
        %v1309 = vld [vmem:[%s1301 + $0x38] sm:$0xff]
        %v1310 = vld [vmem:[%s1301 + $0x40] sm:$0xff]
        %v1311 = vld [vmem:[%s1301 + $0x48] sm:$0xff]
        %v1312 = vld [vmem:[%s1301 + $0x50] sm:$0xff]
        %v1313 = vld [vmem:[%s1301 + $0x58] sm:$0xff]
        %v1314 = vld [vmem:[%s1301 + $0x60] sm:$0xff]
        %v1315 = vld [vmem:[%s1301 + $0x68] sm:$0xff]
        %v1316 = vld [vmem:[%s1301 + $0x70] sm:$0xff]
        %v1317 = vld [vmem:[%s1301 + $0x78] sm:$0xff]
        %v1318 = vld [vmem:[%s1301 + $0x80] sm:$0xff]
        %v1319 = vld [vmem:[%s1301 + $0x88] sm:$0xff]
        %v1320 = vld [vmem:[%s1301 + $0x90] sm:$0xff]
        %v1321 = vld [vmem:[%s1301 + $0x98] sm:$0xff]
        %v1322 = vld [vmem:[%s1301 + $0xa0] sm:$0xff]
        %v1323 = vld [vmem:[%s1301 + $0xa8] sm:$0xff]
        %v1324 = vld [vmem:[%s1301 + $0xb0] sm:$0xff]
        %v1325 = vld [vmem:[%s1301 + $0xb8] sm:$0xff]
        %v1326 = vld [vmem:[%s1301 + $0xc0] sm:$0xff]
        %v1327 = vld [vmem:[%s1301 + $0xc8] sm:$0xff]
        %v1328 = vld [vmem:[%s1301 + $0xd0] sm:$0xff]
        %v1329 = vld [vmem:[%s1301 + $0xd8] sm:$0xff]
        %v1330 = vld [vmem:[%s1301 + $0xe0] sm:$0xff]
        %v1331 = vld [vmem:[%s1301 + $0xe8] sm:$0xff]
        %v1332 = vld [vmem:[%s1301 + $0xf0] sm:$0xff]
        %v1333 = vld [vmem:[%s1301 + $0xf8] sm:$0xff]
        %v1334 = vld [vmem:[%s1301 + $0x100] sm:$0xff]
        %v1335 = vld [vmem:[%s1301 + $0x108] sm:$0xff]
        %v1336 = vld [vmem:[%s1301 + $0x110] sm:$0xff]
        %v1337 = vld [vmem:[%s1301 + $0x118] sm:$0xff]
        %v1338 = vld [vmem:[%s1301 + $0x120] sm:$0xff]
        %v1339 = vld [vmem:[%s1301 + $0x128] sm:$0xff]
        %v1340 = vld [vmem:[%s1301 + $0x130] sm:$0xff]
        %v1341 = vld [vmem:[%s1301 + $0x138] sm:$0xff]
        %v1342 = vld [vmem:[%s1301 + $0x140] sm:$0xff]
        %v1343 = vld [vmem:[%s1301 + $0x148] sm:$0xff]
        %v1344 = vld [vmem:[%s1301 + $0x150] sm:$0xff]
        %v1345 = vld [vmem:[%s1301 + $0x158] sm:$0xff]
        %v1346 = vld [vmem:[%s1301 + $0x160] sm:$0xff]
        %v1347 = vld [vmem:[%s1301 + $0x168] sm:$0xff]
        %v1348 = vld [vmem:[%s1301 + $0x170] sm:$0xff]
        %v1349 = vld [vmem:[%s1301 + $0x178] sm:$0xff]
        %v1350 = vld [vmem:[%s1301 + $0x180] sm:$0xff]
        %v1351 = vld [vmem:[%s1301 + $0x188] sm:$0xff]
        %v1352 = vld [vmem:[%s1301 + $0x190] sm:$0xff]
        %v1353 = vld [vmem:[%s1301 + $0x198] sm:$0xff]
        %v1354 = vld [vmem:[%s1301 + $0x1a0] sm:$0xff]
        %v1355 = vld [vmem:[%s1301 + $0x1a8] sm:$0xff]
        %v1356 = vld [vmem:[%s1301 + $0x1b0] sm:$0xff]
        %v1357 = vld [vmem:[%s1301 + $0x1b8] sm:$0xff]
        %v1358 = vld [vmem:[%s1301 + $0x1c0] sm:$0xff]
        %v1359 = vld [vmem:[%s1301 + $0x1c8] sm:$0xff]
        %v1360 = vld [vmem:[%s1301 + $0x1d0] sm:$0xff]
        %v1361 = vld [vmem:[%s1301 + $0x1d8] sm:$0xff]
        %v1362 = vld [vmem:[%s1301 + $0x1e0] sm:$0xff]
        %v1363 = vld [vmem:[%s1301 + $0x1e8] sm:$0xff]
        %v1364 = vld [vmem:[%s1301 + $0x1f0] sm:$0xff]
        %v1365 = vld [vmem:[%s1301 + $0x1f8] sm:$0xff]
        %v1366 = vld [vmem:[#allocation9] sm:$0xff]
        %v1367 = vld [vmem:[#allocation9 + $0x8] sm:$0xff]
        %v1368 = vld [vmem:[#allocation9 + $0x10] sm:$0xff]
        %v1369 = vld [vmem:[#allocation9 + $0x18] sm:$0xff]
        %v1370 = vld [vmem:[#allocation9 + $0x20] sm:$0xff]
        %v1371 = vld [vmem:[#allocation9 + $0x28] sm:$0xff]
        %v1372 = vld [vmem:[#allocation9 + $0x30] sm:$0xff]
        %v1373 = vld [vmem:[#allocation9 + $0x38] sm:$0xff]
        %v1374 = vld [vmem:[#allocation9 + $0x40] sm:$0xff]
        %v1375 = vld [vmem:[#allocation9 + $0x48] sm:$0xff]
        %v1376 = vld [vmem:[#allocation9 + $0x50] sm:$0xff]
        %v1377 = vld [vmem:[#allocation9 + $0x58] sm:$0xff]
        %v1378 = vld [vmem:[#allocation9 + $0x60] sm:$0xff]
        %v1379 = vld [vmem:[#allocation9 + $0x68] sm:$0xff]
        %v1380 = vld [vmem:[#allocation9 + $0x70] sm:$0xff]
        %v1381 = vld [vmem:[#allocation9 + $0x78] sm:$0xff]
        %s1382 = scalar_lea.vmem [#allocation9], 128
        %v1383 = vld [vmem:[%s1382] sm:$0xff]
        %v1384 = vld [vmem:[%s1382 + $0x8] sm:$0xff]
        %v1385 = vld [vmem:[%s1382 + $0x10] sm:$0xff]
        %v1386 = vld [vmem:[%s1382 + $0x18] sm:$0xff]
        %v1387 = vld [vmem:[%s1382 + $0x20] sm:$0xff]
        %v1388 = vld [vmem:[%s1382 + $0x28] sm:$0xff]
        %v1389 = vld [vmem:[%s1382 + $0x30] sm:$0xff]
        %v1390 = vld [vmem:[%s1382 + $0x38] sm:$0xff]
        %v1391 = vld [vmem:[%s1382 + $0x40] sm:$0xff]
        %v1392 = vld [vmem:[%s1382 + $0x48] sm:$0xff]
        %v1393 = vld [vmem:[%s1382 + $0x50] sm:$0xff]
        %v1394 = vld [vmem:[%s1382 + $0x58] sm:$0xff]
        %v1395 = vld [vmem:[%s1382 + $0x60] sm:$0xff]
        %v1396 = vld [vmem:[%s1382 + $0x68] sm:$0xff]
        %v1397 = vld [vmem:[%s1382 + $0x70] sm:$0xff]
        %v1398 = vld [vmem:[%s1382 + $0x78] sm:$0xff]
        %s1399 = scalar_lea.vmem [#allocation9], 256
        %v1400 = vld [vmem:[%s1399] sm:$0xff]
        %v1401 = vld [vmem:[%s1399 + $0x8] sm:$0xff]
        %v1402 = vld [vmem:[%s1399 + $0x10] sm:$0xff]
        %v1403 = vld [vmem:[%s1399 + $0x18] sm:$0xff]
        %v1404 = vld [vmem:[%s1399 + $0x20] sm:$0xff]
        %v1405 = vld [vmem:[%s1399 + $0x28] sm:$0xff]
        %v1406 = vld [vmem:[%s1399 + $0x30] sm:$0xff]
        %v1407 = vld [vmem:[%s1399 + $0x38] sm:$0xff]
        %v1408 = vld [vmem:[%s1399 + $0x40] sm:$0xff]
        %v1409 = vld [vmem:[%s1399 + $0x48] sm:$0xff]
        %v1410 = vld [vmem:[%s1399 + $0x50] sm:$0xff]
        %v1411 = vld [vmem:[%s1399 + $0x58] sm:$0xff]
        %v1412 = vld [vmem:[%s1399 + $0x60] sm:$0xff]
        %v1413 = vld [vmem:[%s1399 + $0x68] sm:$0xff]
        %v1414 = vld [vmem:[%s1399 + $0x70] sm:$0xff]
        %v1415 = vld [vmem:[%s1399 + $0x78] sm:$0xff]
        %v1416 = vld [vmem:[#allocation10] sm:$0xff]
        %v1417 = vld [vmem:[#allocation10 + $0x8] sm:$0xff]
        %v1418 = vld [vmem:[#allocation10 + $0x10] sm:$0xff]
        %v1419 = vld [vmem:[#allocation10 + $0x18] sm:$0xff]
        %s1420 = scalar_lea.vmem [#allocation10], 32
        %v1421 = vld [vmem:[%s1420] sm:$0xff]
        %v1422 = vld [vmem:[%s1420 + $0x8] sm:$0xff]
        %v1423 = vld [vmem:[%s1420 + $0x10] sm:$0xff]
        %v1424 = vld [vmem:[%s1420 + $0x18] sm:$0xff]
        %v1425 = vld [vmem:[%s7] sm:$0xff]
        %s1426 = scalar_lea.vmem %s7, 8
        %v1427 = vld [vmem:[%s1426] sm:$0xff]
        %v1428 = vld [vmem:[%s975] sm:$0xff]
        %v1429 = vld [vmem:[%s975 + $0x8] sm:$0xff]
        %v1430 = vld [vmem:[%s975 + $0x10] sm:$0xff]
        %v1431 = vld [vmem:[%s975 + $0x18] sm:$0xff]
        %1432 = vmatpush.msra.mxu0 %v1008
        %1433 = vmatpush.msra.mxu0 %v1006
        %1434 = vmatpush.msra.mxu0 %v1004
        %1435 = vmatpush.msra.mxu0 %v1002
        %1436 = vmatpush.msra.mxu0 %v1000
        %1437 = vmatpush.msra.mxu0 %v998
        %1438 = vmatpush.msra.mxu0 %v996
        %1439 = vmatpush.msra.mxu0 %v994
        %1440 = vmatpush.msra.mxu0 %v992
        %1441 = vmatpush.msra.mxu0 %v990
        %1442 = vmatpush.msra.mxu0 %v988
        %1443 = vmatpush.msra.mxu0 %v986
        %1444 = vmatpush.msra.mxu0 %v984
        %1445 = vmatpush.msra.mxu0 %v982
        %1446 = vmatpush.msra.mxu0 %v980
        %1447 = vmatpush.msra.mxu0 %v978
        %1448 = vmatmul.f32.gmra.mxu0 %v1428
        %v1449 = vpop.f32.mrf.mxu0
        %v1450 = vadd.f32 0.0, %v1449
        %1451 = vmatmul.f32.gmra.mxu0 %v1430
        %v1452 = vpop.f32.mrf.mxu0
        %v1453 = vadd.f32 0.0, %v1452
        %1454 = vdwg.mxu0
        %1455 = vmatpush.msra.mxu0 %v1040
        %1456 = vmatpush.msra.mxu0 %v1038
        %1457 = vmatpush.msra.mxu0 %v1036
        %1458 = vmatpush.msra.mxu0 %v1034
        %1459 = vmatpush.msra.mxu0 %v1032
        %1460 = vmatpush.msra.mxu0 %v1030
        %1461 = vmatpush.msra.mxu0 %v1028
        %1462 = vmatpush.msra.mxu0 %v1026
        %1463 = vmatpush.msra.mxu0 %v1024
        %1464 = vmatpush.msra.mxu0 %v1022
        %1465 = vmatpush.msra.mxu0 %v1020
        %1466 = vmatpush.msra.mxu0 %v1018
        %1467 = vmatpush.msra.mxu0 %v1016
        %1468 = vmatpush.msra.mxu0 %v1014
        %1469 = vmatpush.msra.mxu0 %v1012
        %1470 = vmatpush.msra.mxu0 %v1010
        %1471 = vmatmul.f32.gmra.mxu0 %v1429
        %v1472 = vpop.f32.mrf.mxu0
        %v1473 = vadd.f32 %v1450, %v1472
        %1474 = vmatmul.f32.gmra.mxu0 %v1431
        %v1475 = vpop.f32.mrf.mxu0
        %v1476 = vadd.f32 %v1453, %v1475
        %1477 = vdwg.mxu0
        %1478 = vmatpush.msra.mxu0 %v1009
        %1479 = vmatpush.msra.mxu0 %v1007
        %1480 = vmatpush.msra.mxu0 %v1005
        %1481 = vmatpush.msra.mxu0 %v1003
        %1482 = vmatpush.msra.mxu0 %v1001
        %1483 = vmatpush.msra.mxu0 %v999
        %1484 = vmatpush.msra.mxu0 %v997
        %1485 = vmatpush.msra.mxu0 %v995
        %1486 = vmatpush.msra.mxu0 %v993
        %1487 = vmatpush.msra.mxu0 %v991
        %1488 = vmatpush.msra.mxu0 %v989
        %1489 = vmatpush.msra.mxu0 %v987
        %1490 = vmatpush.msra.mxu0 %v985
        %1491 = vmatpush.msra.mxu0 %v983
        %1492 = vmatpush.msra.mxu0 %v981
        %1493 = vmatpush.msra.mxu0 %v979
        %1494 = vmatmul.f32.gmra.mxu0 %v1428
        %v1495 = vpop.f32.mrf.mxu0
        %v1496 = vadd.f32 0.0, %v1495
        %1497 = vmatmul.f32.gmra.mxu0 %v1430
        %v1498 = vpop.f32.mrf.mxu0
        %v1499 = vadd.f32 0.0, %v1498
        %1500 = vdwg.mxu0
        %1501 = vmatpush.msra.mxu0 %v1041
        %1502 = vmatpush.msra.mxu0 %v1039
        %1503 = vmatpush.msra.mxu0 %v1037
        %1504 = vmatpush.msra.mxu0 %v1035
        %1505 = vmatpush.msra.mxu0 %v1033
        %1506 = vmatpush.msra.mxu0 %v1031
        %1507 = vmatpush.msra.mxu0 %v1029
        %1508 = vmatpush.msra.mxu0 %v1027
        %1509 = vmatpush.msra.mxu0 %v1025
        %1510 = vmatpush.msra.mxu0 %v1023
        %1511 = vmatpush.msra.mxu0 %v1021
        %1512 = vmatpush.msra.mxu0 %v1019
        %1513 = vmatpush.msra.mxu0 %v1017
        %1514 = vmatpush.msra.mxu0 %v1015
        %1515 = vmatpush.msra.mxu0 %v1013
        %1516 = vmatpush.msra.mxu0 %v1011
        %1517 = vmatmul.f32.gmra.mxu0 %v1429
        %v1518 = vpop.f32.mrf.mxu0
        %v1519 = vadd.f32 %v1496, %v1518
        %1520 = vmatmul.f32.gmra.mxu0 %v1431
        %v1521 = vpop.f32.mrf.mxu0
        %v1522 = vadd.f32 %v1499, %v1521
        %1523 = vdwg.mxu0
        %1524 = vmatpush.msra.mxu0 %v1138
        %1525 = vmatpush.msra.mxu0 %v1136
        %1526 = vmatpush.msra.mxu0 %v1134
        %1527 = vmatpush.msra.mxu0 %v1132
        %1528 = vmatpush.msra.mxu0 %v1130
        %1529 = vmatpush.msra.mxu0 %v1128
        %1530 = vmatpush.msra.mxu0 %v1126
        %1531 = vmatpush.msra.mxu0 %v1124
        %1532 = vmatpush.msra.mxu0 %v1122
        %1533 = vmatpush.msra.mxu0 %v1120
        %1534 = vmatpush.msra.mxu0 %v1118
        %1535 = vmatpush.msra.mxu0 %v1116
        %1536 = vmatpush.msra.mxu0 %v1114
        %1537 = vmatpush.msra.mxu0 %v1112
        %1538 = vmatpush.msra.mxu0 %v1110
        %1539 = vmatpush.msra.mxu0 %v1108
        %1540 = vmatmul.f32.gmra.mxu0 %v1428
        %v1541 = vpop.f32.mrf.mxu0
        %v1542 = vadd.f32 0.0, %v1541
        %1543 = vmatmul.f32.gmra.mxu0 %v1430
        %v1544 = vpop.f32.mrf.mxu0
        %v1545 = vadd.f32 0.0, %v1544
        %1546 = vdwg.mxu0
        %1547 = vmatpush.msra.mxu0 %v1170
        %1548 = vmatpush.msra.mxu0 %v1168
        %1549 = vmatpush.msra.mxu0 %v1166
        %1550 = vmatpush.msra.mxu0 %v1164
        %1551 = vmatpush.msra.mxu0 %v1162
        %1552 = vmatpush.msra.mxu0 %v1160
        %1553 = vmatpush.msra.mxu0 %v1158
        %1554 = vmatpush.msra.mxu0 %v1156
        %1555 = vmatpush.msra.mxu0 %v1154
        %1556 = vmatpush.msra.mxu0 %v1152
        %1557 = vmatpush.msra.mxu0 %v1150
        %1558 = vmatpush.msra.mxu0 %v1148
        %1559 = vmatpush.msra.mxu0 %v1146
        %1560 = vmatpush.msra.mxu0 %v1144
        %1561 = vmatpush.msra.mxu0 %v1142
        %1562 = vmatpush.msra.mxu0 %v1140
        %1563 = vmatmul.f32.gmra.mxu0 %v1429
        %v1564 = vpop.f32.mrf.mxu0
        %v1565 = vadd.f32 %v1542, %v1564
        %1566 = vmatmul.f32.gmra.mxu0 %v1431
        %v1567 = vpop.f32.mrf.mxu0
        %v1568 = vadd.f32 %v1545, %v1567
        %1569 = vdwg.mxu0
        %1570 = vmatpush.msra.mxu0 %v1139
        %1571 = vmatpush.msra.mxu0 %v1137
        %1572 = vmatpush.msra.mxu0 %v1135
        %1573 = vmatpush.msra.mxu0 %v1133
        %1574 = vmatpush.msra.mxu0 %v1131
        %1575 = vmatpush.msra.mxu0 %v1129
        %1576 = vmatpush.msra.mxu0 %v1127
        %1577 = vmatpush.msra.mxu0 %v1125
        %1578 = vmatpush.msra.mxu0 %v1123
        %1579 = vmatpush.msra.mxu0 %v1121
        %1580 = vmatpush.msra.mxu0 %v1119
        %1581 = vmatpush.msra.mxu0 %v1117
        %1582 = vmatpush.msra.mxu0 %v1115
        %1583 = vmatpush.msra.mxu0 %v1113
        %1584 = vmatpush.msra.mxu0 %v1111
        %1585 = vmatpush.msra.mxu0 %v1109
        %1586 = vmatmul.f32.gmra.mxu0 %v1428
        %v1587 = vpop.f32.mrf.mxu0
        %v1588 = vadd.f32 0.0, %v1587
        %1589 = vmatmul.f32.gmra.mxu0 %v1430
        %v1590 = vpop.f32.mrf.mxu0
        %v1591 = vadd.f32 0.0, %v1590
        %1592 = vdwg.mxu0
        %1593 = vmatpush.msra.mxu0 %v1171
        %1594 = vmatpush.msra.mxu0 %v1169
        %1595 = vmatpush.msra.mxu0 %v1167
        %1596 = vmatpush.msra.mxu0 %v1165
        %1597 = vmatpush.msra.mxu0 %v1163
        %1598 = vmatpush.msra.mxu0 %v1161
        %1599 = vmatpush.msra.mxu0 %v1159
        %1600 = vmatpush.msra.mxu0 %v1157
        %1601 = vmatpush.msra.mxu0 %v1155
        %1602 = vmatpush.msra.mxu0 %v1153
        %1603 = vmatpush.msra.mxu0 %v1151
        %1604 = vmatpush.msra.mxu0 %v1149
        %1605 = vmatpush.msra.mxu0 %v1147
        %1606 = vmatpush.msra.mxu0 %v1145
        %1607 = vmatpush.msra.mxu0 %v1143
        %1608 = vmatpush.msra.mxu0 %v1141
        %1609 = vmatmul.f32.gmra.mxu0 %v1429
        %v1610 = vpop.f32.mrf.mxu0
        %v1611 = vadd.f32 %v1588, %v1610
        %1612 = vmatmul.f32.gmra.mxu0 %v1431
        %v1613 = vpop.f32.mrf.mxu0
        %v1614 = vadd.f32 %v1591, %v1613
        %1615 = vdwg.mxu0
        %v1616 = vrot.slane %v1473, 7
        %v1617 = vrot.slane %v1519, 7
        %v1618 = vrot.slane %v1476, 7
        %v1619 = vrot.slane %v1522, 7
        %v1620 = vlaneseq
        %v1621 = vshrl.u32 %v1620, 7
        %vm1622 = vcmp.lt.s32.totalorder %v1621, 1
        %v1623 = vsel %vm1622, %v1616, %v1618
        %v1624 = vsel %vm1622, %v1617, %v1619
        %v1625 = vsel %vm1622, %v1618, %v1616
        %v1626 = vsel %vm1622, %v1619, %v1617
        %v1627 = vmul.f32 %v1416, %v1625
        %v1628 = vmul.f32 %v1417, %v1626
        %v1629 = vmul.f32 %v1418, %v1623
        %v1630 = vmul.f32 %v1419, %v1624
        %1631 = vmatpush.msra.mxu0 %v1073
        %1632 = vmatpush.msra.mxu0 %v1071
        %1633 = vmatpush.msra.mxu0 %v1069
        %1634 = vmatpush.msra.mxu0 %v1067
        %1635 = vmatpush.msra.mxu0 %v1065
        %1636 = vmatpush.msra.mxu0 %v1063
        %1637 = vmatpush.msra.mxu0 %v1061
        %1638 = vmatpush.msra.mxu0 %v1059
        %1639 = vmatpush.msra.mxu0 %v1057
        %1640 = vmatpush.msra.mxu0 %v1055
        %1641 = vmatpush.msra.mxu0 %v1053
        %1642 = vmatpush.msra.mxu0 %v1051
        %1643 = vmatpush.msra.mxu0 %v1049
        %1644 = vmatpush.msra.mxu0 %v1047
        %1645 = vmatpush.msra.mxu0 %v1045
        %1646 = vmatpush.msra.mxu0 %v1043
        %1647 = vmatmul.f32.gmra.mxu0 %v1428
        %v1648 = vpop.f32.mrf.mxu0
        %v1649 = vadd.f32 %v1627, %v1648
        %1650 = vmatmul.f32.gmra.mxu0 %v1430
        %v1651 = vpop.f32.mrf.mxu0
        %v1652 = vadd.f32 %v1629, %v1651
        %1653 = vdwg.mxu0
        %1654 = vmatpush.msra.mxu0 %v1105
        %1655 = vmatpush.msra.mxu0 %v1103
        %1656 = vmatpush.msra.mxu0 %v1101
        %1657 = vmatpush.msra.mxu0 %v1099
        %1658 = vmatpush.msra.mxu0 %v1097
        %1659 = vmatpush.msra.mxu0 %v1095
        %1660 = vmatpush.msra.mxu0 %v1093
        %1661 = vmatpush.msra.mxu0 %v1091
        %1662 = vmatpush.msra.mxu0 %v1089
        %1663 = vmatpush.msra.mxu0 %v1087
        %1664 = vmatpush.msra.mxu0 %v1085
        %1665 = vmatpush.msra.mxu0 %v1083
        %1666 = vmatpush.msra.mxu0 %v1081
        %1667 = vmatpush.msra.mxu0 %v1079
        %1668 = vmatpush.msra.mxu0 %v1077
        %1669 = vmatpush.msra.mxu0 %v1075
        %1670 = vmatmul.f32.gmra.mxu0 %v1429
        %v1671 = vpop.f32.mrf.mxu0
        %v1672 = vadd.f32 %v1649, %v1671
        %1673 = vmatmul.f32.gmra.mxu0 %v1431
        %v1674 = vpop.f32.mrf.mxu0
        %v1675 = vadd.f32 %v1652, %v1674
        %1676 = vdwg.mxu0
        %1677 = vmatpush.msra.mxu0 %v1074
        %1678 = vmatpush.msra.mxu0 %v1072
        %1679 = vmatpush.msra.mxu0 %v1070
        %1680 = vmatpush.msra.mxu0 %v1068
        %1681 = vmatpush.msra.mxu0 %v1066
        %1682 = vmatpush.msra.mxu0 %v1064
        %1683 = vmatpush.msra.mxu0 %v1062
        %1684 = vmatpush.msra.mxu0 %v1060
        %1685 = vmatpush.msra.mxu0 %v1058
        %1686 = vmatpush.msra.mxu0 %v1056
        %1687 = vmatpush.msra.mxu0 %v1054
        %1688 = vmatpush.msra.mxu0 %v1052
        %1689 = vmatpush.msra.mxu0 %v1050
        %1690 = vmatpush.msra.mxu0 %v1048
        %1691 = vmatpush.msra.mxu0 %v1046
        %1692 = vmatpush.msra.mxu0 %v1044
        %1693 = vmatmul.f32.gmra.mxu0 %v1428
        %v1694 = vpop.f32.mrf.mxu0
        %v1695 = vadd.f32 %v1628, %v1694
        %1696 = vmatmul.f32.gmra.mxu0 %v1430
        %v1697 = vpop.f32.mrf.mxu0
        %v1698 = vadd.f32 %v1630, %v1697
        %1699 = vdwg.mxu0
        %1700 = vmatpush.msra.mxu0 %v1106
        %1701 = vmatpush.msra.mxu0 %v1104
        %1702 = vmatpush.msra.mxu0 %v1102
        %1703 = vmatpush.msra.mxu0 %v1100
        %1704 = vmatpush.msra.mxu0 %v1098
        %1705 = vmatpush.msra.mxu0 %v1096
        %1706 = vmatpush.msra.mxu0 %v1094
        %1707 = vmatpush.msra.mxu0 %v1092
        %1708 = vmatpush.msra.mxu0 %v1090
        %1709 = vmatpush.msra.mxu0 %v1088
        %1710 = vmatpush.msra.mxu0 %v1086
        %1711 = vmatpush.msra.mxu0 %v1084
        %1712 = vmatpush.msra.mxu0 %v1082
        %1713 = vmatpush.msra.mxu0 %v1080
        %1714 = vmatpush.msra.mxu0 %v1078
        %1715 = vmatpush.msra.mxu0 %v1076
        %1716 = vmatmul.f32.gmra.mxu0 %v1429
        %v1717 = vpop.f32.mrf.mxu0
        %v1718 = vadd.f32 %v1695, %v1717
        %1719 = vmatmul.f32.gmra.mxu0 %v1431
        %v1720 = vpop.f32.mrf.mxu0
        %v1721 = vadd.f32 %v1698, %v1720
        %1722 = vdwg.mxu0
        %v1723 = vrot.slane %v1565, 1
        %v1724 = vrot.slane %v1611, 1
        %v1725 = vrot.slane %v1568, 1
        %v1726 = vrot.slane %v1614, 1
        %vm1727 = vcmp.lt.s32.totalorder %v1621, 7
        %v1728 = vsel %vm1727, %v1723, %v1725
        %v1729 = vsel %vm1727, %v1724, %v1726
        %v1730 = vsel %vm1727, %v1725, %v1723
        %v1731 = vsel %vm1727, %v1726, %v1724
        %v1732 = vmul.f32 %v1421, %v1728
        %v1733 = vmul.f32 %v1422, %v1729
        %v1734 = vmul.f32 %v1423, %v1730
        %v1735 = vmul.f32 %v1424, %v1731
        %v1736 = vadd.f32 %v1672, %v1732
        %v1737 = vadd.f32 %v1718, %v1733
        %v1738 = vadd.f32 %v1675, %v1734
        %v1739 = vadd.f32 %v1721, %v1735
        %v1741 = vperm.slane %v976, 0
        %1742 = vset.pattern.permute.xlu0 0
        %1743 = vperm.xlu0 %1742, %v1741
        %v1744 = vpop.permute.xlu0 %1743
        %v1746 = vadd.f32 %v1736, %v1744
        %v1747 = vadd.f32 %v1737, %v1744
        %v1748 = vadd.f32 %v1738, %v1744
        %v1749 = vadd.f32 %v1739, %v1744
        %v1750 = vmax.f32 %v1746, 0.0
        %v1751 = vmax.f32 %v1747, 0.0
        %v1752 = vmax.f32 %v1748, 0.0
        %v1753 = vmax.f32 %v1749, 0.0
        %v1754 = vld [vmem:[#allocation12] sm:$0xff]
        %v1755 = vld [vmem:[#allocation12 + $0x8] sm:$0xff]
        %v1756 = vld [vmem:[#allocation12 + $0x10] sm:$0xff]
        %v1757 = vld [vmem:[#allocation12 + $0x18] sm:$0xff]
        %v1758 = vld [vmem:[#allocation12 + $0x20] sm:$0xff]
        %v1759 = vld [vmem:[#allocation12 + $0x28] sm:$0xff]
        %v1760 = vld [vmem:[#allocation12 + $0x30] sm:$0xff]
        %v1761 = vld [vmem:[#allocation12 + $0x38] sm:$0xff]
        %v1762 = vld [vmem:[#allocation12 + $0x40] sm:$0xff]
        %v1763 = vld [vmem:[#allocation12 + $0x48] sm:$0xff]
        %v1764 = vld [vmem:[#allocation12 + $0x50] sm:$0xff]
        %v1765 = vld [vmem:[#allocation12 + $0x58] sm:$0xff]
        %v1766 = vld [vmem:[#allocation12 + $0x60] sm:$0xff]
        %v1767 = vld [vmem:[#allocation12 + $0x68] sm:$0xff]
        %v1768 = vld [vmem:[#allocation12 + $0x70] sm:$0xff]
        %v1769 = vld [vmem:[#allocation12 + $0x78] sm:$0xff]
        %v1770 = vld [vmem:[#allocation12 + $0x80] sm:$0xff]
        %v1771 = vld [vmem:[#allocation12 + $0x88] sm:$0xff]
        %v1772 = vld [vmem:[#allocation12 + $0x90] sm:$0xff]
        %v1773 = vld [vmem:[#allocation12 + $0x98] sm:$0xff]
        %v1774 = vld [vmem:[#allocation12 + $0xa0] sm:$0xff]
        %v1775 = vld [vmem:[#allocation12 + $0xa8] sm:$0xff]
        %v1776 = vld [vmem:[#allocation12 + $0xb0] sm:$0xff]
        %v1777 = vld [vmem:[#allocation12 + $0xb8] sm:$0xff]
        %v1778 = vld [vmem:[#allocation12 + $0xc0] sm:$0xff]
        %v1779 = vld [vmem:[#allocation12 + $0xc8] sm:$0xff]
        %v1780 = vld [vmem:[#allocation12 + $0xd0] sm:$0xff]
        %v1781 = vld [vmem:[#allocation12 + $0xd8] sm:$0xff]
        %v1782 = vld [vmem:[#allocation12 + $0xe0] sm:$0xff]
        %v1783 = vld [vmem:[#allocation12 + $0xe8] sm:$0xff]
        %v1784 = vld [vmem:[#allocation12 + $0xf0] sm:$0xff]
        %v1785 = vld [vmem:[#allocation12 + $0xf8] sm:$0xff]
        %v1786 = vld [vmem:[#allocation12 + $0x100] sm:$0xff]
        %v1787 = vld [vmem:[#allocation12 + $0x108] sm:$0xff]
        %v1788 = vld [vmem:[#allocation12 + $0x110] sm:$0xff]
        %v1789 = vld [vmem:[#allocation12 + $0x118] sm:$0xff]
        %v1790 = vld [vmem:[#allocation12 + $0x120] sm:$0xff]
        %v1791 = vld [vmem:[#allocation12 + $0x128] sm:$0xff]
        %v1792 = vld [vmem:[#allocation12 + $0x130] sm:$0xff]
        %v1793 = vld [vmem:[#allocation12 + $0x138] sm:$0xff]
        %v1794 = vld [vmem:[#allocation12 + $0x140] sm:$0xff]
        %v1795 = vld [vmem:[#allocation12 + $0x148] sm:$0xff]
        %v1796 = vld [vmem:[#allocation12 + $0x150] sm:$0xff]
        %v1797 = vld [vmem:[#allocation12 + $0x158] sm:$0xff]
        %v1798 = vld [vmem:[#allocation12 + $0x160] sm:$0xff]
        %v1799 = vld [vmem:[#allocation12 + $0x168] sm:$0xff]
        %v1800 = vld [vmem:[#allocation12 + $0x170] sm:$0xff]
        %v1801 = vld [vmem:[#allocation12 + $0x178] sm:$0xff]
        %v1802 = vld [vmem:[#allocation12 + $0x180] sm:$0xff]
        %v1803 = vld [vmem:[#allocation12 + $0x188] sm:$0xff]
        %v1804 = vld [vmem:[#allocation12 + $0x190] sm:$0xff]
        %v1805 = vld [vmem:[#allocation12 + $0x198] sm:$0xff]
        %v1806 = vld [vmem:[#allocation12 + $0x1a0] sm:$0xff]
        %v1807 = vld [vmem:[#allocation12 + $0x1a8] sm:$0xff]
        %v1808 = vld [vmem:[#allocation12 + $0x1b0] sm:$0xff]
        %v1809 = vld [vmem:[#allocation12 + $0x1b8] sm:$0xff]
        %v1810 = vld [vmem:[#allocation12 + $0x1c0] sm:$0xff]
        %v1811 = vld [vmem:[#allocation12 + $0x1c8] sm:$0xff]
        %v1812 = vld [vmem:[#allocation12 + $0x1d0] sm:$0xff]
        %v1813 = vld [vmem:[#allocation12 + $0x1d8] sm:$0xff]
        %v1814 = vld [vmem:[#allocation12 + $0x1e0] sm:$0xff]
        %v1815 = vld [vmem:[#allocation12 + $0x1e8] sm:$0xff]
        %v1816 = vld [vmem:[#allocation12 + $0x1f0] sm:$0xff]
        %v1817 = vld [vmem:[#allocation12 + $0x1f8] sm:$0xff]
        %v1818 = vld [vmem:[%s10] sm:$0x3]
        %v1820 = vperm.slane %v1818, 0
        %v1821 = vperm.slane %v1818, 1
        %1824 = vmatpush.msra.mxu0 %v1784
        %1825 = vmatpush.msra.mxu0 %v1782
        %1826 = vmatpush.msra.mxu0 %v1780
        %1827 = vmatpush.msra.mxu0 %v1778
        %1828 = vmatpush.msra.mxu0 %v1776
        %1829 = vmatpush.msra.mxu0 %v1774
        %1830 = vmatpush.msra.mxu0 %v1772
        %1831 = vmatpush.msra.mxu0 %v1770
        %1832 = vmatpush.msra.mxu0 %v1768
        %1833 = vmatpush.msra.mxu0 %v1766
        %1834 = vmatpush.msra.mxu0 %v1764
        %1835 = vmatpush.msra.mxu0 %v1762
        %1836 = vmatpush.msra.mxu0 %v1760
        %1837 = vmatpush.msra.mxu0 %v1758
        %1838 = vmatpush.msra.mxu0 %v1756
        %1839 = vmatpush.msra.mxu0 %v1754
        %1840 = vmatmul.f32.gmra.mxu0 %v1750
        %v1841 = vpop.f32.mrf.mxu0
        %v1842 = vadd.f32 %v1820, %v1841
        %1843 = vmatmul.f32.gmra.mxu0 %v1752
        %v1844 = vpop.f32.mrf.mxu0
        %v1845 = vadd.f32 %v1820, %v1844
        %1846 = vdwg.mxu0
        %1847 = vmatpush.msra.mxu0 %v1816
        %1848 = vmatpush.msra.mxu0 %v1814
        %1849 = vmatpush.msra.mxu0 %v1812
        %1850 = vmatpush.msra.mxu0 %v1810
        %1851 = vmatpush.msra.mxu0 %v1808
        %1852 = vmatpush.msra.mxu0 %v1806
        %1853 = vmatpush.msra.mxu0 %v1804
        %1854 = vmatpush.msra.mxu0 %v1802
        %1855 = vmatpush.msra.mxu0 %v1800
        %1856 = vmatpush.msra.mxu0 %v1798
        %1857 = vmatpush.msra.mxu0 %v1796
        %1858 = vmatpush.msra.mxu0 %v1794
        %1859 = vmatpush.msra.mxu0 %v1792
        %1860 = vmatpush.msra.mxu0 %v1790
        %1861 = vmatpush.msra.mxu0 %v1788
        %1862 = vmatpush.msra.mxu0 %v1786
        %1863 = vmatmul.f32.gmra.mxu0 %v1751
        %v1864 = vpop.f32.mrf.mxu0
        %v1865 = vadd.f32 %v1842, %v1864
        %1866 = vmatmul.f32.gmra.mxu0 %v1753
        %v1867 = vpop.f32.mrf.mxu0
        %v1868 = vadd.f32 %v1845, %v1867
        %1869 = vdwg.mxu0
        %1870 = vmatpush.msra.mxu0 %v1785
        %1871 = vmatpush.msra.mxu0 %v1783
        %1872 = vmatpush.msra.mxu0 %v1781
        %1873 = vmatpush.msra.mxu0 %v1779
        %1874 = vmatpush.msra.mxu0 %v1777
        %1875 = vmatpush.msra.mxu0 %v1775
        %1876 = vmatpush.msra.mxu0 %v1773
        %1877 = vmatpush.msra.mxu0 %v1771
        %1878 = vmatpush.msra.mxu0 %v1769
        %1879 = vmatpush.msra.mxu0 %v1767
        %1880 = vmatpush.msra.mxu0 %v1765
        %1881 = vmatpush.msra.mxu0 %v1763
        %1882 = vmatpush.msra.mxu0 %v1761
        %1883 = vmatpush.msra.mxu0 %v1759
        %1884 = vmatpush.msra.mxu0 %v1757
        %1885 = vmatpush.msra.mxu0 %v1755
        %1886 = vmatmul.f32.gmra.mxu0 %v1750
        %v1887 = vpop.f32.mrf.mxu0
        %v1888 = vadd.f32 %v1821, %v1887
        %1889 = vmatmul.f32.gmra.mxu0 %v1752
        %v1890 = vpop.f32.mrf.mxu0
        %v1891 = vadd.f32 %v1821, %v1890
        %1892 = vdwg.mxu0
        %1893 = vmatpush.msra.mxu0 %v1817
        %1894 = vmatpush.msra.mxu0 %v1815
        %1895 = vmatpush.msra.mxu0 %v1813
        %1896 = vmatpush.msra.mxu0 %v1811
        %1897 = vmatpush.msra.mxu0 %v1809
        %1898 = vmatpush.msra.mxu0 %v1807
        %1899 = vmatpush.msra.mxu0 %v1805
        %1900 = vmatpush.msra.mxu0 %v1803
        %1901 = vmatpush.msra.mxu0 %v1801
        %1902 = vmatpush.msra.mxu0 %v1799
        %1903 = vmatpush.msra.mxu0 %v1797
        %1904 = vmatpush.msra.mxu0 %v1795
        %1905 = vmatpush.msra.mxu0 %v1793
        %1906 = vmatpush.msra.mxu0 %v1791
        %1907 = vmatpush.msra.mxu0 %v1789
        %1908 = vmatpush.msra.mxu0 %v1787
        %1909 = vmatmul.f32.gmra.mxu0 %v1751
        %v1910 = vpop.f32.mrf.mxu0
        %v1911 = vadd.f32 %v1888, %v1910
        %1912 = vmatmul.f32.gmra.mxu0 %v1753
        %v1913 = vpop.f32.mrf.mxu0
        %v1914 = vadd.f32 %v1891, %v1913
        %1915 = vdwg.mxu0
        %1916 = vmatpush.msra.mxu0 %v1202
        %1917 = vmatpush.msra.mxu0 %v1200
        %1918 = vmatpush.msra.mxu0 %v1198
        %1919 = vmatpush.msra.mxu0 %v1196
        %1920 = vmatpush.msra.mxu0 %v1194
        %1921 = vmatpush.msra.mxu0 %v1192
        %1922 = vmatpush.msra.mxu0 %v1190
        %1923 = vmatpush.msra.mxu0 %v1188
        %1924 = vmatpush.msra.mxu0 %v1186
        %1925 = vmatpush.msra.mxu0 %v1184
        %1926 = vmatpush.msra.mxu0 %v1182
        %1927 = vmatpush.msra.mxu0 %v1180
        %1928 = vmatpush.msra.mxu0 %v1178
        %1929 = vmatpush.msra.mxu0 %v1176
        %1930 = vmatpush.msra.mxu0 %v1174
        %1931 = vmatpush.msra.mxu0 %v1172
        %1932 = vmatmul.f32.gmra.mxu0 %v1865
        %v1933 = vpop.f32.mrf.mxu0
        %v1934 = vadd.f32 0.0, %v1933
        %1935 = vmatmul.f32.gmra.mxu0 %v1868
        %v1936 = vpop.f32.mrf.mxu0
        %v1937 = vadd.f32 0.0, %v1936
        %1938 = vdwg.mxu0
        %1939 = vmatpush.msra.mxu0 %v1234
        %1940 = vmatpush.msra.mxu0 %v1232
        %1941 = vmatpush.msra.mxu0 %v1230
        %1942 = vmatpush.msra.mxu0 %v1228
        %1943 = vmatpush.msra.mxu0 %v1226
        %1944 = vmatpush.msra.mxu0 %v1224
        %1945 = vmatpush.msra.mxu0 %v1222
        %1946 = vmatpush.msra.mxu0 %v1220
        %1947 = vmatpush.msra.mxu0 %v1218
        %1948 = vmatpush.msra.mxu0 %v1216
        %1949 = vmatpush.msra.mxu0 %v1214
        %1950 = vmatpush.msra.mxu0 %v1212
        %1951 = vmatpush.msra.mxu0 %v1210
        %1952 = vmatpush.msra.mxu0 %v1208
        %1953 = vmatpush.msra.mxu0 %v1206
        %1954 = vmatpush.msra.mxu0 %v1204
        %1955 = vmatmul.f32.gmra.mxu0 %v1911
        %v1956 = vpop.f32.mrf.mxu0
        %v1957 = vadd.f32 %v1934, %v1956
        %1958 = vmatmul.f32.gmra.mxu0 %v1914
        %v1959 = vpop.f32.mrf.mxu0
        %v1960 = vadd.f32 %v1937, %v1959
        %1961 = vdwg.mxu0
        %1962 = vmatpush.msra.mxu0 %v1203
        %1963 = vmatpush.msra.mxu0 %v1201
        %1964 = vmatpush.msra.mxu0 %v1199
        %1965 = vmatpush.msra.mxu0 %v1197
        %1966 = vmatpush.msra.mxu0 %v1195
        %1967 = vmatpush.msra.mxu0 %v1193
        %1968 = vmatpush.msra.mxu0 %v1191
        %1969 = vmatpush.msra.mxu0 %v1189
        %1970 = vmatpush.msra.mxu0 %v1187
        %1971 = vmatpush.msra.mxu0 %v1185
        %1972 = vmatpush.msra.mxu0 %v1183
        %1973 = vmatpush.msra.mxu0 %v1181
        %1974 = vmatpush.msra.mxu0 %v1179
        %1975 = vmatpush.msra.mxu0 %v1177
        %1976 = vmatpush.msra.mxu0 %v1175
        %1977 = vmatpush.msra.mxu0 %v1173
        %1978 = vmatmul.f32.gmra.mxu0 %v1865
        %v1979 = vpop.f32.mrf.mxu0
        %v1980 = vadd.f32 0.0, %v1979
        %1981 = vmatmul.f32.gmra.mxu0 %v1868
        %v1982 = vpop.f32.mrf.mxu0
        %v1983 = vadd.f32 0.0, %v1982
        %1984 = vdwg.mxu0
        %1985 = vmatpush.msra.mxu0 %v1235
        %1986 = vmatpush.msra.mxu0 %v1233
        %1987 = vmatpush.msra.mxu0 %v1231
        %1988 = vmatpush.msra.mxu0 %v1229
        %1989 = vmatpush.msra.mxu0 %v1227
        %1990 = vmatpush.msra.mxu0 %v1225
        %1991 = vmatpush.msra.mxu0 %v1223
        %1992 = vmatpush.msra.mxu0 %v1221
        %1993 = vmatpush.msra.mxu0 %v1219
        %1994 = vmatpush.msra.mxu0 %v1217
        %1995 = vmatpush.msra.mxu0 %v1215
        %1996 = vmatpush.msra.mxu0 %v1213
        %1997 = vmatpush.msra.mxu0 %v1211
        %1998 = vmatpush.msra.mxu0 %v1209
        %1999 = vmatpush.msra.mxu0 %v1207
        %2000 = vmatpush.msra.mxu0 %v1205
        %2001 = vmatmul.f32.gmra.mxu0 %v1911
        %v2002 = vpop.f32.mrf.mxu0
        %v2003 = vadd.f32 %v1980, %v2002
        %2004 = vmatmul.f32.gmra.mxu0 %v1914
        %v2005 = vpop.f32.mrf.mxu0
        %v2006 = vadd.f32 %v1983, %v2005
        %2007 = vdwg.mxu0
        %2008 = vmatpush.msra.mxu0 %v1332
        %2009 = vmatpush.msra.mxu0 %v1330
        %2010 = vmatpush.msra.mxu0 %v1328
        %2011 = vmatpush.msra.mxu0 %v1326
        %2012 = vmatpush.msra.mxu0 %v1324
        %2013 = vmatpush.msra.mxu0 %v1322
        %2014 = vmatpush.msra.mxu0 %v1320
        %2015 = vmatpush.msra.mxu0 %v1318
        %2016 = vmatpush.msra.mxu0 %v1316
        %2017 = vmatpush.msra.mxu0 %v1314
        %2018 = vmatpush.msra.mxu0 %v1312
        %2019 = vmatpush.msra.mxu0 %v1310
        %2020 = vmatpush.msra.mxu0 %v1308
        %2021 = vmatpush.msra.mxu0 %v1306
        %2022 = vmatpush.msra.mxu0 %v1304
        %2023 = vmatpush.msra.mxu0 %v1302
        %2024 = vmatmul.f32.gmra.mxu0 %v1865
        %v2025 = vpop.f32.mrf.mxu0
        %v2026 = vadd.f32 0.0, %v2025
        %2027 = vmatmul.f32.gmra.mxu0 %v1868
        %v2028 = vpop.f32.mrf.mxu0
        %v2029 = vadd.f32 0.0, %v2028
        %2030 = vdwg.mxu0
        %2031 = vmatpush.msra.mxu0 %v1364
        %2032 = vmatpush.msra.mxu0 %v1362
        %2033 = vmatpush.msra.mxu0 %v1360
        %2034 = vmatpush.msra.mxu0 %v1358
        %2035 = vmatpush.msra.mxu0 %v1356
        %2036 = vmatpush.msra.mxu0 %v1354
        %2037 = vmatpush.msra.mxu0 %v1352
        %2038 = vmatpush.msra.mxu0 %v1350
        %2039 = vmatpush.msra.mxu0 %v1348
        %2040 = vmatpush.msra.mxu0 %v1346
        %2041 = vmatpush.msra.mxu0 %v1344
        %2042 = vmatpush.msra.mxu0 %v1342
        %2043 = vmatpush.msra.mxu0 %v1340
        %2044 = vmatpush.msra.mxu0 %v1338
        %2045 = vmatpush.msra.mxu0 %v1336
        %2046 = vmatpush.msra.mxu0 %v1334
        %2047 = vmatmul.f32.gmra.mxu0 %v1911
        %v2048 = vpop.f32.mrf.mxu0
        %v2049 = vadd.f32 %v2026, %v2048
        %2050 = vmatmul.f32.gmra.mxu0 %v1914
        %v2051 = vpop.f32.mrf.mxu0
        %v2052 = vadd.f32 %v2029, %v2051
        %2053 = vdwg.mxu0
        %2054 = vmatpush.msra.mxu0 %v1333
        %2055 = vmatpush.msra.mxu0 %v1331
        %2056 = vmatpush.msra.mxu0 %v1329
        %2057 = vmatpush.msra.mxu0 %v1327
        %2058 = vmatpush.msra.mxu0 %v1325
        %2059 = vmatpush.msra.mxu0 %v1323
        %2060 = vmatpush.msra.mxu0 %v1321
        %2061 = vmatpush.msra.mxu0 %v1319
        %2062 = vmatpush.msra.mxu0 %v1317
        %2063 = vmatpush.msra.mxu0 %v1315
        %2064 = vmatpush.msra.mxu0 %v1313
        %2065 = vmatpush.msra.mxu0 %v1311
        %2066 = vmatpush.msra.mxu0 %v1309
        %2067 = vmatpush.msra.mxu0 %v1307
        %2068 = vmatpush.msra.mxu0 %v1305
        %2069 = vmatpush.msra.mxu0 %v1303
        %2070 = vmatmul.f32.gmra.mxu0 %v1865
        %v2071 = vpop.f32.mrf.mxu0
        %v2072 = vadd.f32 0.0, %v2071
        %2073 = vmatmul.f32.gmra.mxu0 %v1868
        %v2074 = vpop.f32.mrf.mxu0
        %v2075 = vadd.f32 0.0, %v2074
        %2076 = vdwg.mxu0
        %2077 = vmatpush.msra.mxu0 %v1365
        %2078 = vmatpush.msra.mxu0 %v1363
        %2079 = vmatpush.msra.mxu0 %v1361
        %2080 = vmatpush.msra.mxu0 %v1359
        %2081 = vmatpush.msra.mxu0 %v1357
        %2082 = vmatpush.msra.mxu0 %v1355
        %2083 = vmatpush.msra.mxu0 %v1353
        %2084 = vmatpush.msra.mxu0 %v1351
        %2085 = vmatpush.msra.mxu0 %v1349
        %2086 = vmatpush.msra.mxu0 %v1347
        %2087 = vmatpush.msra.mxu0 %v1345
        %2088 = vmatpush.msra.mxu0 %v1343
        %2089 = vmatpush.msra.mxu0 %v1341
        %2090 = vmatpush.msra.mxu0 %v1339
        %2091 = vmatpush.msra.mxu0 %v1337
        %2092 = vmatpush.msra.mxu0 %v1335
        %2093 = vmatmul.f32.gmra.mxu0 %v1911
        %v2094 = vpop.f32.mrf.mxu0
        %v2095 = vadd.f32 %v2072, %v2094
        %2096 = vmatmul.f32.gmra.mxu0 %v1914
        %v2097 = vpop.f32.mrf.mxu0
        %v2098 = vadd.f32 %v2075, %v2097
        %2099 = vdwg.mxu0
        %v2100 = vrot.slane %v1957, 7
        %v2101 = vrot.slane %v2003, 7
        %v2102 = vrot.slane %v1960, 7
        %v2103 = vrot.slane %v2006, 7
        %v2104 = vsel %vm1622, %v2100, %v2102
        %v2105 = vsel %vm1622, %v2101, %v2103
        %v2106 = vsel %vm1622, %v2102, %v2100
        %v2107 = vsel %vm1622, %v2103, %v2101
        %v2108 = vmul.f32 %v1416, %v2106
        %v2109 = vmul.f32 %v1417, %v2107
        %v2110 = vmul.f32 %v1418, %v2104
        %v2111 = vmul.f32 %v1419, %v2105
        %2112 = vmatpush.msra.mxu0 %v1267
        %2113 = vmatpush.msra.mxu0 %v1265
        %2114 = vmatpush.msra.mxu0 %v1263
        %2115 = vmatpush.msra.mxu0 %v1261
        %2116 = vmatpush.msra.mxu0 %v1259
        %2117 = vmatpush.msra.mxu0 %v1257
        %2118 = vmatpush.msra.mxu0 %v1255
        %2119 = vmatpush.msra.mxu0 %v1253
        %2120 = vmatpush.msra.mxu0 %v1251
        %2121 = vmatpush.msra.mxu0 %v1249
        %2122 = vmatpush.msra.mxu0 %v1247
        %2123 = vmatpush.msra.mxu0 %v1245
        %2124 = vmatpush.msra.mxu0 %v1243
        %2125 = vmatpush.msra.mxu0 %v1241
        %2126 = vmatpush.msra.mxu0 %v1239
        %2127 = vmatpush.msra.mxu0 %v1237
        %2128 = vmatmul.f32.gmra.mxu0 %v1865
        %v2129 = vpop.f32.mrf.mxu0
        %v2130 = vadd.f32 %v2108, %v2129
        %2131 = vmatmul.f32.gmra.mxu0 %v1868
        %v2132 = vpop.f32.mrf.mxu0
        %v2133 = vadd.f32 %v2110, %v2132
        %2134 = vdwg.mxu0
        %2135 = vmatpush.msra.mxu0 %v1299
        %2136 = vmatpush.msra.mxu0 %v1297
        %2137 = vmatpush.msra.mxu0 %v1295
        %2138 = vmatpush.msra.mxu0 %v1293
        %2139 = vmatpush.msra.mxu0 %v1291
        %2140 = vmatpush.msra.mxu0 %v1289
        %2141 = vmatpush.msra.mxu0 %v1287
        %2142 = vmatpush.msra.mxu0 %v1285
        %2143 = vmatpush.msra.mxu0 %v1283
        %2144 = vmatpush.msra.mxu0 %v1281
        %2145 = vmatpush.msra.mxu0 %v1279
        %2146 = vmatpush.msra.mxu0 %v1277
        %2147 = vmatpush.msra.mxu0 %v1275
        %2148 = vmatpush.msra.mxu0 %v1273
        %2149 = vmatpush.msra.mxu0 %v1271
        %2150 = vmatpush.msra.mxu0 %v1269
        %2151 = vmatmul.f32.gmra.mxu0 %v1911
        %v2152 = vpop.f32.mrf.mxu0
        %v2153 = vadd.f32 %v2130, %v2152
        %2154 = vmatmul.f32.gmra.mxu0 %v1914
        %v2155 = vpop.f32.mrf.mxu0
        %v2156 = vadd.f32 %v2133, %v2155
        %2157 = vdwg.mxu0
        %2158 = vmatpush.msra.mxu0 %v1268
        %2159 = vmatpush.msra.mxu0 %v1266
        %2160 = vmatpush.msra.mxu0 %v1264
        %2161 = vmatpush.msra.mxu0 %v1262
        %2162 = vmatpush.msra.mxu0 %v1260
        %2163 = vmatpush.msra.mxu0 %v1258
        %2164 = vmatpush.msra.mxu0 %v1256
        %2165 = vmatpush.msra.mxu0 %v1254
        %2166 = vmatpush.msra.mxu0 %v1252
        %2167 = vmatpush.msra.mxu0 %v1250
        %2168 = vmatpush.msra.mxu0 %v1248
        %2169 = vmatpush.msra.mxu0 %v1246
        %2170 = vmatpush.msra.mxu0 %v1244
        %2171 = vmatpush.msra.mxu0 %v1242
        %2172 = vmatpush.msra.mxu0 %v1240
        %2173 = vmatpush.msra.mxu0 %v1238
        %2174 = vmatmul.f32.gmra.mxu0 %v1865
        %v2175 = vpop.f32.mrf.mxu0
        %v2176 = vadd.f32 %v2109, %v2175
        %2177 = vmatmul.f32.gmra.mxu0 %v1868
        %v2178 = vpop.f32.mrf.mxu0
        %v2179 = vadd.f32 %v2111, %v2178
        %2180 = vdwg.mxu0
        %2181 = vmatpush.msra.mxu0 %v1300
        %2182 = vmatpush.msra.mxu0 %v1298
        %2183 = vmatpush.msra.mxu0 %v1296
        %2184 = vmatpush.msra.mxu0 %v1294
        %2185 = vmatpush.msra.mxu0 %v1292
        %2186 = vmatpush.msra.mxu0 %v1290
        %2187 = vmatpush.msra.mxu0 %v1288
        %2188 = vmatpush.msra.mxu0 %v1286
        %2189 = vmatpush.msra.mxu0 %v1284
        %2190 = vmatpush.msra.mxu0 %v1282
        %2191 = vmatpush.msra.mxu0 %v1280
        %2192 = vmatpush.msra.mxu0 %v1278
        %2193 = vmatpush.msra.mxu0 %v1276
        %2194 = vmatpush.msra.mxu0 %v1274
        %2195 = vmatpush.msra.mxu0 %v1272
        %2196 = vmatpush.msra.mxu0 %v1270
        %2197 = vmatmul.f32.gmra.mxu0 %v1911
        %v2198 = vpop.f32.mrf.mxu0
        %v2199 = vadd.f32 %v2176, %v2198
        %2200 = vmatmul.f32.gmra.mxu0 %v1914
        %v2201 = vpop.f32.mrf.mxu0
        %v2202 = vadd.f32 %v2179, %v2201
        %2203 = vdwg.mxu0
        %v2204 = vrot.slane %v2049, 1
        %v2205 = vrot.slane %v2095, 1
        %v2206 = vrot.slane %v2052, 1
        %v2207 = vrot.slane %v2098, 1
        %v2208 = vsel %vm1727, %v2204, %v2206
        %v2209 = vsel %vm1727, %v2205, %v2207
        %v2210 = vsel %vm1727, %v2206, %v2204
        %v2211 = vsel %vm1727, %v2207, %v2205
        %v2212 = vmul.f32 %v1421, %v2208
        %v2213 = vmul.f32 %v1422, %v2209
        %v2214 = vmul.f32 %v1423, %v2210
        %v2215 = vmul.f32 %v1424, %v2211
        %v2216 = vadd.f32 %v2153, %v2212
        %v2217 = vadd.f32 %v2199, %v2213
        %v2218 = vadd.f32 %v2156, %v2214
        %v2219 = vadd.f32 %v2202, %v2215
        %v2221 = vperm.slane %v977, 0
        %2222 = vset.pattern.permute.xlu0 0
        %2223 = vperm.xlu0 %2222, %v2221
        %v2224 = vpop.permute.xlu0 %2223
        %v2226 = vadd.f32 %v2216, %v2224
        %v2227 = vadd.f32 %v2217, %v2224
        %v2228 = vadd.f32 %v2218, %v2224
        %v2229 = vadd.f32 %v2219, %v2224
        %v2230 = vld [vmem:[%s18] sm:$0xff]
        %v2231 = vld [vmem:[#allocation18] sm:$0xff]
        %v2232 = vld [vmem:[#allocation18 + $0x8] sm:$0xff]
        %v2233 = vld [vmem:[#allocation18 + $0x10] sm:$0xff]
        %v2234 = vld [vmem:[#allocation18 + $0x18] sm:$0xff]
        %v2235 = vld [vmem:[#allocation18 + $0x20] sm:$0xff]
        %v2236 = vld [vmem:[#allocation18 + $0x28] sm:$0xff]
        %v2237 = vld [vmem:[#allocation18 + $0x30] sm:$0xff]
        %v2238 = vld [vmem:[#allocation18 + $0x38] sm:$0xff]
        %v2239 = vld [vmem:[#allocation18 + $0x40] sm:$0xff]
        %v2240 = vld [vmem:[#allocation18 + $0x48] sm:$0xff]
        %v2241 = vld [vmem:[#allocation18 + $0x50] sm:$0xff]
        %v2242 = vld [vmem:[#allocation18 + $0x58] sm:$0xff]
        %v2243 = vld [vmem:[#allocation18 + $0x60] sm:$0xff]
        %v2244 = vld [vmem:[#allocation18 + $0x68] sm:$0xff]
        %v2245 = vld [vmem:[#allocation18 + $0x70] sm:$0xff]
        %v2246 = vld [vmem:[#allocation18 + $0x78] sm:$0xff]
        %v2247 = vld [vmem:[#allocation18 + $0x80] sm:$0xff]
        %v2248 = vld [vmem:[#allocation18 + $0x88] sm:$0xff]
        %v2249 = vld [vmem:[#allocation18 + $0x90] sm:$0xff]
        %v2250 = vld [vmem:[#allocation18 + $0x98] sm:$0xff]
        %v2251 = vld [vmem:[#allocation18 + $0xa0] sm:$0xff]
        %v2252 = vld [vmem:[#allocation18 + $0xa8] sm:$0xff]
        %v2253 = vld [vmem:[#allocation18 + $0xb0] sm:$0xff]
        %v2254 = vld [vmem:[#allocation18 + $0xb8] sm:$0xff]
        %v2255 = vld [vmem:[#allocation18 + $0xc0] sm:$0xff]
        %v2256 = vld [vmem:[#allocation18 + $0xc8] sm:$0xff]
        %v2257 = vld [vmem:[#allocation18 + $0xd0] sm:$0xff]
        %v2258 = vld [vmem:[#allocation18 + $0xd8] sm:$0xff]
        %v2259 = vld [vmem:[#allocation18 + $0xe0] sm:$0xff]
        %v2260 = vld [vmem:[#allocation18 + $0xe8] sm:$0xff]
        %v2261 = vld [vmem:[#allocation18 + $0xf0] sm:$0xff]
        %v2262 = vld [vmem:[#allocation18 + $0xf8] sm:$0xff]
        %2263 = vmatpush.msra.mxu0 %v2246
        %2264 = vmatpush.msra.mxu0 %v2245
        %2265 = vmatpush.msra.mxu0 %v2244
        %2266 = vmatpush.msra.mxu0 %v2243
        %2267 = vmatpush.msra.mxu0 %v2242
        %2268 = vmatpush.msra.mxu0 %v2241
        %2269 = vmatpush.msra.mxu0 %v2240
        %2270 = vmatpush.msra.mxu0 %v2239
        %2271 = vmatpush.msra.mxu0 %v2238
        %2272 = vmatpush.msra.mxu0 %v2237
        %2273 = vmatpush.msra.mxu0 %v2236
        %2274 = vmatpush.msra.mxu0 %v2235
        %2275 = vmatpush.msra.mxu0 %v2234
        %2276 = vmatpush.msra.mxu0 %v2233
        %2277 = vmatpush.msra.mxu0 %v2232
        %2278 = vmatpush.msra.mxu0 %v2231
        %2279 = vmatmul.f32.gmra.mxu0 %v2226
        %v2280 = vpop.f32.mrf.mxu0
        %v2281 = vadd.f32 0.0, %v2280
        %2282 = vmatmul.f32.gmra.mxu0 %v2228
        %v2283 = vpop.f32.mrf.mxu0
        %v2284 = vadd.f32 0.0, %v2283
        %2285 = vdwg.mxu0
        %2286 = vmatpush.msra.mxu0 %v2262
        %2287 = vmatpush.msra.mxu0 %v2261
        %2288 = vmatpush.msra.mxu0 %v2260
        %2289 = vmatpush.msra.mxu0 %v2259
        %2290 = vmatpush.msra.mxu0 %v2258
        %2291 = vmatpush.msra.mxu0 %v2257
        %2292 = vmatpush.msra.mxu0 %v2256
        %2293 = vmatpush.msra.mxu0 %v2255
        %2294 = vmatpush.msra.mxu0 %v2254
        %2295 = vmatpush.msra.mxu0 %v2253
        %2296 = vmatpush.msra.mxu0 %v2252
        %2297 = vmatpush.msra.mxu0 %v2251
        %2298 = vmatpush.msra.mxu0 %v2250
        %2299 = vmatpush.msra.mxu0 %v2249
        %2300 = vmatpush.msra.mxu0 %v2248
        %2301 = vmatpush.msra.mxu0 %v2247
        %2302 = vmatmul.f32.gmra.mxu0 %v2227
        %v2303 = vpop.f32.mrf.mxu0
        %v2304 = vadd.f32 %v2281, %v2303
        %2305 = vmatmul.f32.gmra.mxu0 %v2229
        %v2306 = vpop.f32.mrf.mxu0
        %v2307 = vadd.f32 %v2284, %v2306
        %2308 = vdwg.mxu0
        %vm2309 = vcmask 130048
        %v2311 = vsel %vm2309, %v2230, 0
        %2313 = vmatpush.msra.mxu0 0.0
        %2314 = vmatpush.msra.mxu0 0.0
        %2315 = vmatpush.msra.mxu0 0.0
        %2316 = vmatpush.msra.mxu0 0.0
        %2317 = vmatpush.msra.mxu0 0.0
        %2318 = vmatpush.msra.mxu0 0.0
        %2319 = vmatpush.msra.mxu0 0.0
        %2320 = vmatpush.msra.mxu0 0.0
        %2321 = vmatpush.msra.mxu0 0.0
        %2322 = vmatpush.msra.mxu0 0.0
        %2323 = vmatpush.msra.mxu0 0.0
        %2324 = vmatpush.msra.mxu0 0.0
        %2325 = vmatpush.msra.mxu0 0.0
        %2326 = vmatpush.msra.mxu0 0.0
        %2327 = vmatpush.msra.mxu0 %v2307
        %2328 = vmatpush.msra.mxu0 %v2304
        %2329 = vmatmul.f32.gmra.mxu0 %v2311
        %v2330 = vpop.f32.mrf.mxu0
        %v2331 = vadd.f32 0.0, %v2330
        %2332 = vdwg.mxu0
        %v2333 = vmax.f32 %v2331, 0.0
        %v2334 = vld [vmem:[%s9] sm:$0xff]
        %v2335 = vld [vmem:[%s9 + $0x8] sm:$0xff]
        %v2336 = vld [vmem:[%s9 + $0x10] sm:$0xff]
        %v2337 = vld [vmem:[%s9 + $0x18] sm:$0xff]
        %v2338 = vld [vmem:[%s9 + $0x20] sm:$0xff]
        %v2339 = vld [vmem:[%s9 + $0x28] sm:$0xff]
        %v2340 = vld [vmem:[%s9 + $0x30] sm:$0xff]
        %v2341 = vld [vmem:[%s9 + $0x38] sm:$0xff]
        %v2342 = vld [vmem:[%s9 + $0x40] sm:$0xff]
        %v2343 = vld [vmem:[%s9 + $0x48] sm:$0xff]
        %v2344 = vld [vmem:[%s9 + $0x50] sm:$0xff]
        %v2345 = vld [vmem:[%s9 + $0x58] sm:$0xff]
        %v2346 = vld [vmem:[%s9 + $0x60] sm:$0xff]
        %v2347 = vld [vmem:[%s9 + $0x68] sm:$0xff]
        %v2348 = vld [vmem:[%s9 + $0x70] sm:$0xff]
        %v2349 = vld [vmem:[%s9 + $0x78] sm:$0xff]
        %v2350 = vld [vmem:[%s11] sm:$0x1]
        %v2352 = vperm.slane %v2350, 0
        %2354 = vmatpush.msra.mxu0 %v2349
        %2355 = vmatpush.msra.mxu0 %v2348
        %2356 = vmatpush.msra.mxu0 %v2347
        %2357 = vmatpush.msra.mxu0 %v2346
        %2358 = vmatpush.msra.mxu0 %v2345
        %2359 = vmatpush.msra.mxu0 %v2344
        %2360 = vmatpush.msra.mxu0 %v2343
        %2361 = vmatpush.msra.mxu0 %v2342
        %2362 = vmatpush.msra.mxu0 %v2341
        %2363 = vmatpush.msra.mxu0 %v2340
        %2364 = vmatpush.msra.mxu0 %v2339
        %2365 = vmatpush.msra.mxu0 %v2338
        %2366 = vmatpush.msra.mxu0 %v2337
        %2367 = vmatpush.msra.mxu0 %v2336
        %2368 = vmatpush.msra.mxu0 %v2335
        %2369 = vmatpush.msra.mxu0 %v2334
        %2370 = vmatmul.f32.gmra.mxu0 %v2333
        %v2371 = vpop.f32.mrf.mxu0
        %v2372 = vadd.f32 %v2352, %v2371
        %2373 = vdwg.mxu0
        %2374 = vmatpush.msra.mxu0 %v1381
        %2375 = vmatpush.msra.mxu0 %v1380
        %2376 = vmatpush.msra.mxu0 %v1379
        %2377 = vmatpush.msra.mxu0 %v1378
        %2378 = vmatpush.msra.mxu0 %v1377
        %2379 = vmatpush.msra.mxu0 %v1376
        %2380 = vmatpush.msra.mxu0 %v1375
        %2381 = vmatpush.msra.mxu0 %v1374
        %2382 = vmatpush.msra.mxu0 %v1373
        %2383 = vmatpush.msra.mxu0 %v1372
        %2384 = vmatpush.msra.mxu0 %v1371
        %2385 = vmatpush.msra.mxu0 %v1370
        %2386 = vmatpush.msra.mxu0 %v1369
        %2387 = vmatpush.msra.mxu0 %v1368
        %2388 = vmatpush.msra.mxu0 %v1367
        %2389 = vmatpush.msra.mxu0 %v1366
        %2390 = vmatmul.f32.gmra.mxu0 %v2372
        %v2391 = vpop.f32.mrf.mxu0
        %v2392 = vadd.f32 0.0, %v2391
        %2393 = vdwg.mxu0
        %2394 = vmatpush.msra.mxu0 %v1415
        %2395 = vmatpush.msra.mxu0 %v1414
        %2396 = vmatpush.msra.mxu0 %v1413
        %2397 = vmatpush.msra.mxu0 %v1412
        %2398 = vmatpush.msra.mxu0 %v1411
        %2399 = vmatpush.msra.mxu0 %v1410
        %2400 = vmatpush.msra.mxu0 %v1409
        %2401 = vmatpush.msra.mxu0 %v1408
        %2402 = vmatpush.msra.mxu0 %v1407
        %2403 = vmatpush.msra.mxu0 %v1406
        %2404 = vmatpush.msra.mxu0 %v1405
        %2405 = vmatpush.msra.mxu0 %v1404
        %2406 = vmatpush.msra.mxu0 %v1403
        %2407 = vmatpush.msra.mxu0 %v1402
        %2408 = vmatpush.msra.mxu0 %v1401
        %2409 = vmatpush.msra.mxu0 %v1400
        %2410 = vmatmul.f32.gmra.mxu0 %v2372
        %v2411 = vpop.f32.mrf.mxu0
        %v2412 = vadd.f32 0.0, %v2411
        %2413 = vdwg.mxu0
        %v2414 = vrot.slane %v2392, 7
        %v2415 = vmul.f32 %v1425, %v2414
        %2416 = vmatpush.msra.mxu0 %v1398
        %2417 = vmatpush.msra.mxu0 %v1397
        %2418 = vmatpush.msra.mxu0 %v1396
        %2419 = vmatpush.msra.mxu0 %v1395
        %2420 = vmatpush.msra.mxu0 %v1394
        %2421 = vmatpush.msra.mxu0 %v1393
        %2422 = vmatpush.msra.mxu0 %v1392
        %2423 = vmatpush.msra.mxu0 %v1391
        %2424 = vmatpush.msra.mxu0 %v1390
        %2425 = vmatpush.msra.mxu0 %v1389
        %2426 = vmatpush.msra.mxu0 %v1388
        %2427 = vmatpush.msra.mxu0 %v1387
        %2428 = vmatpush.msra.mxu0 %v1386
        %2429 = vmatpush.msra.mxu0 %v1385
        %2430 = vmatpush.msra.mxu0 %v1384
        %2431 = vmatpush.msra.mxu0 %v1383
        %2432 = vmatmul.f32.gmra.mxu0 %v2372
        %v2433 = vpop.f32.mrf.mxu0
        %v2434 = vadd.f32 %v2415, %v2433
        %2435 = vdwg.mxu0
        %v2436 = vrot.slane %v2412, 1
        %v2437 = vmul.f32 %v1427, %v2436
        %v2438 = vadd.f32 %v2434, %v2437
        %v2439 = vadd.f32 %v2438, %v2224
        %v2440 = vld [vmem:[%s19] sm:$0xf]
        %v2441 = vld [vmem:[%s21] sm:$0xff]
        %v2442 = vld [vmem:[%s21 + $0x8] sm:$0xff]
        %v2443 = vld [vmem:[%s21 + $0x10] sm:$0xff]
        %v2444 = vld [vmem:[%s21 + $0x18] sm:$0xff]
        %v2445 = vld [vmem:[%s21 + $0x20] sm:$0xff]
        %v2446 = vld [vmem:[%s21 + $0x28] sm:$0xff]
        %v2447 = vld [vmem:[%s21 + $0x30] sm:$0xff]
        %v2448 = vld [vmem:[%s21 + $0x38] sm:$0xff]
        %v2449 = vld [vmem:[%s21 + $0x40] sm:$0xff]
        %v2450 = vld [vmem:[%s21 + $0x48] sm:$0xff]
        %v2451 = vld [vmem:[%s21 + $0x50] sm:$0xff]
        %v2452 = vld [vmem:[%s21 + $0x58] sm:$0xff]
        %v2453 = vld [vmem:[%s21 + $0x60] sm:$0xff]
        %v2454 = vld [vmem:[%s21 + $0x68] sm:$0xff]
        %v2455 = vld [vmem:[%s21 + $0x70] sm:$0xff]
        %v2456 = vld [vmem:[%s21 + $0x78] sm:$0xff]
        %2457 = vmatpush.msra.mxu0 %v2456
        %2458 = vmatpush.msra.mxu0 %v2455
        %2459 = vmatpush.msra.mxu0 %v2454
        %2460 = vmatpush.msra.mxu0 %v2453
        %2461 = vmatpush.msra.mxu0 %v2452
        %2462 = vmatpush.msra.mxu0 %v2451
        %2463 = vmatpush.msra.mxu0 %v2450
        %2464 = vmatpush.msra.mxu0 %v2449
        %2465 = vmatpush.msra.mxu0 %v2448
        %2466 = vmatpush.msra.mxu0 %v2447
        %2467 = vmatpush.msra.mxu0 %v2446
        %2468 = vmatpush.msra.mxu0 %v2445
        %2469 = vmatpush.msra.mxu0 %v2444
        %2470 = vmatpush.msra.mxu0 %v2443
        %2471 = vmatpush.msra.mxu0 %v2442
        %2472 = vmatpush.msra.mxu0 %v2441
        %2473 = vmatmul.f32.gmra.mxu0 %v2439
        %v2474 = vpop.f32.mrf.mxu0
        %v2475 = vadd.f32 0.0, %v2474
        %2476 = vdwg.mxu0
        %vm2477 = vcmask 64512
        %v2479 = vsel %vm2477, %v2440, 0
        %2481 = vmatpush.msra.mxu0 0.0
        %2482 = vmatpush.msra.mxu0 0.0
        %2483 = vmatpush.msra.mxu0 0.0
        %2484 = vmatpush.msra.mxu0 0.0
        %2485 = vmatpush.msra.mxu0 0.0
        %2486 = vmatpush.msra.mxu0 0.0
        %2487 = vmatpush.msra.mxu0 0.0
        %2488 = vmatpush.msra.mxu0 0.0
        %2489 = vmatpush.msra.mxu0 0.0
        %2490 = vmatpush.msra.mxu0 0.0
        %2491 = vmatpush.msra.mxu0 0.0
        %2492 = vmatpush.msra.mxu0 0.0
        %2493 = vmatpush.msra.mxu0 0.0
        %2494 = vmatpush.msra.mxu0 0.0
        %2495 = vmatpush.msra.mxu0 0.0
        %2496 = vmatpush.msra.mxu0 %v2475
        %2497 = vmatmul.f32.gmra.mxu0 %v2479
        %v2498 = vpop.f32.mrf.mxu0
        %v2499 = vadd.f32 0.0, %v2498
        %2500 = vdwg.mxu0
        %v2501 = vmax.f32 %v2499, 0.0
        %v2502 = vld [vmem:[#allocation16] sm:$0xff]
        %v2503 = vld [vmem:[#allocation16 + $0x8] sm:$0xff]
        %v2504 = vld [vmem:[#allocation16 + $0x10] sm:$0xff]
        %v2505 = vld [vmem:[#allocation16 + $0x18] sm:$0xff]
        %v2506 = vld [vmem:[#allocation16 + $0x20] sm:$0xff]
        %v2507 = vld [vmem:[#allocation16 + $0x28] sm:$0xff]
        %v2508 = vld [vmem:[#allocation16 + $0x30] sm:$0xff]
        %v2509 = vld [vmem:[#allocation16 + $0x38] sm:$0xff]
        %v2510 = vld [vmem:[%s17] sm:$0x1]
        %v2512 = vperm.slane %v2510, 0
        %vm2514 = vcmask 523264
        %v2516 = vsel %vm2514, %v2501, 0
        %2518 = vmatpush.msra.mxu0 0.0
        %2519 = vmatpush.msra.mxu0 0.0
        %2520 = vmatpush.msra.mxu0 0.0
        %2521 = vmatpush.msra.mxu0 0.0
        %2522 = vmatpush.msra.mxu0 0.0
        %2523 = vmatpush.msra.mxu0 0.0
        %2524 = vmatpush.msra.mxu0 0.0
        %2525 = vmatpush.msra.mxu0 0.0
        %2526 = vmatpush.msra.mxu0 %v2509
        %2527 = vmatpush.msra.mxu0 %v2508
        %2528 = vmatpush.msra.mxu0 %v2507
        %2529 = vmatpush.msra.mxu0 %v2506
        %2530 = vmatpush.msra.mxu0 %v2505
        %2531 = vmatpush.msra.mxu0 %v2504
        %2532 = vmatpush.msra.mxu0 %v2503
        %2533 = vmatpush.msra.mxu0 %v2502
        %2534 = vmatmul.f32.gmra.mxu0 %v2516
        %v2535 = vpop.f32.mrf.mxu0
        %v2536 = vadd.f32 %v2512, %v2535
        %2537 = vdwg.mxu0
        %v2538 = vmax.f32 %v2536, 0.0
        %v2539 = vld [vmem:[%s23] sm:$0xff]
        %v2540 = vld [vmem:[#allocation21] sm:$0xff]
        %v2541 = vld [vmem:[#allocation21 + $0x8] sm:$0xff]
        %v2542 = vld [vmem:[#allocation21 + $0x10] sm:$0xff]
        %v2543 = vld [vmem:[#allocation21 + $0x18] sm:$0xff]
        %v2544 = vld [vmem:[#allocation21 + $0x20] sm:$0xff]
        %v2545 = vld [vmem:[#allocation21 + $0x28] sm:$0xff]
        %v2546 = vld [vmem:[#allocation21 + $0x30] sm:$0xff]
        %v2547 = vld [vmem:[#allocation21 + $0x38] sm:$0xff]
        %v2549 = vsel %vm2514, %v2538, 0
        %2551 = vmatpush.msra.mxu0 0.0
        %2552 = vmatpush.msra.mxu0 0.0
        %2553 = vmatpush.msra.mxu0 0.0
        %2554 = vmatpush.msra.mxu0 0.0
        %2555 = vmatpush.msra.mxu0 0.0
        %2556 = vmatpush.msra.mxu0 0.0
        %2557 = vmatpush.msra.mxu0 0.0
        %2558 = vmatpush.msra.mxu0 0.0
        %2559 = vmatpush.msra.mxu0 %v2547
        %2560 = vmatpush.msra.mxu0 %v2546
        %2561 = vmatpush.msra.mxu0 %v2545
        %2562 = vmatpush.msra.mxu0 %v2544
        %2563 = vmatpush.msra.mxu0 %v2543
        %2564 = vmatpush.msra.mxu0 %v2542
        %2565 = vmatpush.msra.mxu0 %v2541
        %2566 = vmatpush.msra.mxu0 %v2540
        %2567 = vmatmul.f32.gmra.mxu0 %v2549
        %v2568 = vpop.f32.mrf.mxu0
        %v2569 = vadd.f32 0.0, %v2568
        %2570 = vdwg.mxu0
        %vm2571 = vcmask 31744
        %v2573 = vsel %vm2571, %v2539, 0
        %vm2575 = vcmask 1043456
        %v2577 = vsel %vm2575, %v2569, 0
        %2579 = vmatpush.msra.mxu0 0.0
        %2580 = vmatpush.msra.mxu0 0.0
        %2581 = vmatpush.msra.mxu0 0.0
        %2582 = vmatpush.msra.mxu0 0.0
        %2583 = vmatpush.msra.mxu0 0.0
        %2584 = vmatpush.msra.mxu0 0.0
        %2585 = vmatpush.msra.mxu0 0.0
        %2586 = vmatpush.msra.mxu0 0.0
        %2587 = vmatpush.msra.mxu0 0.0
        %2588 = vmatpush.msra.mxu0 0.0
        %2589 = vmatpush.msra.mxu0 0.0
        %2590 = vmatpush.msra.mxu0 0.0
        %2591 = vmatpush.msra.mxu0 0.0
        %2592 = vmatpush.msra.mxu0 0.0
        %2593 = vmatpush.msra.mxu0 0.0
        %2594 = vmatpush.msra.mxu0 %v2577
        %2595 = vmatmul.f32.gmra.mxu0 %v2573
        %v2596 = vpop.f32.mrf.mxu0
        %v2597 = vadd.f32 0.0, %v2596
        %2598 = vdwg.mxu0
        %2599 = vmatpush.msra.mxu0 %v1381
        %2600 = vmatpush.msra.mxu0 %v1380
        %2601 = vmatpush.msra.mxu0 %v1379
        %2602 = vmatpush.msra.mxu0 %v1378
        %2603 = vmatpush.msra.mxu0 %v1377
        %2604 = vmatpush.msra.mxu0 %v1376
        %2605 = vmatpush.msra.mxu0 %v1375
        %2606 = vmatpush.msra.mxu0 %v1374
        %2607 = vmatpush.msra.mxu0 %v1373
        %2608 = vmatpush.msra.mxu0 %v1372
        %2609 = vmatpush.msra.mxu0 %v1371
        %2610 = vmatpush.msra.mxu0 %v1370
        %2611 = vmatpush.msra.mxu0 %v1369
        %2612 = vmatpush.msra.mxu0 %v1368
        %2613 = vmatpush.msra.mxu0 %v1367
        %2614 = vmatpush.msra.mxu0 %v1366
        %2615 = vmatmul.f32.gmra.mxu0 %v2597
        %v2616 = vpop.f32.mrf.mxu0
        %v2617 = vadd.f32 0.0, %v2616
        %2618 = vdwg.mxu0
        %2619 = vmatpush.msra.mxu0 %v1415
        %2620 = vmatpush.msra.mxu0 %v1414
        %2621 = vmatpush.msra.mxu0 %v1413
        %2622 = vmatpush.msra.mxu0 %v1412
        %2623 = vmatpush.msra.mxu0 %v1411
        %2624 = vmatpush.msra.mxu0 %v1410
        %2625 = vmatpush.msra.mxu0 %v1409
        %2626 = vmatpush.msra.mxu0 %v1408
        %2627 = vmatpush.msra.mxu0 %v1407
        %2628 = vmatpush.msra.mxu0 %v1406
        %2629 = vmatpush.msra.mxu0 %v1405
        %2630 = vmatpush.msra.mxu0 %v1404
        %2631 = vmatpush.msra.mxu0 %v1403
        %2632 = vmatpush.msra.mxu0 %v1402
        %2633 = vmatpush.msra.mxu0 %v1401
        %2634 = vmatpush.msra.mxu0 %v1400
        %2635 = vmatmul.f32.gmra.mxu0 %v2597
        %v2636 = vpop.f32.mrf.mxu0
        %v2637 = vadd.f32 0.0, %v2636
        %2638 = vdwg.mxu0
        %v2639 = vrot.slane %v2617, 7
        %v2640 = vmul.f32 %v1425, %v2639
        %2641 = vmatpush.msra.mxu0 %v1398
        %2642 = vmatpush.msra.mxu0 %v1397
        %2643 = vmatpush.msra.mxu0 %v1396
        %2644 = vmatpush.msra.mxu0 %v1395
        %2645 = vmatpush.msra.mxu0 %v1394
        %2646 = vmatpush.msra.mxu0 %v1393
        %2647 = vmatpush.msra.mxu0 %v1392
        %2648 = vmatpush.msra.mxu0 %v1391
        %2649 = vmatpush.msra.mxu0 %v1390
        %2650 = vmatpush.msra.mxu0 %v1389
        %2651 = vmatpush.msra.mxu0 %v1388
        %2652 = vmatpush.msra.mxu0 %v1387
        %2653 = vmatpush.msra.mxu0 %v1386
        %2654 = vmatpush.msra.mxu0 %v1385
        %2655 = vmatpush.msra.mxu0 %v1384
        %2656 = vmatpush.msra.mxu0 %v1383
        %2657 = vmatmul.f32.gmra.mxu0 %v2597
        %v2658 = vpop.f32.mrf.mxu0
        %v2659 = vadd.f32 %v2640, %v2658
        %2660 = vdwg.mxu0
        %v2661 = vrot.slane %v2637, 1
        %v2662 = vmul.f32 %v1427, %v2661
        %v2663 = vadd.f32 %v2659, %v2662
        %v2664 = vadd.f32 %v2663, %v2224
        %v2665 = vld [vmem:[#allocation15] sm:$0xff]
        %v2666 = vld [vmem:[#allocation15 + $0x8] sm:$0xff]
        %v2667 = vld [vmem:[#allocation15 + $0x10] sm:$0xff]
        %v2668 = vld [vmem:[#allocation15 + $0x18] sm:$0xff]
        %v2669 = vld [vmem:[#allocation15 + $0x20] sm:$0xff]
        %v2670 = vld [vmem:[#allocation15 + $0x28] sm:$0xff]
        %v2671 = vld [vmem:[#allocation15 + $0x30] sm:$0xff]
        %v2672 = vld [vmem:[#allocation15 + $0x38] sm:$0xff]
        %v2673 = vld [vmem:[#allocation15 + $0x40] sm:$0xff]
        %v2674 = vld [vmem:[#allocation15 + $0x48] sm:$0xff]
        %v2675 = vld [vmem:[#allocation15 + $0x50] sm:$0xff]
        %v2676 = vld [vmem:[#allocation15 + $0x58] sm:$0xff]
        %v2677 = vld [vmem:[#allocation15 + $0x60] sm:$0xff]
        %v2678 = vld [vmem:[#allocation15 + $0x68] sm:$0xff]
        %v2679 = vld [vmem:[#allocation15 + $0x70] sm:$0xff]
        %v2680 = vld [vmem:[#allocation15 + $0x78] sm:$0xff]
        %v2681 = vld [vmem:[%s15] sm:$0x1]
        %v2683 = vperm.slane %v2681, 0
        %2685 = vmatpush.msra.mxu0 %v2680
        %2686 = vmatpush.msra.mxu0 %v2679
        %2687 = vmatpush.msra.mxu0 %v2678
        %2688 = vmatpush.msra.mxu0 %v2677
        %2689 = vmatpush.msra.mxu0 %v2676
        %2690 = vmatpush.msra.mxu0 %v2675
        %2691 = vmatpush.msra.mxu0 %v2674
        %2692 = vmatpush.msra.mxu0 %v2673
        %2693 = vmatpush.msra.mxu0 %v2672
        %2694 = vmatpush.msra.mxu0 %v2671
        %2695 = vmatpush.msra.mxu0 %v2670
        %2696 = vmatpush.msra.mxu0 %v2669
        %2697 = vmatpush.msra.mxu0 %v2668
        %2698 = vmatpush.msra.mxu0 %v2667
        %2699 = vmatpush.msra.mxu0 %v2666
        %2700 = vmatpush.msra.mxu0 %v2665
        %2701 = vmatmul.f32.gmra.mxu0 %v2664
        %v2702 = vpop.f32.mrf.mxu0
        %v2703 = vadd.f32 %v2683, %v2702
        %2704 = vdwg.mxu0
        %v2705 = vadd.f32 %v2703, %v2439
        %v2706 = vmax.f32 %v2705, 0.0
        %v2707 = vld [vmem:[%s22] sm:$0xff]
        %v2708 = vld [vmem:[%s22 + $0x8] sm:$0xff]
        %v2709 = vld [vmem:[#allocation19] sm:$0xff]
        %v2710 = vld [vmem:[#allocation19 + $0x8] sm:$0xff]
        %v2711 = vld [vmem:[#allocation19 + $0x10] sm:$0xff]
        %v2712 = vld [vmem:[#allocation19 + $0x18] sm:$0xff]
        %v2713 = vld [vmem:[#allocation19 + $0x20] sm:$0xff]
        %v2714 = vld [vmem:[#allocation19 + $0x28] sm:$0xff]
        %v2715 = vld [vmem:[#allocation19 + $0x30] sm:$0xff]
        %v2716 = vld [vmem:[#allocation19 + $0x38] sm:$0xff]
        %v2717 = vld [vmem:[#allocation19 + $0x40] sm:$0xff]
        %v2718 = vld [vmem:[#allocation19 + $0x48] sm:$0xff]
        %v2719 = vld [vmem:[#allocation19 + $0x50] sm:$0xff]
        %v2720 = vld [vmem:[#allocation19 + $0x58] sm:$0xff]
        %v2721 = vld [vmem:[#allocation19 + $0x60] sm:$0xff]
        %v2722 = vld [vmem:[#allocation19 + $0x68] sm:$0xff]
        %v2723 = vld [vmem:[#allocation19 + $0x70] sm:$0xff]
        %v2724 = vld [vmem:[#allocation19 + $0x78] sm:$0xff]
        %v2725 = vld [vmem:[#allocation19 + $0x80] sm:$0xff]
        %v2726 = vld [vmem:[#allocation19 + $0x88] sm:$0xff]
        %v2727 = vld [vmem:[#allocation19 + $0x90] sm:$0xff]
        %v2728 = vld [vmem:[#allocation19 + $0x98] sm:$0xff]
        %v2729 = vld [vmem:[#allocation19 + $0xa0] sm:$0xff]
        %v2730 = vld [vmem:[#allocation19 + $0xa8] sm:$0xff]
        %v2731 = vld [vmem:[#allocation19 + $0xb0] sm:$0xff]
        %v2732 = vld [vmem:[#allocation19 + $0xb8] sm:$0xff]
        %v2733 = vld [vmem:[#allocation19 + $0xc0] sm:$0xff]
        %v2734 = vld [vmem:[#allocation19 + $0xc8] sm:$0xff]
        %v2735 = vld [vmem:[#allocation19 + $0xd0] sm:$0xff]
        %v2736 = vld [vmem:[#allocation19 + $0xd8] sm:$0xff]
        %v2737 = vld [vmem:[#allocation19 + $0xe0] sm:$0xff]
        %v2738 = vld [vmem:[#allocation19 + $0xe8] sm:$0xff]
        %v2739 = vld [vmem:[#allocation19 + $0xf0] sm:$0xff]
        %v2740 = vld [vmem:[#allocation19 + $0xf8] sm:$0xff]
        %2741 = vmatpush.msra.mxu0 %v2739
        %2742 = vmatpush.msra.mxu0 %v2737
        %2743 = vmatpush.msra.mxu0 %v2735
        %2744 = vmatpush.msra.mxu0 %v2733
        %2745 = vmatpush.msra.mxu0 %v2731
        %2746 = vmatpush.msra.mxu0 %v2729
        %2747 = vmatpush.msra.mxu0 %v2727
        %2748 = vmatpush.msra.mxu0 %v2725
        %2749 = vmatpush.msra.mxu0 %v2723
        %2750 = vmatpush.msra.mxu0 %v2721
        %2751 = vmatpush.msra.mxu0 %v2719
        %2752 = vmatpush.msra.mxu0 %v2717
        %2753 = vmatpush.msra.mxu0 %v2715
        %2754 = vmatpush.msra.mxu0 %v2713
        %2755 = vmatpush.msra.mxu0 %v2711
        %2756 = vmatpush.msra.mxu0 %v2709
        %2757 = vmatmul.f32.gmra.mxu0 %v2706
        %v2758 = vpop.f32.mrf.mxu0
        %v2759 = vadd.f32 0.0, %v2758
        %2760 = vdwg.mxu0
        %2761 = vmatpush.msra.mxu0 %v2740
        %2762 = vmatpush.msra.mxu0 %v2738
        %2763 = vmatpush.msra.mxu0 %v2736
        %2764 = vmatpush.msra.mxu0 %v2734
        %2765 = vmatpush.msra.mxu0 %v2732
        %2766 = vmatpush.msra.mxu0 %v2730
        %2767 = vmatpush.msra.mxu0 %v2728
        %2768 = vmatpush.msra.mxu0 %v2726
        %2769 = vmatpush.msra.mxu0 %v2724
        %2770 = vmatpush.msra.mxu0 %v2722
        %2771 = vmatpush.msra.mxu0 %v2720
        %2772 = vmatpush.msra.mxu0 %v2718
        %2773 = vmatpush.msra.mxu0 %v2716
        %2774 = vmatpush.msra.mxu0 %v2714
        %2775 = vmatpush.msra.mxu0 %v2712
        %2776 = vmatpush.msra.mxu0 %v2710
        %2777 = vmatmul.f32.gmra.mxu0 %v2706
        %v2778 = vpop.f32.mrf.mxu0
        %v2779 = vadd.f32 0.0, %v2778
        %2780 = vdwg.mxu0
        %v2782 = vsel %vm2477, %v2707, 0
        %v2785 = vsel %vm2477, %v2708, 0
        %2787 = vmatpush.msra.mxu0 0.0
        %2788 = vmatpush.msra.mxu0 0.0
        %2789 = vmatpush.msra.mxu0 0.0
        %2790 = vmatpush.msra.mxu0 0.0
        %2791 = vmatpush.msra.mxu0 0.0
        %2792 = vmatpush.msra.mxu0 0.0
        %2793 = vmatpush.msra.mxu0 0.0
        %2794 = vmatpush.msra.mxu0 0.0
        %2795 = vmatpush.msra.mxu0 0.0
        %2796 = vmatpush.msra.mxu0 0.0
        %2797 = vmatpush.msra.mxu0 0.0
        %2798 = vmatpush.msra.mxu0 0.0
        %2799 = vmatpush.msra.mxu0 0.0
        %2800 = vmatpush.msra.mxu0 0.0
        %2801 = vmatpush.msra.mxu0 0.0
        %2802 = vmatpush.msra.mxu0 %v2759
        %2803 = vmatmul.f32.gmra.mxu0 %v2782
        %v2804 = vpop.f32.mrf.mxu0
        %v2805 = vadd.f32 0.0, %v2804
        %2806 = vmatmul.f32.gmra.mxu0 %v2785
        %v2807 = vpop.f32.mrf.mxu0
        %v2808 = vadd.f32 0.0, %v2807
        %2809 = vdwg.mxu0
        %2810 = vmatpush.msra.mxu0 0.0
        %2811 = vmatpush.msra.mxu0 0.0
        %2812 = vmatpush.msra.mxu0 0.0
        %2813 = vmatpush.msra.mxu0 0.0
        %2814 = vmatpush.msra.mxu0 0.0
        %2815 = vmatpush.msra.mxu0 0.0
        %2816 = vmatpush.msra.mxu0 0.0
        %2817 = vmatpush.msra.mxu0 0.0
        %2818 = vmatpush.msra.mxu0 0.0
        %2819 = vmatpush.msra.mxu0 0.0
        %2820 = vmatpush.msra.mxu0 0.0
        %2821 = vmatpush.msra.mxu0 0.0
        %2822 = vmatpush.msra.mxu0 0.0
        %2823 = vmatpush.msra.mxu0 0.0
        %2824 = vmatpush.msra.mxu0 0.0
        %2825 = vmatpush.msra.mxu0 %v2779
        %2826 = vmatmul.f32.gmra.mxu0 %v2782
        %v2827 = vpop.f32.mrf.mxu0
        %v2828 = vadd.f32 0.0, %v2827
        %2829 = vmatmul.f32.gmra.mxu0 %v2785
        %v2830 = vpop.f32.mrf.mxu0
        %v2831 = vadd.f32 0.0, %v2830
        %2832 = vdwg.mxu0
        %2833 = vmatpush.msra.mxu0 %v1202
        %2834 = vmatpush.msra.mxu0 %v1200
        %2835 = vmatpush.msra.mxu0 %v1198
        %2836 = vmatpush.msra.mxu0 %v1196
        %2837 = vmatpush.msra.mxu0 %v1194
        %2838 = vmatpush.msra.mxu0 %v1192
        %2839 = vmatpush.msra.mxu0 %v1190
        %2840 = vmatpush.msra.mxu0 %v1188
        %2841 = vmatpush.msra.mxu0 %v1186
        %2842 = vmatpush.msra.mxu0 %v1184
        %2843 = vmatpush.msra.mxu0 %v1182
        %2844 = vmatpush.msra.mxu0 %v1180
        %2845 = vmatpush.msra.mxu0 %v1178
        %2846 = vmatpush.msra.mxu0 %v1176
        %2847 = vmatpush.msra.mxu0 %v1174
        %2848 = vmatpush.msra.mxu0 %v1172
        %2849 = vmatmul.f32.gmra.mxu0 %v2805
        %v2850 = vpop.f32.mrf.mxu0
        %v2851 = vadd.f32 0.0, %v2850
        %2852 = vmatmul.f32.gmra.mxu0 %v2808
        %v2853 = vpop.f32.mrf.mxu0
        %v2854 = vadd.f32 0.0, %v2853
        %2855 = vdwg.mxu0
        %2856 = vmatpush.msra.mxu0 %v1234
        %2857 = vmatpush.msra.mxu0 %v1232
        %2858 = vmatpush.msra.mxu0 %v1230
        %2859 = vmatpush.msra.mxu0 %v1228
        %2860 = vmatpush.msra.mxu0 %v1226
        %2861 = vmatpush.msra.mxu0 %v1224
        %2862 = vmatpush.msra.mxu0 %v1222
        %2863 = vmatpush.msra.mxu0 %v1220
        %2864 = vmatpush.msra.mxu0 %v1218
        %2865 = vmatpush.msra.mxu0 %v1216
        %2866 = vmatpush.msra.mxu0 %v1214
        %2867 = vmatpush.msra.mxu0 %v1212
        %2868 = vmatpush.msra.mxu0 %v1210
        %2869 = vmatpush.msra.mxu0 %v1208
        %2870 = vmatpush.msra.mxu0 %v1206
        %2871 = vmatpush.msra.mxu0 %v1204
        %2872 = vmatmul.f32.gmra.mxu0 %v2828
        %v2873 = vpop.f32.mrf.mxu0
        %v2874 = vadd.f32 %v2851, %v2873
        %2875 = vmatmul.f32.gmra.mxu0 %v2831
        %v2876 = vpop.f32.mrf.mxu0
        %v2877 = vadd.f32 %v2854, %v2876
        %2878 = vdwg.mxu0
        %2879 = vmatpush.msra.mxu0 %v1203
        %2880 = vmatpush.msra.mxu0 %v1201
        %2881 = vmatpush.msra.mxu0 %v1199
        %2882 = vmatpush.msra.mxu0 %v1197
        %2883 = vmatpush.msra.mxu0 %v1195
        %2884 = vmatpush.msra.mxu0 %v1193
        %2885 = vmatpush.msra.mxu0 %v1191
        %2886 = vmatpush.msra.mxu0 %v1189
        %2887 = vmatpush.msra.mxu0 %v1187
        %2888 = vmatpush.msra.mxu0 %v1185
        %2889 = vmatpush.msra.mxu0 %v1183
        %2890 = vmatpush.msra.mxu0 %v1181
        %2891 = vmatpush.msra.mxu0 %v1179
        %2892 = vmatpush.msra.mxu0 %v1177
        %2893 = vmatpush.msra.mxu0 %v1175
        %2894 = vmatpush.msra.mxu0 %v1173
        %2895 = vmatmul.f32.gmra.mxu0 %v2805
        %v2896 = vpop.f32.mrf.mxu0
        %v2897 = vadd.f32 0.0, %v2896
        %2898 = vmatmul.f32.gmra.mxu0 %v2808
        %v2899 = vpop.f32.mrf.mxu0
        %v2900 = vadd.f32 0.0, %v2899
        %2901 = vdwg.mxu0
        %2902 = vmatpush.msra.mxu0 %v1235
        %2903 = vmatpush.msra.mxu0 %v1233
        %2904 = vmatpush.msra.mxu0 %v1231
        %2905 = vmatpush.msra.mxu0 %v1229
        %2906 = vmatpush.msra.mxu0 %v1227
        %2907 = vmatpush.msra.mxu0 %v1225
        %2908 = vmatpush.msra.mxu0 %v1223
        %2909 = vmatpush.msra.mxu0 %v1221
        %2910 = vmatpush.msra.mxu0 %v1219
        %2911 = vmatpush.msra.mxu0 %v1217
        %2912 = vmatpush.msra.mxu0 %v1215
        %2913 = vmatpush.msra.mxu0 %v1213
        %2914 = vmatpush.msra.mxu0 %v1211
        %2915 = vmatpush.msra.mxu0 %v1209
        %2916 = vmatpush.msra.mxu0 %v1207
        %2917 = vmatpush.msra.mxu0 %v1205
        %2918 = vmatmul.f32.gmra.mxu0 %v2828
        %v2919 = vpop.f32.mrf.mxu0
        %v2920 = vadd.f32 %v2897, %v2919
        %2921 = vmatmul.f32.gmra.mxu0 %v2831
        %v2922 = vpop.f32.mrf.mxu0
        %v2923 = vadd.f32 %v2900, %v2922
        %2924 = vdwg.mxu0
        %2925 = vmatpush.msra.mxu0 %v1332
        %2926 = vmatpush.msra.mxu0 %v1330
        %2927 = vmatpush.msra.mxu0 %v1328
        %2928 = vmatpush.msra.mxu0 %v1326
        %2929 = vmatpush.msra.mxu0 %v1324
        %2930 = vmatpush.msra.mxu0 %v1322
        %2931 = vmatpush.msra.mxu0 %v1320
        %2932 = vmatpush.msra.mxu0 %v1318
        %2933 = vmatpush.msra.mxu0 %v1316
        %2934 = vmatpush.msra.mxu0 %v1314
        %2935 = vmatpush.msra.mxu0 %v1312
        %2936 = vmatpush.msra.mxu0 %v1310
        %2937 = vmatpush.msra.mxu0 %v1308
        %2938 = vmatpush.msra.mxu0 %v1306
        %2939 = vmatpush.msra.mxu0 %v1304
        %2940 = vmatpush.msra.mxu0 %v1302
        %2941 = vmatmul.f32.gmra.mxu0 %v2805
        %v2942 = vpop.f32.mrf.mxu0
        %v2943 = vadd.f32 0.0, %v2942
        %2944 = vmatmul.f32.gmra.mxu0 %v2808
        %v2945 = vpop.f32.mrf.mxu0
        %v2946 = vadd.f32 0.0, %v2945
        %2947 = vdwg.mxu0
        %2948 = vmatpush.msra.mxu0 %v1364
        %2949 = vmatpush.msra.mxu0 %v1362
        %2950 = vmatpush.msra.mxu0 %v1360
        %2951 = vmatpush.msra.mxu0 %v1358
        %2952 = vmatpush.msra.mxu0 %v1356
        %2953 = vmatpush.msra.mxu0 %v1354
        %2954 = vmatpush.msra.mxu0 %v1352
        %2955 = vmatpush.msra.mxu0 %v1350
        %2956 = vmatpush.msra.mxu0 %v1348
        %2957 = vmatpush.msra.mxu0 %v1346
        %2958 = vmatpush.msra.mxu0 %v1344
        %2959 = vmatpush.msra.mxu0 %v1342
        %2960 = vmatpush.msra.mxu0 %v1340
        %2961 = vmatpush.msra.mxu0 %v1338
        %2962 = vmatpush.msra.mxu0 %v1336
        %2963 = vmatpush.msra.mxu0 %v1334
        %2964 = vmatmul.f32.gmra.mxu0 %v2828
        %v2965 = vpop.f32.mrf.mxu0
        %v2966 = vadd.f32 %v2943, %v2965
        %2967 = vmatmul.f32.gmra.mxu0 %v2831
        %v2968 = vpop.f32.mrf.mxu0
        %v2969 = vadd.f32 %v2946, %v2968
        %2970 = vdwg.mxu0
        %2971 = vmatpush.msra.mxu0 %v1333
        %2972 = vmatpush.msra.mxu0 %v1331
        %2973 = vmatpush.msra.mxu0 %v1329
        %2974 = vmatpush.msra.mxu0 %v1327
        %2975 = vmatpush.msra.mxu0 %v1325
        %2976 = vmatpush.msra.mxu0 %v1323
        %2977 = vmatpush.msra.mxu0 %v1321
        %2978 = vmatpush.msra.mxu0 %v1319
        %2979 = vmatpush.msra.mxu0 %v1317
        %2980 = vmatpush.msra.mxu0 %v1315
        %2981 = vmatpush.msra.mxu0 %v1313
        %2982 = vmatpush.msra.mxu0 %v1311
        %2983 = vmatpush.msra.mxu0 %v1309
        %2984 = vmatpush.msra.mxu0 %v1307
        %2985 = vmatpush.msra.mxu0 %v1305
        %2986 = vmatpush.msra.mxu0 %v1303
        %2987 = vmatmul.f32.gmra.mxu0 %v2805
        %v2988 = vpop.f32.mrf.mxu0
        %v2989 = vadd.f32 0.0, %v2988
        %2990 = vmatmul.f32.gmra.mxu0 %v2808
        %v2991 = vpop.f32.mrf.mxu0
        %v2992 = vadd.f32 0.0, %v2991
        %2993 = vdwg.mxu0
        %2994 = vmatpush.msra.mxu0 %v1365
        %2995 = vmatpush.msra.mxu0 %v1363
        %2996 = vmatpush.msra.mxu0 %v1361
        %2997 = vmatpush.msra.mxu0 %v1359
        %2998 = vmatpush.msra.mxu0 %v1357
        %2999 = vmatpush.msra.mxu0 %v1355
        %3000 = vmatpush.msra.mxu0 %v1353
        %3001 = vmatpush.msra.mxu0 %v1351
        %3002 = vmatpush.msra.mxu0 %v1349
        %3003 = vmatpush.msra.mxu0 %v1347
        %3004 = vmatpush.msra.mxu0 %v1345
        %3005 = vmatpush.msra.mxu0 %v1343
        %3006 = vmatpush.msra.mxu0 %v1341
        %3007 = vmatpush.msra.mxu0 %v1339
        %3008 = vmatpush.msra.mxu0 %v1337
        %3009 = vmatpush.msra.mxu0 %v1335
        %3010 = vmatmul.f32.gmra.mxu0 %v2828
        %v3011 = vpop.f32.mrf.mxu0
        %v3012 = vadd.f32 %v2989, %v3011
        %3013 = vmatmul.f32.gmra.mxu0 %v2831
        %v3014 = vpop.f32.mrf.mxu0
        %v3015 = vadd.f32 %v2992, %v3014
        %3016 = vdwg.mxu0
        %v3017 = vrot.slane %v2874, 7
        %v3018 = vrot.slane %v2920, 7
        %v3019 = vrot.slane %v2877, 7
        %v3020 = vrot.slane %v2923, 7
        %v3021 = vsel %vm1622, %v3017, %v3019
        %v3022 = vsel %vm1622, %v3018, %v3020
        %v3023 = vsel %vm1622, %v3019, %v3017
        %v3024 = vsel %vm1622, %v3020, %v3018
        %v3025 = vmul.f32 %v1416, %v3023
        %v3026 = vmul.f32 %v1417, %v3024
        %v3027 = vmul.f32 %v1418, %v3021
        %v3028 = vmul.f32 %v1419, %v3022
        %3029 = vmatpush.msra.mxu0 %v1267
        %3030 = vmatpush.msra.mxu0 %v1265
        %3031 = vmatpush.msra.mxu0 %v1263
        %3032 = vmatpush.msra.mxu0 %v1261
        %3033 = vmatpush.msra.mxu0 %v1259
        %3034 = vmatpush.msra.mxu0 %v1257
        %3035 = vmatpush.msra.mxu0 %v1255
        %3036 = vmatpush.msra.mxu0 %v1253
        %3037 = vmatpush.msra.mxu0 %v1251
        %3038 = vmatpush.msra.mxu0 %v1249
        %3039 = vmatpush.msra.mxu0 %v1247
        %3040 = vmatpush.msra.mxu0 %v1245
        %3041 = vmatpush.msra.mxu0 %v1243
        %3042 = vmatpush.msra.mxu0 %v1241
        %3043 = vmatpush.msra.mxu0 %v1239
        %3044 = vmatpush.msra.mxu0 %v1237
        %3045 = vmatmul.f32.gmra.mxu0 %v2805
        %v3046 = vpop.f32.mrf.mxu0
        %v3047 = vadd.f32 %v3025, %v3046
        %3048 = vmatmul.f32.gmra.mxu0 %v2808
        %v3049 = vpop.f32.mrf.mxu0
        %v3050 = vadd.f32 %v3027, %v3049
        %3051 = vdwg.mxu0
        %3052 = vmatpush.msra.mxu0 %v1299
        %3053 = vmatpush.msra.mxu0 %v1297
        %3054 = vmatpush.msra.mxu0 %v1295
        %3055 = vmatpush.msra.mxu0 %v1293
        %3056 = vmatpush.msra.mxu0 %v1291
        %3057 = vmatpush.msra.mxu0 %v1289
        %3058 = vmatpush.msra.mxu0 %v1287
        %3059 = vmatpush.msra.mxu0 %v1285
        %3060 = vmatpush.msra.mxu0 %v1283
        %3061 = vmatpush.msra.mxu0 %v1281
        %3062 = vmatpush.msra.mxu0 %v1279
        %3063 = vmatpush.msra.mxu0 %v1277
        %3064 = vmatpush.msra.mxu0 %v1275
        %3065 = vmatpush.msra.mxu0 %v1273
        %3066 = vmatpush.msra.mxu0 %v1271
        %3067 = vmatpush.msra.mxu0 %v1269
        %3068 = vmatmul.f32.gmra.mxu0 %v2828
        %v3069 = vpop.f32.mrf.mxu0
        %v3070 = vadd.f32 %v3047, %v3069
        %3071 = vmatmul.f32.gmra.mxu0 %v2831
        %v3072 = vpop.f32.mrf.mxu0
        %v3073 = vadd.f32 %v3050, %v3072
        %3074 = vdwg.mxu0
        %3075 = vmatpush.msra.mxu0 %v1268
        %3076 = vmatpush.msra.mxu0 %v1266
        %3077 = vmatpush.msra.mxu0 %v1264
        %3078 = vmatpush.msra.mxu0 %v1262
        %3079 = vmatpush.msra.mxu0 %v1260
        %3080 = vmatpush.msra.mxu0 %v1258
        %3081 = vmatpush.msra.mxu0 %v1256
        %3082 = vmatpush.msra.mxu0 %v1254
        %3083 = vmatpush.msra.mxu0 %v1252
        %3084 = vmatpush.msra.mxu0 %v1250
        %3085 = vmatpush.msra.mxu0 %v1248
        %3086 = vmatpush.msra.mxu0 %v1246
        %3087 = vmatpush.msra.mxu0 %v1244
        %3088 = vmatpush.msra.mxu0 %v1242
        %3089 = vmatpush.msra.mxu0 %v1240
        %3090 = vmatpush.msra.mxu0 %v1238
        %3091 = vmatmul.f32.gmra.mxu0 %v2805
        %v3092 = vpop.f32.mrf.mxu0
        %v3093 = vadd.f32 %v3026, %v3092
        %3094 = vmatmul.f32.gmra.mxu0 %v2808
        %v3095 = vpop.f32.mrf.mxu0
        %v3096 = vadd.f32 %v3028, %v3095
        %3097 = vdwg.mxu0
        %3098 = vmatpush.msra.mxu0 %v1300
        %3099 = vmatpush.msra.mxu0 %v1298
        %3100 = vmatpush.msra.mxu0 %v1296
        %3101 = vmatpush.msra.mxu0 %v1294
        %3102 = vmatpush.msra.mxu0 %v1292
        %3103 = vmatpush.msra.mxu0 %v1290
        %3104 = vmatpush.msra.mxu0 %v1288
        %3105 = vmatpush.msra.mxu0 %v1286
        %3106 = vmatpush.msra.mxu0 %v1284
        %3107 = vmatpush.msra.mxu0 %v1282
        %3108 = vmatpush.msra.mxu0 %v1280
        %3109 = vmatpush.msra.mxu0 %v1278
        %3110 = vmatpush.msra.mxu0 %v1276
        %3111 = vmatpush.msra.mxu0 %v1274
        %3112 = vmatpush.msra.mxu0 %v1272
        %3113 = vmatpush.msra.mxu0 %v1270
        %3114 = vmatmul.f32.gmra.mxu0 %v2828
        %v3115 = vpop.f32.mrf.mxu0
        %v3116 = vadd.f32 %v3093, %v3115
        %3117 = vmatmul.f32.gmra.mxu0 %v2831
        %v3118 = vpop.f32.mrf.mxu0
        %v3119 = vadd.f32 %v3096, %v3118
        %3120 = vdwg.mxu0
        %v3121 = vrot.slane %v2966, 1
        %v3122 = vrot.slane %v3012, 1
        %v3123 = vrot.slane %v2969, 1
        %v3124 = vrot.slane %v3015, 1
        %v3125 = vsel %vm1727, %v3121, %v3123
        %v3126 = vsel %vm1727, %v3122, %v3124
        %v3127 = vsel %vm1727, %v3123, %v3121
        %v3128 = vsel %vm1727, %v3124, %v3122
        %v3129 = vmul.f32 %v1421, %v3125
        %v3130 = vmul.f32 %v1422, %v3126
        %v3131 = vmul.f32 %v1423, %v3127
        %v3132 = vmul.f32 %v1424, %v3128
        %v3133 = vadd.f32 %v3070, %v3129
        %v3134 = vadd.f32 %v3116, %v3130
        %v3135 = vadd.f32 %v3073, %v3131
        %v3136 = vadd.f32 %v3119, %v3132
        %v3137 = vadd.f32 %v3133, %v2224
        %v3138 = vadd.f32 %v3134, %v2224
        %v3139 = vadd.f32 %v3135, %v2224
        %v3140 = vadd.f32 %v3136, %v2224
        %v3141 = vld [vmem:[#allocation13] sm:$0xff]
        %v3142 = vld [vmem:[#allocation13 + $0x8] sm:$0xff]
        %v3143 = vld [vmem:[#allocation13 + $0x10] sm:$0xff]
        %v3144 = vld [vmem:[#allocation13 + $0x18] sm:$0xff]
        %v3145 = vld [vmem:[#allocation13 + $0x20] sm:$0xff]
        %v3146 = vld [vmem:[#allocation13 + $0x28] sm:$0xff]
        %v3147 = vld [vmem:[#allocation13 + $0x30] sm:$0xff]
        %v3148 = vld [vmem:[#allocation13 + $0x38] sm:$0xff]
        %v3149 = vld [vmem:[#allocation13 + $0x40] sm:$0xff]
        %v3150 = vld [vmem:[#allocation13 + $0x48] sm:$0xff]
        %v3151 = vld [vmem:[#allocation13 + $0x50] sm:$0xff]
        %v3152 = vld [vmem:[#allocation13 + $0x58] sm:$0xff]
        %v3153 = vld [vmem:[#allocation13 + $0x60] sm:$0xff]
        %v3154 = vld [vmem:[#allocation13 + $0x68] sm:$0xff]
        %v3155 = vld [vmem:[#allocation13 + $0x70] sm:$0xff]
        %v3156 = vld [vmem:[#allocation13 + $0x78] sm:$0xff]
        %v3157 = vld [vmem:[#allocation13 + $0x80] sm:$0xff]
        %v3158 = vld [vmem:[#allocation13 + $0x88] sm:$0xff]
        %v3159 = vld [vmem:[#allocation13 + $0x90] sm:$0xff]
        %v3160 = vld [vmem:[#allocation13 + $0x98] sm:$0xff]
        %v3161 = vld [vmem:[#allocation13 + $0xa0] sm:$0xff]
        %v3162 = vld [vmem:[#allocation13 + $0xa8] sm:$0xff]
        %v3163 = vld [vmem:[#allocation13 + $0xb0] sm:$0xff]
        %v3164 = vld [vmem:[#allocation13 + $0xb8] sm:$0xff]
        %v3165 = vld [vmem:[#allocation13 + $0xc0] sm:$0xff]
        %v3166 = vld [vmem:[#allocation13 + $0xc8] sm:$0xff]
        %v3167 = vld [vmem:[#allocation13 + $0xd0] sm:$0xff]
        %v3168 = vld [vmem:[#allocation13 + $0xd8] sm:$0xff]
        %v3169 = vld [vmem:[#allocation13 + $0xe0] sm:$0xff]
        %v3170 = vld [vmem:[#allocation13 + $0xe8] sm:$0xff]
        %v3171 = vld [vmem:[#allocation13 + $0xf0] sm:$0xff]
        %v3172 = vld [vmem:[#allocation13 + $0xf8] sm:$0xff]
        %v3173 = vld [vmem:[#allocation13 + $0x100] sm:$0xff]
        %v3174 = vld [vmem:[#allocation13 + $0x108] sm:$0xff]
        %v3175 = vld [vmem:[#allocation13 + $0x110] sm:$0xff]
        %v3176 = vld [vmem:[#allocation13 + $0x118] sm:$0xff]
        %v3177 = vld [vmem:[#allocation13 + $0x120] sm:$0xff]
        %v3178 = vld [vmem:[#allocation13 + $0x128] sm:$0xff]
        %v3179 = vld [vmem:[#allocation13 + $0x130] sm:$0xff]
        %v3180 = vld [vmem:[#allocation13 + $0x138] sm:$0xff]
        %v3181 = vld [vmem:[#allocation13 + $0x140] sm:$0xff]
        %v3182 = vld [vmem:[#allocation13 + $0x148] sm:$0xff]
        %v3183 = vld [vmem:[#allocation13 + $0x150] sm:$0xff]
        %v3184 = vld [vmem:[#allocation13 + $0x158] sm:$0xff]
        %v3185 = vld [vmem:[#allocation13 + $0x160] sm:$0xff]
        %v3186 = vld [vmem:[#allocation13 + $0x168] sm:$0xff]
        %v3187 = vld [vmem:[#allocation13 + $0x170] sm:$0xff]
        %v3188 = vld [vmem:[#allocation13 + $0x178] sm:$0xff]
        %v3189 = vld [vmem:[#allocation13 + $0x180] sm:$0xff]
        %v3190 = vld [vmem:[#allocation13 + $0x188] sm:$0xff]
        %v3191 = vld [vmem:[#allocation13 + $0x190] sm:$0xff]
        %v3192 = vld [vmem:[#allocation13 + $0x198] sm:$0xff]
        %v3193 = vld [vmem:[#allocation13 + $0x1a0] sm:$0xff]
        %v3194 = vld [vmem:[#allocation13 + $0x1a8] sm:$0xff]
        %v3195 = vld [vmem:[#allocation13 + $0x1b0] sm:$0xff]
        %v3196 = vld [vmem:[#allocation13 + $0x1b8] sm:$0xff]
        %v3197 = vld [vmem:[#allocation13 + $0x1c0] sm:$0xff]
        %v3198 = vld [vmem:[#allocation13 + $0x1c8] sm:$0xff]
        %v3199 = vld [vmem:[#allocation13 + $0x1d0] sm:$0xff]
        %v3200 = vld [vmem:[#allocation13 + $0x1d8] sm:$0xff]
        %v3201 = vld [vmem:[#allocation13 + $0x1e0] sm:$0xff]
        %v3202 = vld [vmem:[#allocation13 + $0x1e8] sm:$0xff]
        %v3203 = vld [vmem:[#allocation13 + $0x1f0] sm:$0xff]
        %v3204 = vld [vmem:[#allocation13 + $0x1f8] sm:$0xff]
        %v3205 = vld [vmem:[%s14] sm:$0x3]
        %v3207 = vperm.slane %v3205, 0
        %v3208 = vperm.slane %v3205, 1
        %3211 = vmatpush.msra.mxu0 %v3171
        %3212 = vmatpush.msra.mxu0 %v3169
        %3213 = vmatpush.msra.mxu0 %v3167
        %3214 = vmatpush.msra.mxu0 %v3165
        %3215 = vmatpush.msra.mxu0 %v3163
        %3216 = vmatpush.msra.mxu0 %v3161
        %3217 = vmatpush.msra.mxu0 %v3159
        %3218 = vmatpush.msra.mxu0 %v3157
        %3219 = vmatpush.msra.mxu0 %v3155
        %3220 = vmatpush.msra.mxu0 %v3153
        %3221 = vmatpush.msra.mxu0 %v3151
        %3222 = vmatpush.msra.mxu0 %v3149
        %3223 = vmatpush.msra.mxu0 %v3147
        %3224 = vmatpush.msra.mxu0 %v3145
        %3225 = vmatpush.msra.mxu0 %v3143
        %3226 = vmatpush.msra.mxu0 %v3141
        %3227 = vmatmul.f32.gmra.mxu0 %v3137
        %v3228 = vpop.f32.mrf.mxu0
        %v3229 = vadd.f32 %v3207, %v3228
        %3230 = vmatmul.f32.gmra.mxu0 %v3139
        %v3231 = vpop.f32.mrf.mxu0
        %v3232 = vadd.f32 %v3207, %v3231
        %3233 = vdwg.mxu0
        %3234 = vmatpush.msra.mxu0 %v3203
        %3235 = vmatpush.msra.mxu0 %v3201
        %3236 = vmatpush.msra.mxu0 %v3199
        %3237 = vmatpush.msra.mxu0 %v3197
        %3238 = vmatpush.msra.mxu0 %v3195
        %3239 = vmatpush.msra.mxu0 %v3193
        %3240 = vmatpush.msra.mxu0 %v3191
        %3241 = vmatpush.msra.mxu0 %v3189
        %3242 = vmatpush.msra.mxu0 %v3187
        %3243 = vmatpush.msra.mxu0 %v3185
        %3244 = vmatpush.msra.mxu0 %v3183
        %3245 = vmatpush.msra.mxu0 %v3181
        %3246 = vmatpush.msra.mxu0 %v3179
        %3247 = vmatpush.msra.mxu0 %v3177
        %3248 = vmatpush.msra.mxu0 %v3175
        %3249 = vmatpush.msra.mxu0 %v3173
        %3250 = vmatmul.f32.gmra.mxu0 %v3138
        %v3251 = vpop.f32.mrf.mxu0
        %v3252 = vadd.f32 %v3229, %v3251
        %3253 = vmatmul.f32.gmra.mxu0 %v3140
        %v3254 = vpop.f32.mrf.mxu0
        %v3255 = vadd.f32 %v3232, %v3254
        %3256 = vdwg.mxu0
        %3257 = vmatpush.msra.mxu0 %v3172
        %3258 = vmatpush.msra.mxu0 %v3170
        %3259 = vmatpush.msra.mxu0 %v3168
        %3260 = vmatpush.msra.mxu0 %v3166
        %3261 = vmatpush.msra.mxu0 %v3164
        %3262 = vmatpush.msra.mxu0 %v3162
        %3263 = vmatpush.msra.mxu0 %v3160
        %3264 = vmatpush.msra.mxu0 %v3158
        %3265 = vmatpush.msra.mxu0 %v3156
        %3266 = vmatpush.msra.mxu0 %v3154
        %3267 = vmatpush.msra.mxu0 %v3152
        %3268 = vmatpush.msra.mxu0 %v3150
        %3269 = vmatpush.msra.mxu0 %v3148
        %3270 = vmatpush.msra.mxu0 %v3146
        %3271 = vmatpush.msra.mxu0 %v3144
        %3272 = vmatpush.msra.mxu0 %v3142
        %3273 = vmatmul.f32.gmra.mxu0 %v3137
        %v3274 = vpop.f32.mrf.mxu0
        %v3275 = vadd.f32 %v3208, %v3274
        %3276 = vmatmul.f32.gmra.mxu0 %v3139
        %v3277 = vpop.f32.mrf.mxu0
        %v3278 = vadd.f32 %v3208, %v3277
        %3279 = vdwg.mxu0
        %3280 = vmatpush.msra.mxu0 %v3204
        %3281 = vmatpush.msra.mxu0 %v3202
        %3282 = vmatpush.msra.mxu0 %v3200
        %3283 = vmatpush.msra.mxu0 %v3198
        %3284 = vmatpush.msra.mxu0 %v3196
        %3285 = vmatpush.msra.mxu0 %v3194
        %3286 = vmatpush.msra.mxu0 %v3192
        %3287 = vmatpush.msra.mxu0 %v3190
        %3288 = vmatpush.msra.mxu0 %v3188
        %3289 = vmatpush.msra.mxu0 %v3186
        %3290 = vmatpush.msra.mxu0 %v3184
        %3291 = vmatpush.msra.mxu0 %v3182
        %3292 = vmatpush.msra.mxu0 %v3180
        %3293 = vmatpush.msra.mxu0 %v3178
        %3294 = vmatpush.msra.mxu0 %v3176
        %3295 = vmatpush.msra.mxu0 %v3174
        %3296 = vmatmul.f32.gmra.mxu0 %v3138
        %v3297 = vpop.f32.mrf.mxu0
        %v3298 = vadd.f32 %v3275, %v3297
        %3299 = vmatmul.f32.gmra.mxu0 %v3140
        %v3300 = vpop.f32.mrf.mxu0
        %v3301 = vadd.f32 %v3278, %v3300
        %3302 = vdwg.mxu0
        %v3303 = vadd.f32 %v3252, %v2226
        %v3304 = vadd.f32 %v3298, %v2227
        %v3305 = vadd.f32 %v3255, %v2228
        %v3306 = vadd.f32 %v3301, %v2229
        %v3307 = vmax.f32 %v3303, 0.0
        %v3308 = vmax.f32 %v3304, 0.0
        %v3309 = vmax.f32 %v3305, 0.0
        %v3310 = vmax.f32 %v3306, 0.0
        %v3311 = vsub.f32 0.0, %v3307
        %v3312 = vsub.f32 0.0, %v3308
        %v3313 = vsub.f32 0.0, %v3309
        %v3314 = vsub.f32 0.0, %v3310
        %v3315 = vmul.f32 %v3311, 1.442695
        %v3316 = vpow.pop %v3315
        %v3317 = vmul.f32 %v3312, 1.442695
        %v3318 = vpow.pop %v3317
        %v3319 = vmul.f32 %v3313, 1.442695
        %v3320 = vpow.pop %v3319
        %v3321 = vmul.f32 %v3314, 1.442695
        %v3322 = vpow.pop %v3321
        %v3323 = vadd.f32 %v3316, 1.0
        %v3324 = vadd.f32 %v3318, 1.0
        %v3325 = vadd.f32 %v3320, 1.0
        %v3326 = vadd.f32 %v3322, 1.0
        %v3327 = vrcp.pop %v3323
        %v3328 = vrcp.pop %v3324
        %v3329 = vrcp.pop %v3325
        %v3330 = vrcp.pop %v3326
        %3331 = vst [vmem:[%s970] sm:$0xff] %v3327
        %3332 = vst [vmem:[%s970 + $0x8] sm:$0xff] %v3328
        %3333 = vst [vmem:[%s970 + $0x10] sm:$0xff] %v3329
        %3334 = vst [vmem:[%s970 + $0x18] sm:$0xff] %v3330
        %s3335 = sand.u32 %s609, 1
        %s3336 = scalar_lea.sflag [#allocation6], %s3335
        %s3337 = sand.u32 %s609, 1
        %s3338 = smul.addr %s3337, 32
        %s3339 = scalar_lea.vmem [#allocation22], %s3338
        // Predicated region
        $region169: #{tpu_custom_call.1} parent=123 // pred_check
          %p3340 = pneg %p619
        $region170: #{tpu_custom_call.1} parent=123 // pred_check_branch
          %3342 = sbr.rel (%p3340) target = $region172
        $region171: #{tpu_custom_call.1} parent=123 // pred_region
          %3344 = vsyncadd %s3336, 0
          %s3345 = smul.addr %s50, 4
          %s3346 = smul.addr %s3345, 8
          %s3347 = scalar_lea.hbm %s26, %s3346
          %s3348 = sshll.u32 %s3339, 4
          %s3349 = int_to_ptr.vmem [resolvable:$true] %s3348
          %s3350 = sshll.u32 %s3347, 4
          %s3351 = int_to_ptr.hbm [resolvable:$true] %s3350
          %3356 = dma.vmem_to_hbm [thread:$0]  %s3349, 512, %s3351, %s3336, 256, 256, 16
        $region172: #{tpu_custom_call.1} parent=123 // pred_fallthru
          _
      $region124: #{tpu_custom_call.1} parent=5 // pred_fallthru
        _
      %p3357 = scmp.le.s32.totalorder 2, %s45
      // Predicated region
      $region173: #{tpu_custom_call.1} parent=5 // pred_check
        %p3358 = pneg %p3357
      $region174: #{tpu_custom_call.1} parent=5 // pred_check_branch
        %3360 = sbr.rel (%p3358) target = $region176
      $region175: #{tpu_custom_call.1} parent=5 // pred_region
        %s3361 = ssub.s32 %s45, 2
        // Predicated region
        $region177: #{tpu_custom_call.1} parent=175 // pred_check
          %p3362 = pneg %p625
        $region178: #{tpu_custom_call.1} parent=175 // pred_check_branch
          %3364 = sbr.rel (%p3362) target = $region180
        $region179: #{tpu_custom_call.1} parent=175 // pred_region
          %s3365 = sand.u32 %s610, 1
          %s3366 = scalar_lea.sflag [#allocation6], %s3365
          %s3367 = sand.u32 %s610, 1
          %s3368 = smul.addr %s3367, 32
          %s3369 = scalar_lea.vmem [#allocation22], %s3368
          %3371 = dma.done %s3366, 512
        $region180: #{tpu_custom_call.1} parent=175 // pred_fallthru
          _
      $region176: #{tpu_custom_call.1} parent=5 // pred_fallthru
        _
    $region6: #{tpu_custom_call.1} parent=1 // loop_footer
      %s49 = sadd.s32 1, %s45
    $region7: #{tpu_custom_call.1} parent=1 // loop_footer_branch
      %44 = sbr.rel target = $region3
    $region8: #{tpu_custom_call.1} parent=1 // loop_exit
      _
    %3372 = vsyncpa [#allocation5], 1
    %s3373 = scalar_lea.sflag [#allocation5], 1
    %3374 = vsyncpa %s3373, 1
    %3375 = vsyncpa [#allocation8], 1
    %3376 = vsyncpa [#allocation11], 1
    %3377 = vsyncpa [#allocation14], 1
    %3378 = vsyncpa [#allocation17], 1
    %3379 = vsyncpa [#allocation20], 1
    %3380 = vsyncpa [#allocation6], 1
    %s3381 = scalar_lea.sflag [#allocation6], 1
    %3382 = vsyncpa %s3381, 1

</llo_original>
